<compile_context>
chip_gen: v5e
topology: v5e:2x2
jax: 0.10.0
libtpu: 0.0.40
codegen_flags: <defaults>
</compile_context>

<pallas_src>
import math
import functools

import jax
import jax.numpy as jnp
from jax import lax
from jax.experimental import pallas as pl
from jax.experimental.pallas import tpu as pltpu


_COMPUTE_DTYPE = jnp.bfloat16

_PARAM_ORDER = (
    "sa_wqk", "sa_bqk", "sa_wv", "sa_bv", "sa_wo", "sa_bo",
    "ca_wq", "ca_bq", "ca_wk", "ca_bk", "ca_wv", "ca_bv", "ca_wo", "ca_bo",
    "l1_w", "l1_b", "l2_w", "l2_b",
    "n1_g", "n1_b", "n2_g", "n2_b", "n3_g", "n3_b",
)


# --------------------------- parameter preparation ---------------------------
def prepare_params(raw, d_model, nhead, compute_dtype=_COMPUTE_DTYPE):
    """Fold / pre-transpose PyTorch-layout parameters for the kernel (offline).

    - attention in/out projection weights pre-transposed and split per head:
      (H, D, head_dim) for Q/K/V, (H, head_dim, D) for the output projection,
      so the kernel never transposes on-chip;
    - self-attention Q and K are fused into one (H, D, 2*head_dim) weight;
    - the 1/sqrt(head_dim) scale is folded into Q weights and bias;
    - matmul operands cast to bf16; biases / layernorm params stay f32.
    """
    D, H = d_model, nhead
    hd = D // H
    scale = 1.0 / math.sqrt(hd)
    cdt = compute_dtype

    def split_in(w):                       # (D_out=D, D_in=D) -> (H, D_in, hd)
        return jnp.transpose(w, (1, 0)).reshape(D, H, hd).transpose(1, 0, 2)

    def split_b(b):                        # (D,) -> (H, 1, hd)
        return b.reshape(H, hd)[:, None, :]

    def attn(in_w, in_b, out_w, out_b, fuse_qk):
        wq, wk, wv = in_w[:D], in_w[D:2 * D], in_w[2 * D:]
        bq, bk, bv = in_b[0, :D], in_b[0, D:2 * D], in_b[0, 2 * D:]
        wq_h, wk_h, wv_h = split_in(wq) * scale, split_in(wk), split_in(wv)
        bq_h, bk_h, bv_h = split_b(bq) * scale, split_b(bk), split_b(bv)
        wo_h = jnp.transpose(out_w, (1, 0)).reshape(H, hd, D)
        if fuse_qk:
            return {
                "wqk": jnp.concatenate([wq_h, wk_h], axis=2).astype(cdt),
                "bqk": jnp.concatenate([bq_h, bk_h], axis=2),
                "wv": wv_h.astype(cdt), "bv": bv_h,
                "wo": wo_h.astype(cdt), "bo": out_b,
            }
        return {
            "wq": wq_h.astype(cdt), "bq": bq_h,
            "wk": wk_h.astype(cdt), "bk": bk_h,
            "wv": wv_h.astype(cdt), "bv": bv_h,
            "wo": wo_h.astype(cdt), "bo": out_b,
        }

    sa = attn(raw["sa_in_w"], raw["sa_in_b"], raw["sa_out_w"], raw["sa_out_b"], True)
    ca = attn(raw["ca_in_w"], raw["ca_in_b"], raw["ca_out_w"], raw["ca_out_b"], False)

    return {
        "sa_wqk": sa["wqk"], "sa_bqk": sa["bqk"], "sa_wv": sa["wv"],
        "sa_bv": sa["bv"], "sa_wo": sa["wo"], "sa_bo": sa["bo"],
        "ca_wq": ca["wq"], "ca_bq": ca["bq"], "ca_wk": ca["wk"], "ca_bk": ca["bk"],
        "ca_wv": ca["wv"], "ca_bv": ca["bv"], "ca_wo": ca["wo"], "ca_bo": ca["bo"],
        "l1_w": jnp.transpose(raw["l1_w"], (1, 0)).astype(cdt),   # (D, ff)
        "l1_b": raw["l1_b"],
        "l2_w": jnp.transpose(raw["l2_w"], (1, 0)).astype(cdt),   # (ff, D)
        "l2_b": raw["l2_b"],
        "n1_g": raw["n1_g"], "n1_b": raw["n1_b"],
        "n2_g": raw["n2_g"], "n2_b": raw["n2_b"],
        "n3_g": raw["n3_g"], "n3_b": raw["n3_b"],
    }


# ---------------------------------- kernel -----------------------------------
def _decoder_layer_kernel(
    tgt_ref, mem_ref, qpos_ref, pos_ref,
    sa_wqk_ref, sa_bqk_ref, sa_wv_ref, sa_bv_ref, sa_wo_ref, sa_bo_ref,
    ca_wq_ref, ca_bq_ref, ca_wk_ref, ca_bk_ref,
    ca_wv_ref, ca_bv_ref, ca_wo_ref, ca_bo_ref,
    l1_w_ref, l1_b_ref, l2_w_ref, l2_b_ref,
    n1_g_ref, n1_b_ref, n2_g_ref, n2_b_ref, n3_g_ref, n3_b_ref,
    out_ref, *, nhead,
):
    cdt = _COMPUTE_DTYPE
    bb, T, D = tgt_ref.shape
    H = nhead
    hd = D // H
    Z = bb * H                 # fused (batch, head) einsum batch dimension

    def project(x3, w_ref, b_ref):
        """(bb, L, D) tokens -> (Z, L, k) per-(batch, head) projections."""
        L = x3.shape[1]
        k = w_ref.shape[2]
        x_z = jnp.broadcast_to(x3.astype(cdt)[:, None], (bb, H, L, D)).reshape(Z, L, D)
        w_z = jnp.broadcast_to(w_ref[...][None], (bb, H, D, k)).reshape(Z, D, k)
        b_z = jnp.broadcast_to(b_ref[...][None], (bb, H, 1, k)).reshape(Z, 1, k)
        y = jnp.einsum("ztd,zdk->ztk", x_z, w_z,
                       preferred_element_type=jnp.float32)
        return y + b_z

    def attn_core(q3, k3, v3, wo_ref, bo_ref, tq):
        """Attention batched over Z = batch*head, plus output projection."""
        s = jnp.einsum("zqd,zkd->zqk", q3.astype(cdt), k3.astype(cdt),
                       preferred_element_type=jnp.float32)        # (Z, Tq, Tk)
        s = s - jnp.max(s, axis=-1, keepdims=True)
        p = jnp.exp(s)
        p = p * pl.reciprocal(jnp.sum(p, axis=-1, keepdims=True), approx=True)
        ctx = jnp.einsum("zqk,zkd->zqd", p.astype(cdt), v3.astype(cdt),
                         preferred_element_type=jnp.float32)      # (Z, Tq, hd)
        wo_z = jnp.broadcast_to(wo_ref[...][None], (bb, H, hd, D)).reshape(Z, hd, D)
        part = jnp.einsum("zqd,zde->zqe", ctx.astype(cdt), wo_z,
                          preferred_element_type=jnp.float32)     # (Z, Tq, D)
        out = jnp.sum(part.reshape(bb, H, tq, D), axis=1)         # (bb, Tq, D)
        return out.reshape(bb * tq, D) + bo_ref[...]

    def layer_norm(x, g_ref, b_ref, eps=1e-5):
        mu = jnp.mean(x, axis=-1, keepdims=True)
        var = jnp.mean(jnp.square(x - mu), axis=-1, keepdims=True)
        return (x - mu) * lax.rsqrt(var + eps) * g_ref[...] + b_ref[...]

    tgt = tgt_ref[...]          # (bb, T, D)
    qpos = qpos_ref[...]        # (bb, T, D)
    mem = mem_ref[...]          # (bb, S, D)
    pos = pos_ref[...]          # (bb, S, D)

    # ---- self attention: q = k = tgt + query_pos, value = tgt ----
    qk = project(tgt + qpos, sa_wqk_ref, sa_bqk_ref)    # fused Q|K: (Z, T, 2*hd)
    q3 = qk[:, :, :hd]                                  # 1/sqrt(hd) pre-folded
    k3 = qk[:, :, hd:]
    v3 = project(tgt, sa_wv_ref, sa_bv_ref)
    sa_out = attn_core(q3, k3, v3, sa_wo_ref, sa_bo_ref, T)

    x = tgt.reshape(bb * T, D) + sa_out                 # dropout1 = identity
    x = layer_norm(x, n1_g_ref, n1_b_ref)

    # ---- cross attention: q = x + query_pos, k = mem + pos, v = mem ----
    q3 = project(x.reshape(bb, T, D) + qpos, ca_wq_ref, ca_bq_ref)
    k3 = project(mem + pos, ca_wk_ref, ca_bk_ref)
    v3 = project(mem, ca_wv_ref, ca_bv_ref)
    ca_out = attn_core(q3, k3, v3, ca_wo_ref, ca_bo_ref, T)

    x = layer_norm(x + ca_out, n2_g_ref, n2_b_ref)      # dropout2 = identity

    # ---- feed-forward (linear1 -> relu -> linear2), weights pre-transposed ----
    h = jnp.dot(x.astype(cdt), l1_w_ref[...],
                preferred_element_type=jnp.float32) + l1_b_ref[...]
    h = jnp.maximum(h, 0.0)                             # relu; dropout = identity
    f = jnp.dot(h.astype(cdt), l2_w_ref[...],
                preferred_element_type=jnp.float32) + l2_b_ref[...]
    x = layer_norm(x + f, n3_g_ref, n3_b_ref)           # dropout3 = identity

    out_ref[0] = x                                      # (bb*T, D)


# --------------------------------- wrapper -----------------------------------
def transformer_decoder_layer(tgt, memory, kparams, pos, query_pos, *,
                              nhead, batch_blocks=1):
    """tgt/query_pos: (T, B, D); memory/pos: (S, B, D).  Returns (T, B, D).

    batch_blocks=1 folds the whole batch into one grid step (best on the
    single-TensorCore v5e/v6e).  On v7x pass batch_blocks=2 so the "parallel"
    grid axis shards the batch across the two TensorCores.
    """
    T, B, D = tgt.shape
    S = memory.shape[0]
    assert B % batch_blocks == 0
    bb = B // batch_blocks

    # (seq, batch, D) -> (batch, seq, D) for a batch-major kernel layout.
    # TODO(synk): at production scale keep activations batch-major upstream to
    # avoid this whole-tensor layout transpose (a pure-HBM-traffic round trip).
    tgt_b = jnp.transpose(tgt, (1, 0, 2))
    mem_b = jnp.transpose(memory, (1, 0, 2))
    qpos_b = jnp.transpose(query_pos, (1, 0, 2))
    pos_b = jnp.transpose(pos, (1, 0, 2))

    weights = [kparams[k] for k in _PARAM_ORDER]

    def full_spec(a):
        nd = a.ndim
        return pl.BlockSpec(a.shape, lambda g, _nd=nd: (0,) * _nd)

    in_specs = [
        pl.BlockSpec((bb, T, D), lambda g: (g, 0, 0)),
        pl.BlockSpec((bb, S, D), lambda g: (g, 0, 0)),
        pl.BlockSpec((bb, T, D), lambda g: (g, 0, 0)),
        pl.BlockSpec((bb, S, D), lambda g: (g, 0, 0)),
    ] + [full_spec(w) for w in weights]

    out = pl.pallas_call(
        functools.partial(_decoder_layer_kernel, nhead=nhead),
        out_shape=jax.ShapeDtypeStruct((batch_blocks, bb * T, D), jnp.float32),
        grid_spec=pltpu.PrefetchScalarGridSpec(
            num_scalar_prefetch=0,
            grid=(batch_blocks,),
            in_specs=in_specs,
            out_specs=pl.BlockSpec((1, bb * T, D), lambda g: (g, 0, 0)),
        ),
        compiler_params=pltpu.CompilerParams(
            dimension_semantics=("parallel",)),
    )(tgt_b, mem_b, qpos_b, pos_b, *weights)

    # (batch_blocks, bb*T, D) -> (B, T, D) -> (T, B, D)
    return jnp.transpose(out.reshape(B, T, D), (1, 0, 2))


# ------------------------- pure-JAX f32 reference ----------------------------
def _ref_mha(q_in, k_in, v_in, in_w, in_b, out_w, out_b, nhead):
    D = q_in.shape[-1]
    hd = D // nhead
    q = q_in @ in_w[0:D].T + in_b[0, 0:D]
    k = k_in @ in_w[D:2 * D].T + in_b[0, D:2 * D]
    v = v_in @ in_w[2 * D:3 * D].T + in_b[0, 2 * D:3 * D]
    outs = []
    for h in range(nhead):
        sl = slice(h * hd, (h + 1) * hd)
        s = (q[:, sl] / math.sqrt(hd)) @ k[:, sl].T
        p = jax.nn.softmax(s, axis=-1)
        outs.append(p @ v[:, sl])
    ctx = jnp.concatenate(outs, axis=-1)
    return ctx @ out_w.T + out_b[0]


def _ref_forward(tgt, memory, params, pos, query_pos, nhead):
    def ln(x, g, b):
        mu = x.mean(-1, keepdims=True)
        var = ((x - mu) ** 2).mean(-1, keepdims=True)
        return (x - mu) / jnp.sqrt(var + 1e-5) * g[0] + b[0]

    outs = []
    B = tgt.shape[1]
    for b in range(B):
        t, m = tgt[:, b], memory[:, b]
        qp, p = query_pos[:, b], pos[:, b]
        qk = t + qp
        t2 = _ref_mha(qk, qk, t, params["sa_in_w"], params["sa_in_b"],
                      params["sa_out_w"], params["sa_out_b"], nhead)
        x = ln(t + t2, params["n1_g"], params["n1_b"])
        t2 = _ref_mha(x + qp, m + p, m, params["ca_in_w"], params["ca_in_b"],
                      params["ca_out_w"], params["ca_out_b"], nhead)
        x = ln(x + t2, params["n2_g"], params["n2_b"])
        h = jnp.maximum(x @ params["l1_w"].T + params["l1_b"][0], 0.0)
        t2 = h @ params["l2_w"].T + params["l2_b"][0]
        x = ln(x + t2, params["n3_g"], params["n3_b"])
        outs.append(x)
    return jnp.stack(outs, axis=1)


# ----------------------------------- main ------------------------------------
if __name__ == "__main__":
    d_model = 32
    nhead = 4
    dim_feedforward = 64
    T = 8     # target sequence length
    S = 8     # memory sequence length
    B = 2     # batch

    key = jax.random.PRNGKey(0)
    ks = jax.random.split(key, 16)
    f32 = jnp.float32

    def rnd(k, shape, scale=0.1):
        return jax.random.normal(k, shape, dtype=f32) * scale

    raw = {
        "sa_in_w": rnd(ks[0], (3 * d_model, d_model)),
        "sa_in_b": rnd(ks[1], (1, 3 * d_model)),
        "sa_out_w": rnd(ks[2], (d_model, d_model)),
        "sa_out_b": rnd(ks[3], (1, d_model)),
        "ca_in_w": rnd(ks[4], (3 * d_model, d_model)),
        "ca_in_b": rnd(ks[5], (1, 3 * d_model)),
        "ca_out_w": rnd(ks[6], (d_model, d_model)),
        "ca_out_b": rnd(ks[7], (1, d_model)),
        "l1_w": rnd(ks[8], (dim_feedforward, d_model)),
        "l1_b": rnd(ks[9], (1, dim_feedforward)),
        "l2_w": rnd(ks[10], (d_model, dim_feedforward)),
        "l2_b": rnd(ks[11], (1, d_model)),
        "n1_g": jnp.ones((1, d_model), f32),
        "n1_b": jnp.zeros((1, d_model), f32),
        "n2_g": jnp.ones((1, d_model), f32),
        "n2_b": jnp.zeros((1, d_model), f32),
        "n3_g": jnp.ones((1, d_model), f32),
        "n3_b": jnp.zeros((1, d_model), f32),
    }

    tgt = rnd(ks[12], (T, B, d_model), 1.0)
    memory = rnd(ks[13], (S, B, d_model), 1.0)
    query_pos = rnd(ks[14], (T, B, d_model), 1.0)
    pos = rnd(ks[15], (S, B, d_model), 1.0)

    kparams = prepare_params(raw, d_model, nhead)

    out = transformer_decoder_layer(tgt, memory, kparams, pos, query_pos,
                                    nhead=nhead, batch_blocks=1)
    out = jax.block_until_ready(out)

    ref = _ref_forward(tgt, memory, raw, pos, query_pos, nhead)
    assert out.shape == (T, B, d_model)
    err = jnp.max(jnp.abs(out - ref))
    # bf16 matmul operands (f32 accumulation) + approx reciprocal softmax ->
    # relaxed tolerance vs the pure-f32 reference.
    assert jnp.allclose(out, ref, atol=5e-2, rtol=5e-2), f"max abs err = {err}"

    print("KERNEL_OK")
</pallas_src>

<mosaic_0001>
module attributes {stable_mosaic.version = 11 : i64} {
  func.func @_decoder_layer_kernel(%arg0: i32, %arg1: memref<2x8x32xf32, #tpu.memory_space<vmem>>, %arg2: memref<2x8x32xf32, #tpu.memory_space<vmem>>, %arg3: memref<2x8x32xf32, #tpu.memory_space<vmem>>, %arg4: memref<2x8x32xf32, #tpu.memory_space<vmem>>, %arg5: memref<4x32x16xbf16, #tpu.memory_space<vmem>>, %arg6: memref<4x1x16xf32, #tpu.memory_space<vmem>>, %arg7: memref<4x32x8xbf16, #tpu.memory_space<vmem>>, %arg8: memref<4x1x8xf32, #tpu.memory_space<vmem>>, %arg9: memref<4x8x32xbf16, #tpu.memory_space<vmem>>, %arg10: memref<1x32xf32, #tpu.memory_space<vmem>>, %arg11: memref<4x32x8xbf16, #tpu.memory_space<vmem>>, %arg12: memref<4x1x8xf32, #tpu.memory_space<vmem>>, %arg13: memref<4x32x8xbf16, #tpu.memory_space<vmem>>, %arg14: memref<4x1x8xf32, #tpu.memory_space<vmem>>, %arg15: memref<4x32x8xbf16, #tpu.memory_space<vmem>>, %arg16: memref<4x1x8xf32, #tpu.memory_space<vmem>>, %arg17: memref<4x8x32xbf16, #tpu.memory_space<vmem>>, %arg18: memref<1x32xf32, #tpu.memory_space<vmem>>, %arg19: memref<32x64xbf16, #tpu.memory_space<vmem>>, %arg20: memref<1x64xf32, #tpu.memory_space<vmem>>, %arg21: memref<64x32xbf16, #tpu.memory_space<vmem>>, %arg22: memref<1x32xf32, #tpu.memory_space<vmem>>, %arg23: memref<1x32xf32, #tpu.memory_space<vmem>>, %arg24: memref<1x32xf32, #tpu.memory_space<vmem>>, %arg25: memref<1x32xf32, #tpu.memory_space<vmem>>, %arg26: memref<1x32xf32, #tpu.memory_space<vmem>>, %arg27: memref<1x32xf32, #tpu.memory_space<vmem>>, %arg28: memref<1x32xf32, #tpu.memory_space<vmem>>, %arg29: memref<1x16x32xf32, #tpu.memory_space<vmem>>) attributes {dimension_semantics = [#tpu.dimension_semantics<parallel>], iteration_bounds = array<i64: 1>, scalar_prefetch = 0 : i64, scratch_operands = 0 : i64, tpu.core_type = #tpu.core_type<tc>, window_params = [{transform_indices = @transform_0, window_bounds = array<i64: 2, 8, 32>}, {transform_indices = @transform_1, window_bounds = array<i64: 2, 8, 32>}, {transform_indices = @transform_2, window_bounds = array<i64: 2, 8, 32>}, {transform_indices = @transform_3, window_bounds = array<i64: 2, 8, 32>}, {pipeline_mode = #tpu.pipeline_mode<synchronous>, transform_indices = @transform_4, window_bounds = array<i64: 4, 32, 16>}, {pipeline_mode = #tpu.pipeline_mode<synchronous>, transform_indices = @transform_5, window_bounds = array<i64: 4, 1, 16>}, {pipeline_mode = #tpu.pipeline_mode<synchronous>, transform_indices = @transform_6, window_bounds = array<i64: 4, 32, 8>}, {pipeline_mode = #tpu.pipeline_mode<synchronous>, transform_indices = @transform_7, window_bounds = array<i64: 4, 1, 8>}, {pipeline_mode = #tpu.pipeline_mode<synchronous>, transform_indices = @transform_8, window_bounds = array<i64: 4, 8, 32>}, {pipeline_mode = #tpu.pipeline_mode<synchronous>, transform_indices = @transform_9, window_bounds = array<i64: 1, 32>}, {pipeline_mode = #tpu.pipeline_mode<synchronous>, transform_indices = @transform_10, window_bounds = array<i64: 4, 32, 8>}, {pipeline_mode = #tpu.pipeline_mode<synchronous>, transform_indices = @transform_11, window_bounds = array<i64: 4, 1, 8>}, {pipeline_mode = #tpu.pipeline_mode<synchronous>, transform_indices = @transform_12, window_bounds = array<i64: 4, 32, 8>}, {pipeline_mode = #tpu.pipeline_mode<synchronous>, transform_indices = @transform_13, window_bounds = array<i64: 4, 1, 8>}, {pipeline_mode = #tpu.pipeline_mode<synchronous>, transform_indices = @transform_14, window_bounds = array<i64: 4, 32, 8>}, {pipeline_mode = #tpu.pipeline_mode<synchronous>, transform_indices = @transform_15, window_bounds = array<i64: 4, 1, 8>}, {pipeline_mode = #tpu.pipeline_mode<synchronous>, transform_indices = @transform_16, window_bounds = array<i64: 4, 8, 32>}, {pipeline_mode = #tpu.pipeline_mode<synchronous>, transform_indices = @transform_17, window_bounds = array<i64: 1, 32>}, {pipeline_mode = #tpu.pipeline_mode<synchronous>, transform_indices = @transform_18, window_bounds = array<i64: 32, 64>}, {pipeline_mode = #tpu.pipeline_mode<synchronous>, transform_indices = @transform_19, window_bounds = array<i64: 1, 64>}, {pipeline_mode = #tpu.pipeline_mode<synchronous>, transform_indices = @transform_20, window_bounds = array<i64: 64, 32>}, {pipeline_mode = #tpu.pipeline_mode<synchronous>, transform_indices = @transform_21, window_bounds = array<i64: 1, 32>}, {pipeline_mode = #tpu.pipeline_mode<synchronous>, transform_indices = @transform_22, window_bounds = array<i64: 1, 32>}, {pipeline_mode = #tpu.pipeline_mode<synchronous>, transform_indices = @transform_23, window_bounds = array<i64: 1, 32>}, {pipeline_mode = #tpu.pipeline_mode<synchronous>, transform_indices = @transform_24, window_bounds = array<i64: 1, 32>}, {pipeline_mode = #tpu.pipeline_mode<synchronous>, transform_indices = @transform_25, window_bounds = array<i64: 1, 32>}, {pipeline_mode = #tpu.pipeline_mode<synchronous>, transform_indices = @transform_26, window_bounds = array<i64: 1, 32>}, {pipeline_mode = #tpu.pipeline_mode<synchronous>, transform_indices = @transform_27, window_bounds = array<i64: 1, 32>}, {transform_indices = @transform_28, window_bounds = array<i64: 1, 16, 32>}]} {
    %c0 = arith.constant 0 : index
    %c0_0 = arith.constant 0 : index
    %c0_1 = arith.constant 0 : index
    %0 = vector.load %arg1[%c0, %c0_0, %c0_1] : memref<2x8x32xf32, #tpu.memory_space<vmem>>, vector<2x8x32xf32>
    %c0_2 = arith.constant 0 : index
    %c0_3 = arith.constant 0 : index
    %c0_4 = arith.constant 0 : index
    %1 = vector.load %arg3[%c0_2, %c0_3, %c0_4] : memref<2x8x32xf32, #tpu.memory_space<vmem>>, vector<2x8x32xf32>
    %c0_5 = arith.constant 0 : index
    %c0_6 = arith.constant 0 : index
    %c0_7 = arith.constant 0 : index
    %2 = vector.load %arg2[%c0_5, %c0_6, %c0_7] : memref<2x8x32xf32, #tpu.memory_space<vmem>>, vector<2x8x32xf32>
    %c0_8 = arith.constant 0 : index
    %c0_9 = arith.constant 0 : index
    %c0_10 = arith.constant 0 : index
    %3 = vector.load %arg4[%c0_8, %c0_9, %c0_10] : memref<2x8x32xf32, #tpu.memory_space<vmem>>, vector<2x8x32xf32>
    %4 = arith.addf %0, %1 : vector<2x8x32xf32>
    %5 = arith.truncf %4 : vector<2x8x32xf32> to vector<2x8x32xbf16>
    %6 = vector.shape_cast %5 : vector<2x8x32xbf16> to vector<2x1x8x32xbf16>
    %7 = vector.shape_cast %6 : vector<2x1x8x32xbf16> to vector<2x1x8x32xbf16>
    %8 = vector.broadcast %7 : vector<2x1x8x32xbf16> to vector<2x4x8x32xbf16>
    %9 = vector.shape_cast %8 : vector<2x4x8x32xbf16> to vector<8x8x32xbf16>
    %c0_11 = arith.constant 0 : index
    %c0_12 = arith.constant 0 : index
    %c0_13 = arith.constant 0 : index
    %10 = vector.load %arg5[%c0_11, %c0_12, %c0_13] : memref<4x32x16xbf16, #tpu.memory_space<vmem>>, vector<4x32x16xbf16>
    %11 = vector.shape_cast %10 : vector<4x32x16xbf16> to vector<1x4x32x16xbf16>
    %12 = vector.shape_cast %11 : vector<1x4x32x16xbf16> to vector<1x4x32x16xbf16>
    %13 = vector.broadcast %12 : vector<1x4x32x16xbf16> to vector<2x4x32x16xbf16>
    %14 = vector.shape_cast %13 : vector<2x4x32x16xbf16> to vector<8x32x16xbf16>
    %c0_14 = arith.constant 0 : index
    %c0_15 = arith.constant 0 : index
    %c0_16 = arith.constant 0 : index
    %15 = vector.load %arg6[%c0_14, %c0_15, %c0_16] : memref<4x1x16xf32, #tpu.memory_space<vmem>>, vector<4x1x16xf32>
    %16 = vector.shape_cast %15 : vector<4x1x16xf32> to vector<1x4x1x16xf32>
    %17 = vector.shape_cast %16 : vector<1x4x1x16xf32> to vector<1x4x1x16xf32>
    %18 = vector.broadcast %17 : vector<1x4x1x16xf32> to vector<2x4x1x16xf32>
    %19 = vector.shape_cast %18 : vector<2x4x1x16xf32> to vector<8x1x16xf32>
    "tpu.trace_start"() <{level = 10 : i32, message = "ztd,zdk->ztk"}> : () -> ()
    %cst = arith.constant dense<0.000000e+00> : vector<8x8x16xf32>
    %20 = tpu.matmul %9, %14, %cst {dimension_numbers = #tpu.dot_dimension_numbers<[2], [1], [1], [2], [0, 0, 0, 1, 1, 2], [0], [0]>} : vector<8x8x32xbf16>, vector<8x32x16xbf16>, vector<8x8x16xf32> -> vector<8x8x16xf32>
    "tpu.trace_stop"() : () -> ()
    %21 = vector.broadcast %19 : vector<8x1x16xf32> to vector<8x8x16xf32>
    %22 = arith.addf %20, %21 : vector<8x8x16xf32>
    %23 = vector.extract_strided_slice %22 {offsets = [0, 0, 0], sizes = [8, 8, 8], strides = [1, 1, 1]} : vector<8x8x16xf32> to vector<8x8x8xf32>
    %24 = vector.extract_strided_slice %22 {offsets = [0, 0, 8], sizes = [8, 8, 8], strides = [1, 1, 1]} : vector<8x8x16xf32> to vector<8x8x8xf32>
    %25 = arith.truncf %0 : vector<2x8x32xf32> to vector<2x8x32xbf16>
    %26 = vector.shape_cast %25 : vector<2x8x32xbf16> to vector<2x1x8x32xbf16>
    %27 = vector.shape_cast %26 : vector<2x1x8x32xbf16> to vector<2x1x8x32xbf16>
    %28 = vector.broadcast %27 : vector<2x1x8x32xbf16> to vector<2x4x8x32xbf16>
    %29 = vector.shape_cast %28 : vector<2x4x8x32xbf16> to vector<8x8x32xbf16>
    %c0_17 = arith.constant 0 : index
    %c0_18 = arith.constant 0 : index
    %c0_19 = arith.constant 0 : index
    %30 = vector.load %arg7[%c0_17, %c0_18, %c0_19] : memref<4x32x8xbf16, #tpu.memory_space<vmem>>, vector<4x32x8xbf16>
    %31 = vector.shape_cast %30 : vector<4x32x8xbf16> to vector<1x4x32x8xbf16>
    %32 = vector.shape_cast %31 : vector<1x4x32x8xbf16> to vector<1x4x32x8xbf16>
    %33 = vector.broadcast %32 : vector<1x4x32x8xbf16> to vector<2x4x32x8xbf16>
    %34 = vector.shape_cast %33 : vector<2x4x32x8xbf16> to vector<8x32x8xbf16>
    %c0_20 = arith.constant 0 : index
    %c0_21 = arith.constant 0 : index
    %c0_22 = arith.constant 0 : index
    %35 = vector.load %arg8[%c0_20, %c0_21, %c0_22] : memref<4x1x8xf32, #tpu.memory_space<vmem>>, vector<4x1x8xf32>
    %36 = vector.shape_cast %35 : vector<4x1x8xf32> to vector<1x4x1x8xf32>
    %37 = vector.shape_cast %36 : vector<1x4x1x8xf32> to vector<1x4x1x8xf32>
    %38 = vector.broadcast %37 : vector<1x4x1x8xf32> to vector<2x4x1x8xf32>
    %39 = vector.shape_cast %38 : vector<2x4x1x8xf32> to vector<8x1x8xf32>
    "tpu.trace_start"() <{level = 10 : i32, message = "ztd,zdk->ztk"}> : () -> ()
    %cst_23 = arith.constant dense<0.000000e+00> : vector<8x8x8xf32>
    %40 = tpu.matmul %29, %34, %cst_23 {dimension_numbers = #tpu.dot_dimension_numbers<[2], [1], [1], [2], [0, 0, 0, 1, 1, 2], [0], [0]>} : vector<8x8x32xbf16>, vector<8x32x8xbf16>, vector<8x8x8xf32> -> vector<8x8x8xf32>
    "tpu.trace_stop"() : () -> ()
    %41 = vector.broadcast %39 : vector<8x1x8xf32> to vector<8x8x8xf32>
    %42 = arith.addf %40, %41 : vector<8x8x8xf32>
    %43 = arith.truncf %23 : vector<8x8x8xf32> to vector<8x8x8xbf16>
    %44 = arith.truncf %24 : vector<8x8x8xf32> to vector<8x8x8xbf16>
    "tpu.trace_start"() <{level = 10 : i32, message = "zqd,zkd->zqk"}> : () -> ()
    %cst_24 = arith.constant dense<0.000000e+00> : vector<8x8x8xf32>
    %45 = tpu.matmul %43, %44, %cst_24 {dimension_numbers = #tpu.dot_dimension_numbers<[2], [2], [1], [1], [0, 0, 0, 1, 1, 1], [0], [0]>} : vector<8x8x8xbf16>, vector<8x8x8xbf16>, vector<8x8x8xf32> -> vector<8x8x8xf32>
    "tpu.trace_stop"() : () -> ()
    %cst_25 = arith.constant dense<0xFF800000> : vector<8x8xf32>
    %46 = vector.multi_reduction <maximumf>, %45, %cst_25 [2] : vector<8x8x8xf32> to vector<8x8xf32>
    %47 = vector.shape_cast %46 : vector<8x8xf32> to vector<8x8x1xf32>
    %48 = vector.broadcast %47 : vector<8x8x1xf32> to vector<8x8x8xf32>
    %49 = arith.subf %45, %48 : vector<8x8x8xf32>
    %50 = math.exp %49 : vector<8x8x8xf32>
    %cst_26 = arith.constant dense<0.000000e+00> : vector<8x8xf32>
    %51 = vector.multi_reduction <add>, %50, %cst_26 [2] : vector<8x8x8xf32> to vector<8x8xf32>
    %52 = vector.shape_cast %51 : vector<8x8xf32> to vector<8x8x1xf32>
    %53 = tpu.reciprocal %52 {approx = true} : vector<8x8x1xf32> -> vector<8x8x1xf32>
    %54 = vector.broadcast %53 : vector<8x8x1xf32> to vector<8x8x8xf32>
    %55 = arith.mulf %50, %54 : vector<8x8x8xf32>
    %56 = arith.truncf %55 : vector<8x8x8xf32> to vector<8x8x8xbf16>
    %57 = arith.truncf %42 : vector<8x8x8xf32> to vector<8x8x8xbf16>
    "tpu.trace_start"() <{level = 10 : i32, message = "zqk,zkd->zqd"}> : () -> ()
    %cst_27 = arith.constant dense<0.000000e+00> : vector<8x8x8xf32>
    %58 = tpu.matmul %56, %57, %cst_27 {dimension_numbers = #tpu.dot_dimension_numbers<[2], [1], [1], [2], [0, 0, 0, 1, 1, 2], [0], [0]>} : vector<8x8x8xbf16>, vector<8x8x8xbf16>, vector<8x8x8xf32> -> vector<8x8x8xf32>
    "tpu.trace_stop"() : () -> ()
    %c0_28 = arith.constant 0 : index
    %c0_29 = arith.constant 0 : index
    %c0_30 = arith.constant 0 : index
    %59 = vector.load %arg9[%c0_28, %c0_29, %c0_30] : memref<4x8x32xbf16, #tpu.memory_space<vmem>>, vector<4x8x32xbf16>
    %60 = vector.shape_cast %59 : vector<4x8x32xbf16> to vector<1x4x8x32xbf16>
    %61 = vector.shape_cast %60 : vector<1x4x8x32xbf16> to vector<1x4x8x32xbf16>
    %62 = vector.broadcast %61 : vector<1x4x8x32xbf16> to vector<2x4x8x32xbf16>
    %63 = vector.shape_cast %62 : vector<2x4x8x32xbf16> to vector<8x8x32xbf16>
    %64 = arith.truncf %58 : vector<8x8x8xf32> to vector<8x8x8xbf16>
    "tpu.trace_start"() <{level = 10 : i32, message = "zqd,zde->zqe"}> : () -> ()
    %cst_31 = arith.constant dense<0.000000e+00> : vector<8x8x32xf32>
    %65 = tpu.matmul %64, %63, %cst_31 {dimension_numbers = #tpu.dot_dimension_numbers<[2], [1], [1], [2], [0, 0, 0, 1, 1, 2], [0], [0]>} : vector<8x8x8xbf16>, vector<8x8x32xbf16>, vector<8x8x32xf32> -> vector<8x8x32xf32>
    "tpu.trace_stop"() : () -> ()
    %66 = vector.shape_cast %65 : vector<8x8x32xf32> to vector<2x4x8x32xf32>
    %cst_32 = arith.constant dense<0.000000e+00> : vector<2x8x32xf32>
    %67 = vector.multi_reduction <add>, %66, %cst_32 [1] : vector<2x4x8x32xf32> to vector<2x8x32xf32>
    %68 = vector.shape_cast %67 : vector<2x8x32xf32> to vector<16x32xf32>
    %c0_33 = arith.constant 0 : index
    %c0_34 = arith.constant 0 : index
    %69 = vector.load %arg10[%c0_33, %c0_34] : memref<1x32xf32, #tpu.memory_space<vmem>>, vector<1x32xf32>
    %70 = vector.broadcast %69 : vector<1x32xf32> to vector<16x32xf32>
    %71 = arith.addf %68, %70 : vector<16x32xf32>
    %72 = vector.shape_cast %0 : vector<2x8x32xf32> to vector<16x32xf32>
    %73 = arith.addf %72, %71 : vector<16x32xf32>
    %cst_35 = arith.constant dense<0.000000e+00> : vector<16xf32>
    %74 = vector.multi_reduction <add>, %73, %cst_35 [1] : vector<16x32xf32> to vector<16xf32>
    %75 = vector.shape_cast %74 : vector<16xf32> to vector<16x1xf32>
    %cst_36 = arith.constant 3.200000e+01 : f32
    %76 = vector.broadcast %cst_36 : f32 to vector<16x1xf32>
    %77 = arith.divf %75, %76 : vector<16x1xf32>
    %78 = vector.broadcast %77 : vector<16x1xf32> to vector<16x32xf32>
    %79 = arith.subf %73, %78 : vector<16x32xf32>
    %80 = arith.mulf %79, %79 : vector<16x32xf32>
    %cst_37 = arith.constant dense<0.000000e+00> : vector<16xf32>
    %81 = vector.multi_reduction <add>, %80, %cst_37 [1] : vector<16x32xf32> to vector<16xf32>
    %82 = vector.shape_cast %81 : vector<16xf32> to vector<16x1xf32>
    %cst_38 = arith.constant 3.200000e+01 : f32
    %83 = vector.broadcast %cst_38 : f32 to vector<16x1xf32>
    %84 = arith.divf %82, %83 : vector<16x1xf32>
    %85 = vector.broadcast %77 : vector<16x1xf32> to vector<16x32xf32>
    %86 = arith.subf %73, %85 : vector<16x32xf32>
    %cst_39 = arith.constant 9.99999974E-6 : f32
    %87 = vector.broadcast %cst_39 : f32 to vector<16x1xf32>
    %88 = arith.addf %84, %87 : vector<16x1xf32>
    %89 = math.rsqrt %88 : vector<16x1xf32>
    %90 = vector.broadcast %89 : vector<16x1xf32> to vector<16x32xf32>
    %91 = arith.mulf %86, %90 : vector<16x32xf32>
    %c0_40 = arith.constant 0 : index
    %c0_41 = arith.constant 0 : index
    %92 = vector.load %arg23[%c0_40, %c0_41] : memref<1x32xf32, #tpu.memory_space<vmem>>, vector<1x32xf32>
    %93 = vector.broadcast %92 : vector<1x32xf32> to vector<16x32xf32>
    %94 = arith.mulf %91, %93 : vector<16x32xf32>
    %c0_42 = arith.constant 0 : index
    %c0_43 = arith.constant 0 : index
    %95 = vector.load %arg24[%c0_42, %c0_43] : memref<1x32xf32, #tpu.memory_space<vmem>>, vector<1x32xf32>
    %96 = vector.broadcast %95 : vector<1x32xf32> to vector<16x32xf32>
    %97 = arith.addf %94, %96 : vector<16x32xf32>
    %98 = vector.shape_cast %97 : vector<16x32xf32> to vector<2x8x32xf32>
    %99 = arith.addf %98, %1 : vector<2x8x32xf32>
    %100 = arith.truncf %99 : vector<2x8x32xf32> to vector<2x8x32xbf16>
    %101 = vector.shape_cast %100 : vector<2x8x32xbf16> to vector<2x1x8x32xbf16>
    %102 = vector.shape_cast %101 : vector<2x1x8x32xbf16> to vector<2x1x8x32xbf16>
    %103 = vector.broadcast %102 : vector<2x1x8x32xbf16> to vector<2x4x8x32xbf16>
    %104 = vector.shape_cast %103 : vector<2x4x8x32xbf16> to vector<8x8x32xbf16>
    %c0_44 = arith.constant 0 : index
    %c0_45 = arith.constant 0 : index
    %c0_46 = arith.constant 0 : index
    %105 = vector.load %arg11[%c0_44, %c0_45, %c0_46] : memref<4x32x8xbf16, #tpu.memory_space<vmem>>, vector<4x32x8xbf16>
    %106 = vector.shape_cast %105 : vector<4x32x8xbf16> to vector<1x4x32x8xbf16>
    %107 = vector.shape_cast %106 : vector<1x4x32x8xbf16> to vector<1x4x32x8xbf16>
    %108 = vector.broadcast %107 : vector<1x4x32x8xbf16> to vector<2x4x32x8xbf16>
    %109 = vector.shape_cast %108 : vector<2x4x32x8xbf16> to vector<8x32x8xbf16>
    %c0_47 = arith.constant 0 : index
    %c0_48 = arith.constant 0 : index
    %c0_49 = arith.constant 0 : index
    %110 = vector.load %arg12[%c0_47, %c0_48, %c0_49] : memref<4x1x8xf32, #tpu.memory_space<vmem>>, vector<4x1x8xf32>
    %111 = vector.shape_cast %110 : vector<4x1x8xf32> to vector<1x4x1x8xf32>
    %112 = vector.shape_cast %111 : vector<1x4x1x8xf32> to vector<1x4x1x8xf32>
    %113 = vector.broadcast %112 : vector<1x4x1x8xf32> to vector<2x4x1x8xf32>
    %114 = vector.shape_cast %113 : vector<2x4x1x8xf32> to vector<8x1x8xf32>
    "tpu.trace_start"() <{level = 10 : i32, message = "ztd,zdk->ztk"}> : () -> ()
    %cst_50 = arith.constant dense<0.000000e+00> : vector<8x8x8xf32>
    %115 = tpu.matmul %104, %109, %cst_50 {dimension_numbers = #tpu.dot_dimension_numbers<[2], [1], [1], [2], [0, 0, 0, 1, 1, 2], [0], [0]>} : vector<8x8x32xbf16>, vector<8x32x8xbf16>, vector<8x8x8xf32> -> vector<8x8x8xf32>
    "tpu.trace_stop"() : () -> ()
    %116 = vector.broadcast %114 : vector<8x1x8xf32> to vector<8x8x8xf32>
    %117 = arith.addf %115, %116 : vector<8x8x8xf32>
    %118 = arith.addf %2, %3 : vector<2x8x32xf32>
    %119 = arith.truncf %118 : vector<2x8x32xf32> to vector<2x8x32xbf16>
    %120 = vector.shape_cast %119 : vector<2x8x32xbf16> to vector<2x1x8x32xbf16>
    %121 = vector.shape_cast %120 : vector<2x1x8x32xbf16> to vector<2x1x8x32xbf16>
    %122 = vector.broadcast %121 : vector<2x1x8x32xbf16> to vector<2x4x8x32xbf16>
    %123 = vector.shape_cast %122 : vector<2x4x8x32xbf16> to vector<8x8x32xbf16>
    %c0_51 = arith.constant 0 : index
    %c0_52 = arith.constant 0 : index
    %c0_53 = arith.constant 0 : index
    %124 = vector.load %arg13[%c0_51, %c0_52, %c0_53] : memref<4x32x8xbf16, #tpu.memory_space<vmem>>, vector<4x32x8xbf16>
    %125 = vector.shape_cast %124 : vector<4x32x8xbf16> to vector<1x4x32x8xbf16>
    %126 = vector.shape_cast %125 : vector<1x4x32x8xbf16> to vector<1x4x32x8xbf16>
    %127 = vector.broadcast %126 : vector<1x4x32x8xbf16> to vector<2x4x32x8xbf16>
    %128 = vector.shape_cast %127 : vector<2x4x32x8xbf16> to vector<8x32x8xbf16>
    %c0_54 = arith.constant 0 : index
    %c0_55 = arith.constant 0 : index
    %c0_56 = arith.constant 0 : index
    %129 = vector.load %arg14[%c0_54, %c0_55, %c0_56] : memref<4x1x8xf32, #tpu.memory_space<vmem>>, vector<4x1x8xf32>
    %130 = vector.shape_cast %129 : vector<4x1x8xf32> to vector<1x4x1x8xf32>
    %131 = vector.shape_cast %130 : vector<1x4x1x8xf32> to vector<1x4x1x8xf32>
    %132 = vector.broadcast %131 : vector<1x4x1x8xf32> to vector<2x4x1x8xf32>
    %133 = vector.shape_cast %132 : vector<2x4x1x8xf32> to vector<8x1x8xf32>
    "tpu.trace_start"() <{level = 10 : i32, message = "ztd,zdk->ztk"}> : () -> ()
    %cst_57 = arith.constant dense<0.000000e+00> : vector<8x8x8xf32>
    %134 = tpu.matmul %123, %128, %cst_57 {dimension_numbers = #tpu.dot_dimension_numbers<[2], [1], [1], [2], [0, 0, 0, 1, 1, 2], [0], [0]>} : vector<8x8x32xbf16>, vector<8x32x8xbf16>, vector<8x8x8xf32> -> vector<8x8x8xf32>
    "tpu.trace_stop"() : () -> ()
    %135 = vector.broadcast %133 : vector<8x1x8xf32> to vector<8x8x8xf32>
    %136 = arith.addf %134, %135 : vector<8x8x8xf32>
    %137 = arith.truncf %2 : vector<2x8x32xf32> to vector<2x8x32xbf16>
    %138 = vector.shape_cast %137 : vector<2x8x32xbf16> to vector<2x1x8x32xbf16>
    %139 = vector.shape_cast %138 : vector<2x1x8x32xbf16> to vector<2x1x8x32xbf16>
    %140 = vector.broadcast %139 : vector<2x1x8x32xbf16> to vector<2x4x8x32xbf16>
    %141 = vector.shape_cast %140 : vector<2x4x8x32xbf16> to vector<8x8x32xbf16>
    %c0_58 = arith.constant 0 : index
    %c0_59 = arith.constant 0 : index
    %c0_60 = arith.constant 0 : index
    %142 = vector.load %arg15[%c0_58, %c0_59, %c0_60] : memref<4x32x8xbf16, #tpu.memory_space<vmem>>, vector<4x32x8xbf16>
    %143 = vector.shape_cast %142 : vector<4x32x8xbf16> to vector<1x4x32x8xbf16>
    %144 = vector.shape_cast %143 : vector<1x4x32x8xbf16> to vector<1x4x32x8xbf16>
    %145 = vector.broadcast %144 : vector<1x4x32x8xbf16> to vector<2x4x32x8xbf16>
    %146 = vector.shape_cast %145 : vector<2x4x32x8xbf16> to vector<8x32x8xbf16>
    %c0_61 = arith.constant 0 : index
    %c0_62 = arith.constant 0 : index
    %c0_63 = arith.constant 0 : index
    %147 = vector.load %arg16[%c0_61, %c0_62, %c0_63] : memref<4x1x8xf32, #tpu.memory_space<vmem>>, vector<4x1x8xf32>
    %148 = vector.shape_cast %147 : vector<4x1x8xf32> to vector<1x4x1x8xf32>
    %149 = vector.shape_cast %148 : vector<1x4x1x8xf32> to vector<1x4x1x8xf32>
    %150 = vector.broadcast %149 : vector<1x4x1x8xf32> to vector<2x4x1x8xf32>
    %151 = vector.shape_cast %150 : vector<2x4x1x8xf32> to vector<8x1x8xf32>
    "tpu.trace_start"() <{level = 10 : i32, message = "ztd,zdk->ztk"}> : () -> ()
    %cst_64 = arith.constant dense<0.000000e+00> : vector<8x8x8xf32>
    %152 = tpu.matmul %141, %146, %cst_64 {dimension_numbers = #tpu.dot_dimension_numbers<[2], [1], [1], [2], [0, 0, 0, 1, 1, 2], [0], [0]>} : vector<8x8x32xbf16>, vector<8x32x8xbf16>, vector<8x8x8xf32> -> vector<8x8x8xf32>
    "tpu.trace_stop"() : () -> ()
    %153 = vector.broadcast %151 : vector<8x1x8xf32> to vector<8x8x8xf32>
    %154 = arith.addf %152, %153 : vector<8x8x8xf32>
    %155 = arith.truncf %117 : vector<8x8x8xf32> to vector<8x8x8xbf16>
    %156 = arith.truncf %136 : vector<8x8x8xf32> to vector<8x8x8xbf16>
    "tpu.trace_start"() <{level = 10 : i32, message = "zqd,zkd->zqk"}> : () -> ()
    %cst_65 = arith.constant dense<0.000000e+00> : vector<8x8x8xf32>
    %157 = tpu.matmul %155, %156, %cst_65 {dimension_numbers = #tpu.dot_dimension_numbers<[2], [2], [1], [1], [0, 0, 0, 1, 1, 1], [0], [0]>} : vector<8x8x8xbf16>, vector<8x8x8xbf16>, vector<8x8x8xf32> -> vector<8x8x8xf32>
    "tpu.trace_stop"() : () -> ()
    %cst_66 = arith.constant dense<0xFF800000> : vector<8x8xf32>
    %158 = vector.multi_reduction <maximumf>, %157, %cst_66 [2] : vector<8x8x8xf32> to vector<8x8xf32>
    %159 = vector.shape_cast %158 : vector<8x8xf32> to vector<8x8x1xf32>
    %160 = vector.broadcast %159 : vector<8x8x1xf32> to vector<8x8x8xf32>
    %161 = arith.subf %157, %160 : vector<8x8x8xf32>
    %162 = math.exp %161 : vector<8x8x8xf32>
    %cst_67 = arith.constant dense<0.000000e+00> : vector<8x8xf32>
    %163 = vector.multi_reduction <add>, %162, %cst_67 [2] : vector<8x8x8xf32> to vector<8x8xf32>
    %164 = vector.shape_cast %163 : vector<8x8xf32> to vector<8x8x1xf32>
    %165 = tpu.reciprocal %164 {approx = true} : vector<8x8x1xf32> -> vector<8x8x1xf32>
    %166 = vector.broadcast %165 : vector<8x8x1xf32> to vector<8x8x8xf32>
    %167 = arith.mulf %162, %166 : vector<8x8x8xf32>
    %168 = arith.truncf %167 : vector<8x8x8xf32> to vector<8x8x8xbf16>
    %169 = arith.truncf %154 : vector<8x8x8xf32> to vector<8x8x8xbf16>
    "tpu.trace_start"() <{level = 10 : i32, message = "zqk,zkd->zqd"}> : () -> ()
    %cst_68 = arith.constant dense<0.000000e+00> : vector<8x8x8xf32>
    %170 = tpu.matmul %168, %169, %cst_68 {dimension_numbers = #tpu.dot_dimension_numbers<[2], [1], [1], [2], [0, 0, 0, 1, 1, 2], [0], [0]>} : vector<8x8x8xbf16>, vector<8x8x8xbf16>, vector<8x8x8xf32> -> vector<8x8x8xf32>
    "tpu.trace_stop"() : () -> ()
    %c0_69 = arith.constant 0 : index
    %c0_70 = arith.constant 0 : index
    %c0_71 = arith.constant 0 : index
    %171 = vector.load %arg17[%c0_69, %c0_70, %c0_71] : memref<4x8x32xbf16, #tpu.memory_space<vmem>>, vector<4x8x32xbf16>
    %172 = vector.shape_cast %171 : vector<4x8x32xbf16> to vector<1x4x8x32xbf16>
    %173 = vector.shape_cast %172 : vector<1x4x8x32xbf16> to vector<1x4x8x32xbf16>
    %174 = vector.broadcast %173 : vector<1x4x8x32xbf16> to vector<2x4x8x32xbf16>
    %175 = vector.shape_cast %174 : vector<2x4x8x32xbf16> to vector<8x8x32xbf16>
    %176 = arith.truncf %170 : vector<8x8x8xf32> to vector<8x8x8xbf16>
    "tpu.trace_start"() <{level = 10 : i32, message = "zqd,zde->zqe"}> : () -> ()
    %cst_72 = arith.constant dense<0.000000e+00> : vector<8x8x32xf32>
    %177 = tpu.matmul %176, %175, %cst_72 {dimension_numbers = #tpu.dot_dimension_numbers<[2], [1], [1], [2], [0, 0, 0, 1, 1, 2], [0], [0]>} : vector<8x8x8xbf16>, vector<8x8x32xbf16>, vector<8x8x32xf32> -> vector<8x8x32xf32>
    "tpu.trace_stop"() : () -> ()
    %178 = vector.shape_cast %177 : vector<8x8x32xf32> to vector<2x4x8x32xf32>
    %cst_73 = arith.constant dense<0.000000e+00> : vector<2x8x32xf32>
    %179 = vector.multi_reduction <add>, %178, %cst_73 [1] : vector<2x4x8x32xf32> to vector<2x8x32xf32>
    %180 = vector.shape_cast %179 : vector<2x8x32xf32> to vector<16x32xf32>
    %c0_74 = arith.constant 0 : index
    %c0_75 = arith.constant 0 : index
    %181 = vector.load %arg18[%c0_74, %c0_75] : memref<1x32xf32, #tpu.memory_space<vmem>>, vector<1x32xf32>
    %182 = vector.broadcast %181 : vector<1x32xf32> to vector<16x32xf32>
    %183 = arith.addf %180, %182 : vector<16x32xf32>
    %184 = arith.addf %97, %183 : vector<16x32xf32>
    %cst_76 = arith.constant dense<0.000000e+00> : vector<16xf32>
    %185 = vector.multi_reduction <add>, %184, %cst_76 [1] : vector<16x32xf32> to vector<16xf32>
    %186 = vector.shape_cast %185 : vector<16xf32> to vector<16x1xf32>
    %cst_77 = arith.constant 3.200000e+01 : f32
    %187 = vector.broadcast %cst_77 : f32 to vector<16x1xf32>
    %188 = arith.divf %186, %187 : vector<16x1xf32>
    %189 = vector.broadcast %188 : vector<16x1xf32> to vector<16x32xf32>
    %190 = arith.subf %184, %189 : vector<16x32xf32>
    %191 = arith.mulf %190, %190 : vector<16x32xf32>
    %cst_78 = arith.constant dense<0.000000e+00> : vector<16xf32>
    %192 = vector.multi_reduction <add>, %191, %cst_78 [1] : vector<16x32xf32> to vector<16xf32>
    %193 = vector.shape_cast %192 : vector<16xf32> to vector<16x1xf32>
    %cst_79 = arith.constant 3.200000e+01 : f32
    %194 = vector.broadcast %cst_79 : f32 to vector<16x1xf32>
    %195 = arith.divf %193, %194 : vector<16x1xf32>
    %196 = vector.broadcast %188 : vector<16x1xf32> to vector<16x32xf32>
    %197 = arith.subf %184, %196 : vector<16x32xf32>
    %cst_80 = arith.constant 9.99999974E-6 : f32
    %198 = vector.broadcast %cst_80 : f32 to vector<16x1xf32>
    %199 = arith.addf %195, %198 : vector<16x1xf32>
    %200 = math.rsqrt %199 : vector<16x1xf32>
    %201 = vector.broadcast %200 : vector<16x1xf32> to vector<16x32xf32>
    %202 = arith.mulf %197, %201 : vector<16x32xf32>
    %c0_81 = arith.constant 0 : index
    %c0_82 = arith.constant 0 : index
    %203 = vector.load %arg25[%c0_81, %c0_82] : memref<1x32xf32, #tpu.memory_space<vmem>>, vector<1x32xf32>
    %204 = vector.broadcast %203 : vector<1x32xf32> to vector<16x32xf32>
    %205 = arith.mulf %202, %204 : vector<16x32xf32>
    %c0_83 = arith.constant 0 : index
    %c0_84 = arith.constant 0 : index
    %206 = vector.load %arg26[%c0_83, %c0_84] : memref<1x32xf32, #tpu.memory_space<vmem>>, vector<1x32xf32>
    %207 = vector.broadcast %206 : vector<1x32xf32> to vector<16x32xf32>
    %208 = arith.addf %205, %207 : vector<16x32xf32>
    %209 = arith.truncf %208 : vector<16x32xf32> to vector<16x32xbf16>
    %c0_85 = arith.constant 0 : index
    %c0_86 = arith.constant 0 : index
    %210 = vector.load %arg19[%c0_85, %c0_86] : memref<32x64xbf16, #tpu.memory_space<vmem>>, vector<32x64xbf16>
    %cst_87 = arith.constant dense<0.000000e+00> : vector<16x64xf32>
    %211 = tpu.matmul %209, %210, %cst_87 {dimension_numbers = #tpu.dot_dimension_numbers<[1], [0], [0], [1], [0, 0, 1, 1], [], []>} : vector<16x32xbf16>, vector<32x64xbf16>, vector<16x64xf32> -> vector<16x64xf32>
    %c0_88 = arith.constant 0 : index
    %c0_89 = arith.constant 0 : index
    %212 = vector.load %arg20[%c0_88, %c0_89] : memref<1x64xf32, #tpu.memory_space<vmem>>, vector<1x64xf32>
    %213 = vector.broadcast %212 : vector<1x64xf32> to vector<16x64xf32>
    %214 = arith.addf %211, %213 : vector<16x64xf32>
    %cst_90 = arith.constant 0.000000e+00 : f32
    %215 = vector.broadcast %cst_90 : f32 to vector<16x64xf32>
    %216 = arith.maximumf %214, %215 : vector<16x64xf32>
    %217 = arith.truncf %216 : vector<16x64xf32> to vector<16x64xbf16>
    %c0_91 = arith.constant 0 : index
    %c0_92 = arith.constant 0 : index
    %218 = vector.load %arg21[%c0_91, %c0_92] : memref<64x32xbf16, #tpu.memory_space<vmem>>, vector<64x32xbf16>
    %cst_93 = arith.constant dense<0.000000e+00> : vector<16x32xf32>
    %219 = tpu.matmul %217, %218, %cst_93 {dimension_numbers = #tpu.dot_dimension_numbers<[1], [0], [0], [1], [0, 0, 1, 1], [], []>} : vector<16x64xbf16>, vector<64x32xbf16>, vector<16x32xf32> -> vector<16x32xf32>
    %c0_94 = arith.constant 0 : index
    %c0_95 = arith.constant 0 : index
    %220 = vector.load %arg22[%c0_94, %c0_95] : memref<1x32xf32, #tpu.memory_space<vmem>>, vector<1x32xf32>
    %221 = vector.broadcast %220 : vector<1x32xf32> to vector<16x32xf32>
    %222 = arith.addf %219, %221 : vector<16x32xf32>
    %223 = arith.addf %208, %222 : vector<16x32xf32>
    %cst_96 = arith.constant dense<0.000000e+00> : vector<16xf32>
    %224 = vector.multi_reduction <add>, %223, %cst_96 [1] : vector<16x32xf32> to vector<16xf32>
    %225 = vector.shape_cast %224 : vector<16xf32> to vector<16x1xf32>
    %cst_97 = arith.constant 3.200000e+01 : f32
    %226 = vector.broadcast %cst_97 : f32 to vector<16x1xf32>
    %227 = arith.divf %225, %226 : vector<16x1xf32>
    %228 = vector.broadcast %227 : vector<16x1xf32> to vector<16x32xf32>
    %229 = arith.subf %223, %228 : vector<16x32xf32>
    %230 = arith.mulf %229, %229 : vector<16x32xf32>
    %cst_98 = arith.constant dense<0.000000e+00> : vector<16xf32>
    %231 = vector.multi_reduction <add>, %230, %cst_98 [1] : vector<16x32xf32> to vector<16xf32>
    %232 = vector.shape_cast %231 : vector<16xf32> to vector<16x1xf32>
    %cst_99 = arith.constant 3.200000e+01 : f32
    %233 = vector.broadcast %cst_99 : f32 to vector<16x1xf32>
    %234 = arith.divf %232, %233 : vector<16x1xf32>
    %235 = vector.broadcast %227 : vector<16x1xf32> to vector<16x32xf32>
    %236 = arith.subf %223, %235 : vector<16x32xf32>
    %cst_100 = arith.constant 9.99999974E-6 : f32
    %237 = vector.broadcast %cst_100 : f32 to vector<16x1xf32>
    %238 = arith.addf %234, %237 : vector<16x1xf32>
    %239 = math.rsqrt %238 : vector<16x1xf32>
    %240 = vector.broadcast %239 : vector<16x1xf32> to vector<16x32xf32>
    %241 = arith.mulf %236, %240 : vector<16x32xf32>
    %c0_101 = arith.constant 0 : index
    %c0_102 = arith.constant 0 : index
    %242 = vector.load %arg27[%c0_101, %c0_102] : memref<1x32xf32, #tpu.memory_space<vmem>>, vector<1x32xf32>
    %243 = vector.broadcast %242 : vector<1x32xf32> to vector<16x32xf32>
    %244 = arith.mulf %241, %243 : vector<16x32xf32>
    %c0_103 = arith.constant 0 : index
    %c0_104 = arith.constant 0 : index
    %245 = vector.load %arg28[%c0_103, %c0_104] : memref<1x32xf32, #tpu.memory_space<vmem>>, vector<1x32xf32>
    %246 = vector.broadcast %245 : vector<1x32xf32> to vector<16x32xf32>
    %247 = arith.addf %244, %246 : vector<16x32xf32>
    %c0_105 = arith.constant 0 : index
    %c0_106 = arith.constant 0 : index
    %c0_107 = arith.constant 0 : index
    %248 = vector.load %arg29[%c0_105, %c0_106, %c0_107] : memref<1x16x32xf32, #tpu.memory_space<vmem>>, vector<1x16x32xf32>
    %249 = vector.shape_cast %248 : vector<1x16x32xf32> to vector<16x32xf32>
    %250 = vector.shape_cast %247 : vector<16x32xf32> to vector<1x16x32xf32>
    tpu.vector_store %arg29[%c0_105, %c0_106, %c0_107], %250 {strides = array<i32>} : memref<1x16x32xf32, #tpu.memory_space<vmem>>, vector<1x16x32xf32>,
    return
  }
  func.func @transform_0(%arg0: i32) -> (i32, i32, i32) {
    %c0_i32 = arith.constant 0 : i32
    %c0_i32_0 = arith.constant 0 : i32
    %c0_i32_1 = arith.constant 0 : i32
    return %arg0, %c0_i32, %c0_i32_0 : i32, i32, i32
  }
  func.func @transform_1(%arg0: i32) -> (i32, i32, i32) {
    %c0_i32 = arith.constant 0 : i32
    %c0_i32_0 = arith.constant 0 : i32
    %c0_i32_1 = arith.constant 0 : i32
    return %arg0, %c0_i32, %c0_i32_0 : i32, i32, i32
  }
  func.func @transform_2(%arg0: i32) -> (i32, i32, i32) {
    %c0_i32 = arith.constant 0 : i32
    %c0_i32_0 = arith.constant 0 : i32
    %c0_i32_1 = arith.constant 0 : i32
    return %arg0, %c0_i32, %c0_i32_0 : i32, i32, i32
  }
  func.func @transform_3(%arg0: i32) -> (i32, i32, i32) {
    %c0_i32 = arith.constant 0 : i32
    %c0_i32_0 = arith.constant 0 : i32
    %c0_i32_1 = arith.constant 0 : i32
    return %arg0, %c0_i32, %c0_i32_0 : i32, i32, i32
  }
  func.func @transform_4(%arg0: i32) -> (i32, i32, i32) {
    %c0_i32 = arith.constant 0 : i32
    %c0_i32_0 = arith.constant 0 : i32
    %c0_i32_1 = arith.constant 0 : i32
    %c0_i32_2 = arith.constant 0 : i32
    return %c0_i32, %c0_i32_0, %c0_i32_1 : i32, i32, i32
  }
  func.func @transform_5(%arg0: i32) -> (i32, i32, i32) {
    %c0_i32 = arith.constant 0 : i32
    %c0_i32_0 = arith.constant 0 : i32
    %c0_i32_1 = arith.constant 0 : i32
    %c0_i32_2 = arith.constant 0 : i32
    return %c0_i32, %c0_i32_0, %c0_i32_1 : i32, i32, i32
  }
  func.func @transform_6(%arg0: i32) -> (i32, i32, i32) {
    %c0_i32 = arith.constant 0 : i32
    %c0_i32_0 = arith.constant 0 : i32
    %c0_i32_1 = arith.constant 0 : i32
    %c0_i32_2 = arith.constant 0 : i32
    return %c0_i32, %c0_i32_0, %c0_i32_1 : i32, i32, i32
  }
  func.func @transform_7(%arg0: i32) -> (i32, i32, i32) {
    %c0_i32 = arith.constant 0 : i32
    %c0_i32_0 = arith.constant 0 : i32
    %c0_i32_1 = arith.constant 0 : i32
    %c0_i32_2 = arith.constant 0 : i32
    return %c0_i32, %c0_i32_0, %c0_i32_1 : i32, i32, i32
  }
  func.func @transform_8(%arg0: i32) -> (i32, i32, i32) {
    %c0_i32 = arith.constant 0 : i32
    %c0_i32_0 = arith.constant 0 : i32
    %c0_i32_1 = arith.constant 0 : i32
    %c0_i32_2 = arith.constant 0 : i32
    return %c0_i32, %c0_i32_0, %c0_i32_1 : i32, i32, i32
  }
  func.func @transform_9(%arg0: i32) -> (i32, i32) {
    %c0_i32 = arith.constant 0 : i32
    %c0_i32_0 = arith.constant 0 : i32
    %c0_i32_1 = arith.constant 0 : i32
    return %c0_i32, %c0_i32_0 : i32, i32
  }
  func.func @transform_10(%arg0: i32) -> (i32, i32, i32) {
    %c0_i32 = arith.constant 0 : i32
    %c0_i32_0 = arith.constant 0 : i32
    %c0_i32_1 = arith.constant 0 : i32
    %c0_i32_2 = arith.constant 0 : i32
    return %c0_i32, %c0_i32_0, %c0_i32_1 : i32, i32, i32
  }
  func.func @transform_11(%arg0: i32) -> (i32, i32, i32) {
    %c0_i32 = arith.constant 0 : i32
    %c0_i32_0 = arith.constant 0 : i32
    %c0_i32_1 = arith.constant 0 : i32
    %c0_i32_2 = arith.constant 0 : i32
    return %c0_i32, %c0_i32_0, %c0_i32_1 : i32, i32, i32
  }
  func.func @transform_12(%arg0: i32) -> (i32, i32, i32) {
    %c0_i32 = arith.constant 0 : i32
    %c0_i32_0 = arith.constant 0 : i32
    %c0_i32_1 = arith.constant 0 : i32
    %c0_i32_2 = arith.constant 0 : i32
    return %c0_i32, %c0_i32_0, %c0_i32_1 : i32, i32, i32
  }
  func.func @transform_13(%arg0: i32) -> (i32, i32, i32) {
    %c0_i32 = arith.constant 0 : i32
    %c0_i32_0 = arith.constant 0 : i32
    %c0_i32_1 = arith.constant 0 : i32
    %c0_i32_2 = arith.constant 0 : i32
    return %c0_i32, %c0_i32_0, %c0_i32_1 : i32, i32, i32
  }
  func.func @transform_14(%arg0: i32) -> (i32, i32, i32) {
    %c0_i32 = arith.constant 0 : i32
    %c0_i32_0 = arith.constant 0 : i32
    %c0_i32_1 = arith.constant 0 : i32
    %c0_i32_2 = arith.constant 0 : i32
    return %c0_i32, %c0_i32_0, %c0_i32_1 : i32, i32, i32
  }
  func.func @transform_15(%arg0: i32) -> (i32, i32, i32) {
    %c0_i32 = arith.constant 0 : i32
    %c0_i32_0 = arith.constant 0 : i32
    %c0_i32_1 = arith.constant 0 : i32
    %c0_i32_2 = arith.constant 0 : i32
    return %c0_i32, %c0_i32_0, %c0_i32_1 : i32, i32, i32
  }
  func.func @transform_16(%arg0: i32) -> (i32, i32, i32) {
    %c0_i32 = arith.constant 0 : i32
    %c0_i32_0 = arith.constant 0 : i32
    %c0_i32_1 = arith.constant 0 : i32
    %c0_i32_2 = arith.constant 0 : i32
    return %c0_i32, %c0_i32_0, %c0_i32_1 : i32, i32, i32
  }
  func.func @transform_17(%arg0: i32) -> (i32, i32) {
    %c0_i32 = arith.constant 0 : i32
    %c0_i32_0 = arith.constant 0 : i32
    %c0_i32_1 = arith.constant 0 : i32
    return %c0_i32, %c0_i32_0 : i32, i32
  }
  func.func @transform_18(%arg0: i32) -> (i32, i32) {
    %c0_i32 = arith.constant 0 : i32
    %c0_i32_0 = arith.constant 0 : i32
    %c0_i32_1 = arith.constant 0 : i32
    return %c0_i32, %c0_i32_0 : i32, i32
  }
  func.func @transform_19(%arg0: i32) -> (i32, i32) {
    %c0_i32 = arith.constant 0 : i32
    %c0_i32_0 = arith.constant 0 : i32
    %c0_i32_1 = arith.constant 0 : i32
    return %c0_i32, %c0_i32_0 : i32, i32
  }
  func.func @transform_20(%arg0: i32) -> (i32, i32) {
    %c0_i32 = arith.constant 0 : i32
    %c0_i32_0 = arith.constant 0 : i32
    %c0_i32_1 = arith.constant 0 : i32
    return %c0_i32, %c0_i32_0 : i32, i32
  }
  func.func @transform_21(%arg0: i32) -> (i32, i32) {
    %c0_i32 = arith.constant 0 : i32
    %c0_i32_0 = arith.constant 0 : i32
    %c0_i32_1 = arith.constant 0 : i32
    return %c0_i32, %c0_i32_0 : i32, i32
  }
  func.func @transform_22(%arg0: i32) -> (i32, i32) {
    %c0_i32 = arith.constant 0 : i32
    %c0_i32_0 = arith.constant 0 : i32
    %c0_i32_1 = arith.constant 0 : i32
    return %c0_i32, %c0_i32_0 : i32, i32
  }
  func.func @transform_23(%arg0: i32) -> (i32, i32) {
    %c0_i32 = arith.constant 0 : i32
    %c0_i32_0 = arith.constant 0 : i32
    %c0_i32_1 = arith.constant 0 : i32
    return %c0_i32, %c0_i32_0 : i32, i32
  }
  func.func @transform_24(%arg0: i32) -> (i32, i32) {
    %c0_i32 = arith.constant 0 : i32
    %c0_i32_0 = arith.constant 0 : i32
    %c0_i32_1 = arith.constant 0 : i32
    return %c0_i32, %c0_i32_0 : i32, i32
  }
  func.func @transform_25(%arg0: i32) -> (i32, i32) {
    %c0_i32 = arith.constant 0 : i32
    %c0_i32_0 = arith.constant 0 : i32
    %c0_i32_1 = arith.constant 0 : i32
    return %c0_i32, %c0_i32_0 : i32, i32
  }
  func.func @transform_26(%arg0: i32) -> (i32, i32) {
    %c0_i32 = arith.constant 0 : i32
    %c0_i32_0 = arith.constant 0 : i32
    %c0_i32_1 = arith.constant 0 : i32
    return %c0_i32, %c0_i32_0 : i32, i32
  }
  func.func @transform_27(%arg0: i32) -> (i32, i32) {
    %c0_i32 = arith.constant 0 : i32
    %c0_i32_0 = arith.constant 0 : i32
    %c0_i32_1 = arith.constant 0 : i32
    return %c0_i32, %c0_i32_0 : i32, i32
  }
  func.func @transform_28(%arg0: i32) -> (i32, i32, i32) {
    %c0_i32 = arith.constant 0 : i32
    %c0_i32_0 = arith.constant 0 : i32
    %c0_i32_1 = arith.constant 0 : i32
    return %arg0, %c0_i32, %c0_i32_0 : i32, i32, i32
  }
}

</mosaic_0001>

<llo_original>
// kernel: tpu_custom_call.1
$region0: #{tpu_custom_call.1}
  #allocation0 [shape = 'u32[]', space=smem, size = 0x4, offset = 0x4, fixed_abs, tag = 'smem constant byte address 0x4 - core index']
  #allocation1 [shape = 'u32[72,128]{1,0:T(1,128)}', space=vmem, size = 0x9000, scoped, tag = 'internal scratch']
  %s0 = inlined_call_operand.vmem [shape: f32[2,8,32], index: 0, kind: input, shape index: {}]
  %s1 = inlined_call_operand.vmem [shape: f32[2,8,32], index: 1, kind: input, shape index: {}]
  %s2 = inlined_call_operand.vmem [shape: f32[2,8,32], index: 2, kind: input, shape index: {}]
  %s3 = inlined_call_operand.vmem [shape: f32[2,8,32], index: 3, kind: input, shape index: {}]
  %s4 = inlined_call_operand.vmem [shape: bf16[4,32,16], index: 4, kind: input, shape index: {}]
  %s5 = inlined_call_operand.vmem [shape: f32[4,1,16], index: 5, kind: input, shape index: {}]
  %s6 = inlined_call_operand.vmem [shape: bf16[4,32,8], index: 6, kind: input, shape index: {}]
  %s7 = inlined_call_operand.vmem [shape: f32[4,1,8], index: 7, kind: input, shape index: {}]
  %s8 = inlined_call_operand.vmem [shape: bf16[4,8,32], index: 8, kind: input, shape index: {}]
  %s9 = inlined_call_operand.vmem [shape: f32[1,32], index: 9, kind: input, shape index: {}]
  %s10 = inlined_call_operand.vmem [shape: bf16[4,32,8], index: 10, kind: input, shape index: {}]
  %s11 = inlined_call_operand.vmem [shape: f32[4,1,8], index: 11, kind: input, shape index: {}]
  %s12 = inlined_call_operand.vmem [shape: bf16[4,32,8], index: 12, kind: input, shape index: {}]
  %s13 = inlined_call_operand.vmem [shape: f32[4,1,8], index: 13, kind: input, shape index: {}]
  %s14 = inlined_call_operand.vmem [shape: bf16[4,32,8], index: 14, kind: input, shape index: {}]
  %s15 = inlined_call_operand.vmem [shape: f32[4,1,8], index: 15, kind: input, shape index: {}]
  %s16 = inlined_call_operand.vmem [shape: bf16[4,8,32], index: 16, kind: input, shape index: {}]
  %s17 = inlined_call_operand.vmem [shape: f32[1,32], index: 17, kind: input, shape index: {}]
  %s18 = inlined_call_operand.vmem [shape: bf16[32,64], index: 18, kind: input, shape index: {}]
  %s19 = inlined_call_operand.vmem [shape: f32[1,64], index: 19, kind: input, shape index: {}]
  %s20 = inlined_call_operand.vmem [shape: bf16[64,32], index: 20, kind: input, shape index: {}]
  %s21 = inlined_call_operand.vmem [shape: f32[1,32], index: 21, kind: input, shape index: {}]
  %s22 = inlined_call_operand.vmem [shape: f32[1,32], index: 22, kind: input, shape index: {}]
  %s23 = inlined_call_operand.vmem [shape: f32[1,32], index: 23, kind: input, shape index: {}]
  %s24 = inlined_call_operand.vmem [shape: f32[1,32], index: 24, kind: input, shape index: {}]
  %s25 = inlined_call_operand.vmem [shape: f32[1,32], index: 25, kind: input, shape index: {}]
  %s26 = inlined_call_operand.vmem [shape: f32[1,32], index: 26, kind: input, shape index: {}]
  %s27 = inlined_call_operand.vmem [shape: f32[1,32], index: 27, kind: input, shape index: {}]
  %s28 = inlined_call_operand.hbm [shape: f32[1,16,32], index: 28, kind: output, shape index: {}]
  %s29 = sld [smem:[#allocation0]]
  $region122: #{tpu_custom_call.1} parent=0
    _
  %s31 = ssub.s32 1, %s29
  %s32 = scalar_select 0, %s31, %s29
  $region1: #{tpu_custom_call.1} parent=0
    #allocation2 [shape = 'u8[8192]{0}', space=vmem, size = 0x2000, scoped, tag = 'output window, operand 0, single buffered']
    #allocation3 [shape = 's32[1]{0}', space=sflag, size = 0x4, scoped, tag = 'scoped memory for tpu_custom_call.1']
    %33 = vsyncpa [#allocation3], 0
    // Predicated region
    $region2: #{tpu_custom_call.1} parent=1 // pred_check
      _
    $region3: #{tpu_custom_call.1} parent=1 // pred_check_branch
      %35 = sbr.rel (0) target = $region5
    $region4: #{tpu_custom_call.1} parent=1 // pred_region
      _
    $region5: #{tpu_custom_call.1} parent=1 // pred_fallthru
      _
    // Predicated region
    $region6: #{tpu_custom_call.1} parent=1 // pred_check
      _
    $region7: #{tpu_custom_call.1} parent=1 // pred_check_branch
      %37 = sbr.rel (0) target = $region9
    $region8: #{tpu_custom_call.1} parent=1 // pred_region
      _
    $region9: #{tpu_custom_call.1} parent=1 // pred_fallthru
      _
    // Predicated region
    $region10: #{tpu_custom_call.1} parent=1 // pred_check
      _
    $region11: #{tpu_custom_call.1} parent=1 // pred_check_branch
      %39 = sbr.rel (0) target = $region13
    $region12: #{tpu_custom_call.1} parent=1 // pred_region
      _
    $region13: #{tpu_custom_call.1} parent=1 // pred_fallthru
      _
    // Predicated region
    $region14: #{tpu_custom_call.1} parent=1 // pred_check
      _
    $region15: #{tpu_custom_call.1} parent=1 // pred_check_branch
      %41 = sbr.rel (0) target = $region17
    $region16: #{tpu_custom_call.1} parent=1 // pred_region
      _
    $region17: #{tpu_custom_call.1} parent=1 // pred_fallthru
      _
    // Predicated region
    $region18: #{tpu_custom_call.1} parent=1 // pred_check
      _
    $region19: #{tpu_custom_call.1} parent=1 // pred_check_branch
      %43 = sbr.rel (0) target = $region21
    $region20: #{tpu_custom_call.1} parent=1 // pred_region
      _
    $region21: #{tpu_custom_call.1} parent=1 // pred_fallthru
      _
    // Predicated region
    $region22: #{tpu_custom_call.1} parent=1 // pred_check
      _
    $region23: #{tpu_custom_call.1} parent=1 // pred_check_branch
      %45 = sbr.rel (0) target = $region25
    $region24: #{tpu_custom_call.1} parent=1 // pred_region
      _
    $region25: #{tpu_custom_call.1} parent=1 // pred_fallthru
      _
    // Predicated region
    $region26: #{tpu_custom_call.1} parent=1 // pred_check
      _
    $region27: #{tpu_custom_call.1} parent=1 // pred_check_branch
      %47 = sbr.rel (0) target = $region29
    $region28: #{tpu_custom_call.1} parent=1 // pred_region
      _
    $region29: #{tpu_custom_call.1} parent=1 // pred_fallthru
      _
    // Predicated region
    $region30: #{tpu_custom_call.1} parent=1 // pred_check
      _
    $region31: #{tpu_custom_call.1} parent=1 // pred_check_branch
      %49 = sbr.rel (0) target = $region33
    $region32: #{tpu_custom_call.1} parent=1 // pred_region
      _
    $region33: #{tpu_custom_call.1} parent=1 // pred_fallthru
      _
    // Predicated region
    $region34: #{tpu_custom_call.1} parent=1 // pred_check
      _
    $region35: #{tpu_custom_call.1} parent=1 // pred_check_branch
      %51 = sbr.rel (0) target = $region37
    $region36: #{tpu_custom_call.1} parent=1 // pred_region
      _
    $region37: #{tpu_custom_call.1} parent=1 // pred_fallthru
      _
    // Predicated region
    $region38: #{tpu_custom_call.1} parent=1 // pred_check
      _
    $region39: #{tpu_custom_call.1} parent=1 // pred_check_branch
      %53 = sbr.rel (0) target = $region41
    $region40: #{tpu_custom_call.1} parent=1 // pred_region
      _
    $region41: #{tpu_custom_call.1} parent=1 // pred_fallthru
      _
    // Predicated region
    $region42: #{tpu_custom_call.1} parent=1 // pred_check
      _
    $region43: #{tpu_custom_call.1} parent=1 // pred_check_branch
      %55 = sbr.rel (0) target = $region45
    $region44: #{tpu_custom_call.1} parent=1 // pred_region
      _
    $region45: #{tpu_custom_call.1} parent=1 // pred_fallthru
      _
    // Predicated region
    $region46: #{tpu_custom_call.1} parent=1 // pred_check
      _
    $region47: #{tpu_custom_call.1} parent=1 // pred_check_branch
      %57 = sbr.rel (0) target = $region49
    $region48: #{tpu_custom_call.1} parent=1 // pred_region
      _
    $region49: #{tpu_custom_call.1} parent=1 // pred_fallthru
      _
    // Predicated region
    $region50: #{tpu_custom_call.1} parent=1 // pred_check
      _
    $region51: #{tpu_custom_call.1} parent=1 // pred_check_branch
      %59 = sbr.rel (0) target = $region53
    $region52: #{tpu_custom_call.1} parent=1 // pred_region
      _
    $region53: #{tpu_custom_call.1} parent=1 // pred_fallthru
      _
    // Predicated region
    $region54: #{tpu_custom_call.1} parent=1 // pred_check
      _
    $region55: #{tpu_custom_call.1} parent=1 // pred_check_branch
      %61 = sbr.rel (0) target = $region57
    $region56: #{tpu_custom_call.1} parent=1 // pred_region
      _
    $region57: #{tpu_custom_call.1} parent=1 // pred_fallthru
      _
    // Predicated region
    $region58: #{tpu_custom_call.1} parent=1 // pred_check
      _
    $region59: #{tpu_custom_call.1} parent=1 // pred_check_branch
      %63 = sbr.rel (0) target = $region61
    $region60: #{tpu_custom_call.1} parent=1 // pred_region
      _
    $region61: #{tpu_custom_call.1} parent=1 // pred_fallthru
      _
    // Predicated region
    $region62: #{tpu_custom_call.1} parent=1 // pred_check
      _
    $region63: #{tpu_custom_call.1} parent=1 // pred_check_branch
      %65 = sbr.rel (0) target = $region65
    $region64: #{tpu_custom_call.1} parent=1 // pred_region
      _
    $region65: #{tpu_custom_call.1} parent=1 // pred_fallthru
      _
    // Predicated region
    $region66: #{tpu_custom_call.1} parent=1 // pred_check
      _
    $region67: #{tpu_custom_call.1} parent=1 // pred_check_branch
      %67 = sbr.rel (0) target = $region69
    $region68: #{tpu_custom_call.1} parent=1 // pred_region
      _
    $region69: #{tpu_custom_call.1} parent=1 // pred_fallthru
      _
    // Predicated region
    $region70: #{tpu_custom_call.1} parent=1 // pred_check
      _
    $region71: #{tpu_custom_call.1} parent=1 // pred_check_branch
      %69 = sbr.rel (0) target = $region73
    $region72: #{tpu_custom_call.1} parent=1 // pred_region
      _
    $region73: #{tpu_custom_call.1} parent=1 // pred_fallthru
      _
    // Predicated region
    $region74: #{tpu_custom_call.1} parent=1 // pred_check
      _
    $region75: #{tpu_custom_call.1} parent=1 // pred_check_branch
      %71 = sbr.rel (0) target = $region77
    $region76: #{tpu_custom_call.1} parent=1 // pred_region
      _
    $region77: #{tpu_custom_call.1} parent=1 // pred_fallthru
      _
    // Predicated region
    $region78: #{tpu_custom_call.1} parent=1 // pred_check
      _
    $region79: #{tpu_custom_call.1} parent=1 // pred_check_branch
      %73 = sbr.rel (0) target = $region81
    $region80: #{tpu_custom_call.1} parent=1 // pred_region
      _
    $region81: #{tpu_custom_call.1} parent=1 // pred_fallthru
      _
    // Predicated region
    $region82: #{tpu_custom_call.1} parent=1 // pred_check
      _
    $region83: #{tpu_custom_call.1} parent=1 // pred_check_branch
      %75 = sbr.rel (0) target = $region85
    $region84: #{tpu_custom_call.1} parent=1 // pred_region
      _
    $region85: #{tpu_custom_call.1} parent=1 // pred_fallthru
      _
    // Predicated region
    $region86: #{tpu_custom_call.1} parent=1 // pred_check
      _
    $region87: #{tpu_custom_call.1} parent=1 // pred_check_branch
      %77 = sbr.rel (0) target = $region89
    $region88: #{tpu_custom_call.1} parent=1 // pred_region
      _
    $region89: #{tpu_custom_call.1} parent=1 // pred_fallthru
      _
    // Predicated region
    $region90: #{tpu_custom_call.1} parent=1 // pred_check
      _
    $region91: #{tpu_custom_call.1} parent=1 // pred_check_branch
      %79 = sbr.rel (0) target = $region93
    $region92: #{tpu_custom_call.1} parent=1 // pred_region
      _
    $region93: #{tpu_custom_call.1} parent=1 // pred_fallthru
      _
    // Predicated region
    $region94: #{tpu_custom_call.1} parent=1 // pred_check
      _
    $region95: #{tpu_custom_call.1} parent=1 // pred_check_branch
      %81 = sbr.rel (0) target = $region97
    $region96: #{tpu_custom_call.1} parent=1 // pred_region
      _
    $region97: #{tpu_custom_call.1} parent=1 // pred_fallthru
      _
    // Predicated region
    $region98: #{tpu_custom_call.1} parent=1 // pred_check
      _
    $region99: #{tpu_custom_call.1} parent=1 // pred_check_branch
      %83 = sbr.rel (0) target = $region101
    $region100: #{tpu_custom_call.1} parent=1 // pred_region
      _
    $region101: #{tpu_custom_call.1} parent=1 // pred_fallthru
      _
    // Predicated region
    $region102: #{tpu_custom_call.1} parent=1 // pred_check
      _
    $region103: #{tpu_custom_call.1} parent=1 // pred_check_branch
      %85 = sbr.rel (0) target = $region105
    $region104: #{tpu_custom_call.1} parent=1 // pred_region
      _
    $region105: #{tpu_custom_call.1} parent=1 // pred_fallthru
      _
    // Predicated region
    $region106: #{tpu_custom_call.1} parent=1 // pred_check
      _
    $region107: #{tpu_custom_call.1} parent=1 // pred_check_branch
      %87 = sbr.rel (0) target = $region109
    $region108: #{tpu_custom_call.1} parent=1 // pred_region
      _
    $region109: #{tpu_custom_call.1} parent=1 // pred_fallthru
      _
    // Predicated region
    $region110: #{tpu_custom_call.1} parent=1 // pred_check
      _
    $region111: #{tpu_custom_call.1} parent=1 // pred_check_branch
      %89 = sbr.rel (0) target = $region113
    $region112: #{tpu_custom_call.1} parent=1 // pred_region
      _
    $region113: #{tpu_custom_call.1} parent=1 // pred_fallthru
      _
    %v91 = vld [vmem:[%s0] sm:$0xff]
    %v92 = vld [vmem:[%s0 + $0x8] sm:$0xff]
    %v93 = vld [vmem:[%s2] sm:$0xff]
    %v94 = vld [vmem:[%s2 + $0x8] sm:$0xff]
    %v95 = vld [vmem:[%s1] sm:$0xff]
    %v96 = vld [vmem:[%s1 + $0x8] sm:$0xff]
    %v97 = vld [vmem:[%s3] sm:$0xff]
    %v98 = vld [vmem:[%s3 + $0x8] sm:$0xff]
    %v99 = vadd.f32 %v91, %v93
    %v100 = vadd.f32 %v92, %v94
    %v101 = vpack.c.bf16 %v99, %v99
    %v102 = vpack.c.bf16 %v100, %v100
    %v103 = vld [vmem:[%s4] sm:$0xf]
    %v104 = vld [vmem:[%s4 + $0x4] sm:$0xf]
    %v105 = vld [vmem:[%s4 + $0x8] sm:$0xf]
    %v106 = vld [vmem:[%s4 + $0xc] sm:$0xf]
    %v107 = vld [vmem:[%s4 + $0x10] sm:$0xf]
    %v108 = vld [vmem:[%s4 + $0x14] sm:$0xf]
    %v109 = vld [vmem:[%s4 + $0x18] sm:$0xf]
    %v110 = vld [vmem:[%s4 + $0x1c] sm:$0xf]
    %v111 = vld [vmem:[%s4 + $0x20] sm:$0xf]
    %v112 = vld [vmem:[%s4 + $0x24] sm:$0xf]
    %v113 = vld [vmem:[%s4 + $0x28] sm:$0xf]
    %v114 = vld [vmem:[%s4 + $0x2c] sm:$0xf]
    %v115 = vld [vmem:[%s4 + $0x30] sm:$0xf]
    %v116 = vld [vmem:[%s4 + $0x34] sm:$0xf]
    %v117 = vld [vmem:[%s4 + $0x38] sm:$0xf]
    %v118 = vld [vmem:[%s4 + $0x3c] sm:$0xf]
    %v119 = vld [vmem:[%s5] sm:$0x1]
    %v120 = vld [vmem:[%s5 + $0x1] sm:$0x1]
    %v121 = vld [vmem:[%s5 + $0x2] sm:$0x1]
    %v122 = vld [vmem:[%s5 + $0x3] sm:$0x1]
    %v127 = vperm.slane %v119, 0
    %v128 = vperm.slane %v120, 0
    %v129 = vperm.slane %v121, 0
    %v130 = vperm.slane %v122, 0
    %v139 = vunpack.c.l.b16 %v103
    %v140 = vunpack.c.l.b16 %v104
    %v141 = vunpack.c.l.b16 %v105
    %v142 = vunpack.c.l.b16 %v106
    %v143 = vpack.c.b16 %v140, %v139
    %v144 = vpack.c.b16 %v142, %v141
    %vm147 = vcmask 261120
    %v149 = vsel %vm147, %v101, 0
    %151 = vmatpush.bf16.msra.mxu0 0
    %152 = vmatpush.bf16.msra.mxu0 0
    %153 = vmatpush.bf16.msra.mxu0 0
    %154 = vmatpush.bf16.msra.mxu0 0
    %155 = vmatpush.bf16.msra.mxu0 0
    %156 = vmatpush.bf16.msra.mxu0 0
    %157 = vmatpush.bf16.msra.mxu0 %v144
    %158 = vmatpush.bf16.msra.mxu0 %v143
    %159 = vmatmul.bf16.gmra.mxu0 %v149
    %v160 = vpop.f32.mrf.mxu0
    %v161 = vadd.f32 %v127, %v160
    %v162 = vpop.f32.mrf.mxu0
    %163 = vdwg.mxu0
    %v168 = vunpack.c.l.b16 %v107
    %v169 = vunpack.c.l.b16 %v108
    %v170 = vunpack.c.l.b16 %v109
    %v171 = vunpack.c.l.b16 %v110
    %v172 = vpack.c.b16 %v169, %v168
    %v173 = vpack.c.b16 %v171, %v170
    %176 = vmatpush.bf16.msra.mxu0 0
    %177 = vmatpush.bf16.msra.mxu0 0
    %178 = vmatpush.bf16.msra.mxu0 0
    %179 = vmatpush.bf16.msra.mxu0 0
    %180 = vmatpush.bf16.msra.mxu0 0
    %181 = vmatpush.bf16.msra.mxu0 0
    %182 = vmatpush.bf16.msra.mxu0 %v173
    %183 = vmatpush.bf16.msra.mxu0 %v172
    %184 = vmatmul.bf16.gmra.mxu0 %v149
    %v185 = vpop.f32.mrf.mxu0
    %v186 = vadd.f32 %v128, %v185
    %v187 = vpop.f32.mrf.mxu0
    %188 = vdwg.mxu0
    %v193 = vunpack.c.l.b16 %v111
    %v194 = vunpack.c.l.b16 %v112
    %v195 = vunpack.c.l.b16 %v113
    %v196 = vunpack.c.l.b16 %v114
    %v197 = vpack.c.b16 %v194, %v193
    %v198 = vpack.c.b16 %v196, %v195
    %201 = vmatpush.bf16.msra.mxu0 0
    %202 = vmatpush.bf16.msra.mxu0 0
    %203 = vmatpush.bf16.msra.mxu0 0
    %204 = vmatpush.bf16.msra.mxu0 0
    %205 = vmatpush.bf16.msra.mxu0 0
    %206 = vmatpush.bf16.msra.mxu0 0
    %207 = vmatpush.bf16.msra.mxu0 %v198
    %208 = vmatpush.bf16.msra.mxu0 %v197
    %209 = vmatmul.bf16.gmra.mxu0 %v149
    %v210 = vpop.f32.mrf.mxu0
    %v211 = vadd.f32 %v129, %v210
    %v212 = vpop.f32.mrf.mxu0
    %213 = vdwg.mxu0
    %v218 = vunpack.c.l.b16 %v115
    %v219 = vunpack.c.l.b16 %v116
    %v220 = vunpack.c.l.b16 %v117
    %v221 = vunpack.c.l.b16 %v118
    %v222 = vpack.c.b16 %v219, %v218
    %v223 = vpack.c.b16 %v221, %v220
    %226 = vmatpush.bf16.msra.mxu0 0
    %227 = vmatpush.bf16.msra.mxu0 0
    %228 = vmatpush.bf16.msra.mxu0 0
    %229 = vmatpush.bf16.msra.mxu0 0
    %230 = vmatpush.bf16.msra.mxu0 0
    %231 = vmatpush.bf16.msra.mxu0 0
    %232 = vmatpush.bf16.msra.mxu0 %v223
    %233 = vmatpush.bf16.msra.mxu0 %v222
    %234 = vmatmul.bf16.gmra.mxu0 %v149
    %v235 = vpop.f32.mrf.mxu0
    %v236 = vadd.f32 %v130, %v235
    %v237 = vpop.f32.mrf.mxu0
    %238 = vdwg.mxu0
    %v240 = vsel %vm147, %v102, 0
    %242 = vmatpush.bf16.msra.mxu0 0
    %243 = vmatpush.bf16.msra.mxu0 0
    %244 = vmatpush.bf16.msra.mxu0 0
    %245 = vmatpush.bf16.msra.mxu0 0
    %246 = vmatpush.bf16.msra.mxu0 0
    %247 = vmatpush.bf16.msra.mxu0 0
    %248 = vmatpush.bf16.msra.mxu0 %v144
    %249 = vmatpush.bf16.msra.mxu0 %v143
    %250 = vmatmul.bf16.gmra.mxu0 %v240
    %v251 = vpop.f32.mrf.mxu0
    %v252 = vadd.f32 %v127, %v251
    %v253 = vpop.f32.mrf.mxu0
    %254 = vdwg.mxu0
    %255 = vmatpush.bf16.msra.mxu0 0
    %256 = vmatpush.bf16.msra.mxu0 0
    %257 = vmatpush.bf16.msra.mxu0 0
    %258 = vmatpush.bf16.msra.mxu0 0
    %259 = vmatpush.bf16.msra.mxu0 0
    %260 = vmatpush.bf16.msra.mxu0 0
    %261 = vmatpush.bf16.msra.mxu0 %v173
    %262 = vmatpush.bf16.msra.mxu0 %v172
    %263 = vmatmul.bf16.gmra.mxu0 %v240
    %v264 = vpop.f32.mrf.mxu0
    %v265 = vadd.f32 %v128, %v264
    %v266 = vpop.f32.mrf.mxu0
    %267 = vdwg.mxu0
    %268 = vmatpush.bf16.msra.mxu0 0
    %269 = vmatpush.bf16.msra.mxu0 0
    %270 = vmatpush.bf16.msra.mxu0 0
    %271 = vmatpush.bf16.msra.mxu0 0
    %272 = vmatpush.bf16.msra.mxu0 0
    %273 = vmatpush.bf16.msra.mxu0 0
    %274 = vmatpush.bf16.msra.mxu0 %v198
    %275 = vmatpush.bf16.msra.mxu0 %v197
    %276 = vmatmul.bf16.gmra.mxu0 %v240
    %v277 = vpop.f32.mrf.mxu0
    %v278 = vadd.f32 %v129, %v277
    %v279 = vpop.f32.mrf.mxu0
    %280 = vdwg.mxu0
    %281 = vmatpush.bf16.msra.mxu0 0
    %282 = vmatpush.bf16.msra.mxu0 0
    %283 = vmatpush.bf16.msra.mxu0 0
    %284 = vmatpush.bf16.msra.mxu0 0
    %285 = vmatpush.bf16.msra.mxu0 0
    %286 = vmatpush.bf16.msra.mxu0 0
    %287 = vmatpush.bf16.msra.mxu0 %v223
    %288 = vmatpush.bf16.msra.mxu0 %v222
    %289 = vmatmul.bf16.gmra.mxu0 %v240
    %v290 = vpop.f32.mrf.mxu0
    %v291 = vadd.f32 %v130, %v290
    %v292 = vpop.f32.mrf.mxu0
    %293 = vdwg.mxu0
    %v294 = vpack.c.bf16 %v91, %v91
    %v295 = vpack.c.bf16 %v92, %v92
    %v296 = vld [vmem:[%s6] sm:$0xf]
    %v297 = vld [vmem:[%s6 + $0x4] sm:$0xf]
    %v298 = vld [vmem:[%s6 + $0x8] sm:$0xf]
    %v299 = vld [vmem:[%s6 + $0xc] sm:$0xf]
    %v300 = vld [vmem:[%s6 + $0x10] sm:$0xf]
    %v301 = vld [vmem:[%s6 + $0x14] sm:$0xf]
    %v302 = vld [vmem:[%s6 + $0x18] sm:$0xf]
    %v303 = vld [vmem:[%s6 + $0x1c] sm:$0xf]
    %v304 = vld [vmem:[%s6 + $0x20] sm:$0xf]
    %v305 = vld [vmem:[%s6 + $0x24] sm:$0xf]
    %v306 = vld [vmem:[%s6 + $0x28] sm:$0xf]
    %v307 = vld [vmem:[%s6 + $0x2c] sm:$0xf]
    %v308 = vld [vmem:[%s6 + $0x30] sm:$0xf]
    %v309 = vld [vmem:[%s6 + $0x34] sm:$0xf]
    %v310 = vld [vmem:[%s6 + $0x38] sm:$0xf]
    %v311 = vld [vmem:[%s6 + $0x3c] sm:$0xf]
    %v312 = vld [vmem:[%s7] sm:$0x1]
    %v313 = vld [vmem:[%s7 + $0x1] sm:$0x1]
    %v314 = vld [vmem:[%s7 + $0x2] sm:$0x1]
    %v315 = vld [vmem:[%s7 + $0x3] sm:$0x1]
    %v320 = vperm.slane %v312, 0
    %v321 = vperm.slane %v313, 0
    %v322 = vperm.slane %v314, 0
    %v323 = vperm.slane %v315, 0
    %v332 = vunpack.c.l.b16 %v296
    %v333 = vunpack.c.l.b16 %v297
    %v334 = vunpack.c.l.b16 %v298
    %v335 = vunpack.c.l.b16 %v299
    %v336 = vpack.c.b16 %v333, %v332
    %v337 = vpack.c.b16 %v335, %v334
    %v341 = vsel %vm147, %v294, 0
    %343 = vmatpush.bf16.msra.mxu0 0
    %344 = vmatpush.bf16.msra.mxu0 0
    %345 = vmatpush.bf16.msra.mxu0 0
    %346 = vmatpush.bf16.msra.mxu0 0
    %347 = vmatpush.bf16.msra.mxu0 0
    %348 = vmatpush.bf16.msra.mxu0 0
    %349 = vmatpush.bf16.msra.mxu0 %v337
    %350 = vmatpush.bf16.msra.mxu0 %v336
    %351 = vmatmul.bf16.gmra.mxu0 %v341
    %v352 = vpop.f32.mrf.mxu0
    %v353 = vadd.f32 %v320, %v352
    %v354 = vpop.f32.mrf.mxu0
    %355 = vdwg.mxu0
    %v360 = vunpack.c.l.b16 %v300
    %v361 = vunpack.c.l.b16 %v301
    %v362 = vunpack.c.l.b16 %v302
    %v363 = vunpack.c.l.b16 %v303
    %v364 = vpack.c.b16 %v361, %v360
    %v365 = vpack.c.b16 %v363, %v362
    %368 = vmatpush.bf16.msra.mxu0 0
    %369 = vmatpush.bf16.msra.mxu0 0
    %370 = vmatpush.bf16.msra.mxu0 0
    %371 = vmatpush.bf16.msra.mxu0 0
    %372 = vmatpush.bf16.msra.mxu0 0
    %373 = vmatpush.bf16.msra.mxu0 0
    %374 = vmatpush.bf16.msra.mxu0 %v365
    %375 = vmatpush.bf16.msra.mxu0 %v364
    %376 = vmatmul.bf16.gmra.mxu0 %v341
    %v377 = vpop.f32.mrf.mxu0
    %v378 = vadd.f32 %v321, %v377
    %v379 = vpop.f32.mrf.mxu0
    %380 = vdwg.mxu0
    %v385 = vunpack.c.l.b16 %v304
    %v386 = vunpack.c.l.b16 %v305
    %v387 = vunpack.c.l.b16 %v306
    %v388 = vunpack.c.l.b16 %v307
    %v389 = vpack.c.b16 %v386, %v385
    %v390 = vpack.c.b16 %v388, %v387
    %393 = vmatpush.bf16.msra.mxu0 0
    %394 = vmatpush.bf16.msra.mxu0 0
    %395 = vmatpush.bf16.msra.mxu0 0
    %396 = vmatpush.bf16.msra.mxu0 0
    %397 = vmatpush.bf16.msra.mxu0 0
    %398 = vmatpush.bf16.msra.mxu0 0
    %399 = vmatpush.bf16.msra.mxu0 %v390
    %400 = vmatpush.bf16.msra.mxu0 %v389
    %401 = vmatmul.bf16.gmra.mxu0 %v341
    %v402 = vpop.f32.mrf.mxu0
    %v403 = vadd.f32 %v322, %v402
    %v404 = vpop.f32.mrf.mxu0
    %405 = vdwg.mxu0
    %v410 = vunpack.c.l.b16 %v308
    %v411 = vunpack.c.l.b16 %v309
    %v412 = vunpack.c.l.b16 %v310
    %v413 = vunpack.c.l.b16 %v311
    %v414 = vpack.c.b16 %v411, %v410
    %v415 = vpack.c.b16 %v413, %v412
    %418 = vmatpush.bf16.msra.mxu0 0
    %419 = vmatpush.bf16.msra.mxu0 0
    %420 = vmatpush.bf16.msra.mxu0 0
    %421 = vmatpush.bf16.msra.mxu0 0
    %422 = vmatpush.bf16.msra.mxu0 0
    %423 = vmatpush.bf16.msra.mxu0 0
    %424 = vmatpush.bf16.msra.mxu0 %v415
    %425 = vmatpush.bf16.msra.mxu0 %v414
    %426 = vmatmul.bf16.gmra.mxu0 %v341
    %v427 = vpop.f32.mrf.mxu0
    %v428 = vadd.f32 %v323, %v427
    %v429 = vpop.f32.mrf.mxu0
    %430 = vdwg.mxu0
    %v432 = vsel %vm147, %v295, 0
    %434 = vmatpush.bf16.msra.mxu0 0
    %435 = vmatpush.bf16.msra.mxu0 0
    %436 = vmatpush.bf16.msra.mxu0 0
    %437 = vmatpush.bf16.msra.mxu0 0
    %438 = vmatpush.bf16.msra.mxu0 0
    %439 = vmatpush.bf16.msra.mxu0 0
    %440 = vmatpush.bf16.msra.mxu0 %v337
    %441 = vmatpush.bf16.msra.mxu0 %v336
    %442 = vmatmul.bf16.gmra.mxu0 %v432
    %v443 = vpop.f32.mrf.mxu0
    %v444 = vadd.f32 %v320, %v443
    %v445 = vpop.f32.mrf.mxu0
    %446 = vdwg.mxu0
    %447 = vmatpush.bf16.msra.mxu0 0
    %448 = vmatpush.bf16.msra.mxu0 0
    %449 = vmatpush.bf16.msra.mxu0 0
    %450 = vmatpush.bf16.msra.mxu0 0
    %451 = vmatpush.bf16.msra.mxu0 0
    %452 = vmatpush.bf16.msra.mxu0 0
    %453 = vmatpush.bf16.msra.mxu0 %v365
    %454 = vmatpush.bf16.msra.mxu0 %v364
    %455 = vmatmul.bf16.gmra.mxu0 %v432
    %v456 = vpop.f32.mrf.mxu0
    %v457 = vadd.f32 %v321, %v456
    %v458 = vpop.f32.mrf.mxu0
    %459 = vdwg.mxu0
    %460 = vmatpush.bf16.msra.mxu0 0
    %461 = vmatpush.bf16.msra.mxu0 0
    %462 = vmatpush.bf16.msra.mxu0 0
    %463 = vmatpush.bf16.msra.mxu0 0
    %464 = vmatpush.bf16.msra.mxu0 0
    %465 = vmatpush.bf16.msra.mxu0 0
    %466 = vmatpush.bf16.msra.mxu0 %v390
    %467 = vmatpush.bf16.msra.mxu0 %v389
    %468 = vmatmul.bf16.gmra.mxu0 %v432
    %v469 = vpop.f32.mrf.mxu0
    %v470 = vadd.f32 %v322, %v469
    %v471 = vpop.f32.mrf.mxu0
    %472 = vdwg.mxu0
    %473 = vmatpush.bf16.msra.mxu0 0
    %474 = vmatpush.bf16.msra.mxu0 0
    %475 = vmatpush.bf16.msra.mxu0 0
    %476 = vmatpush.bf16.msra.mxu0 0
    %477 = vmatpush.bf16.msra.mxu0 0
    %478 = vmatpush.bf16.msra.mxu0 0
    %479 = vmatpush.bf16.msra.mxu0 %v415
    %480 = vmatpush.bf16.msra.mxu0 %v414
    %481 = vmatmul.bf16.gmra.mxu0 %v432
    %v482 = vpop.f32.mrf.mxu0
    %v483 = vadd.f32 %v323, %v482
    %v484 = vpop.f32.mrf.mxu0
    %485 = vdwg.mxu0
    %v486 = vpack.c.bf16 %v161, %v161
    %v487 = vpack.c.bf16 %v186, %v186
    %v488 = vpack.c.bf16 %v211, %v211
    %v489 = vpack.c.bf16 %v236, %v236
    %v490 = vpack.c.bf16 %v252, %v252
    %v491 = vpack.c.bf16 %v265, %v265
    %v492 = vpack.c.bf16 %v278, %v278
    %v493 = vpack.c.bf16 %v291, %v291
    %v495 = vunpack.c.l.b16 %v486
    %v496 = vpack.c.b16 %v495, %v495
    %497 = vrot.lane.b32.xlu0 %v496, 120
    %v498 = vpop.permute.xlu0 %497
    %vm499 = vcmask 64512
    %v501 = vsel %vm499, %v486, 0
    %v504 = vsel %vm499, %v498, 0
    %506 = vmatpush.bf16.xpose.msra.mxu0 0
    %507 = vmatpush.bf16.xpose.msra.mxu0 0
    %508 = vmatpush.bf16.xpose.msra.mxu0 0
    %509 = vmatpush.bf16.xpose.msra.mxu0 0
    %510 = vmatpush.bf16.xpose.msra.mxu0 0
    %511 = vmatpush.bf16.xpose.msra.mxu0 0
    %512 = vmatpush.bf16.xpose.msra.mxu0 0
    %513 = vmatpush.bf16.xpose.msra.mxu0 %v504
    %514 = vmatmul.bf16.gmra.mxu0 %v501
    %v515 = vpop.f32.mrf.mxu0
    %v516 = vadd.f32 0.0, %v515
    %v517 = vpop.f32.mrf.mxu0
    %518 = vdwg.mxu0
    %v520 = vunpack.c.l.b16 %v487
    %v521 = vpack.c.b16 %v520, %v520
    %522 = vrot.lane.b32.xlu0 %v521, 120
    %v523 = vpop.permute.xlu0 %522
    %v525 = vsel %vm499, %v487, 0
    %v528 = vsel %vm499, %v523, 0
    %530 = vmatpush.bf16.xpose.msra.mxu0 0
    %531 = vmatpush.bf16.xpose.msra.mxu0 0
    %532 = vmatpush.bf16.xpose.msra.mxu0 0
    %533 = vmatpush.bf16.xpose.msra.mxu0 0
    %534 = vmatpush.bf16.xpose.msra.mxu0 0
    %535 = vmatpush.bf16.xpose.msra.mxu0 0
    %536 = vmatpush.bf16.xpose.msra.mxu0 0
    %537 = vmatpush.bf16.xpose.msra.mxu0 %v528
    %538 = vmatmul.bf16.gmra.mxu0 %v525
    %v539 = vpop.f32.mrf.mxu0
    %v540 = vadd.f32 0.0, %v539
    %v541 = vpop.f32.mrf.mxu0
    %542 = vdwg.mxu0
    %v544 = vunpack.c.l.b16 %v488
    %v545 = vpack.c.b16 %v544, %v544
    %546 = vrot.lane.b32.xlu0 %v545, 120
    %v547 = vpop.permute.xlu0 %546
    %v549 = vsel %vm499, %v488, 0
    %v552 = vsel %vm499, %v547, 0
    %554 = vmatpush.bf16.xpose.msra.mxu0 0
    %555 = vmatpush.bf16.xpose.msra.mxu0 0
    %556 = vmatpush.bf16.xpose.msra.mxu0 0
    %557 = vmatpush.bf16.xpose.msra.mxu0 0
    %558 = vmatpush.bf16.xpose.msra.mxu0 0
    %559 = vmatpush.bf16.xpose.msra.mxu0 0
    %560 = vmatpush.bf16.xpose.msra.mxu0 0
    %561 = vmatpush.bf16.xpose.msra.mxu0 %v552
    %562 = vmatmul.bf16.gmra.mxu0 %v549
    %v563 = vpop.f32.mrf.mxu0
    %v564 = vadd.f32 0.0, %v563
    %v565 = vpop.f32.mrf.mxu0
    %566 = vdwg.mxu0
    %v568 = vunpack.c.l.b16 %v489
    %v569 = vpack.c.b16 %v568, %v568
    %570 = vrot.lane.b32.xlu0 %v569, 120
    %v571 = vpop.permute.xlu0 %570
    %v573 = vsel %vm499, %v489, 0
    %v576 = vsel %vm499, %v571, 0
    %578 = vmatpush.bf16.xpose.msra.mxu0 0
    %579 = vmatpush.bf16.xpose.msra.mxu0 0
    %580 = vmatpush.bf16.xpose.msra.mxu0 0
    %581 = vmatpush.bf16.xpose.msra.mxu0 0
    %582 = vmatpush.bf16.xpose.msra.mxu0 0
    %583 = vmatpush.bf16.xpose.msra.mxu0 0
    %584 = vmatpush.bf16.xpose.msra.mxu0 0
    %585 = vmatpush.bf16.xpose.msra.mxu0 %v576
    %586 = vmatmul.bf16.gmra.mxu0 %v573
    %v587 = vpop.f32.mrf.mxu0
    %v588 = vadd.f32 0.0, %v587
    %v589 = vpop.f32.mrf.mxu0
    %590 = vdwg.mxu0
    %v592 = vunpack.c.l.b16 %v490
    %v593 = vpack.c.b16 %v592, %v592
    %594 = vrot.lane.b32.xlu0 %v593, 120
    %v595 = vpop.permute.xlu0 %594
    %v597 = vsel %vm499, %v490, 0
    %v600 = vsel %vm499, %v595, 0
    %602 = vmatpush.bf16.xpose.msra.mxu0 0
    %603 = vmatpush.bf16.xpose.msra.mxu0 0
    %604 = vmatpush.bf16.xpose.msra.mxu0 0
    %605 = vmatpush.bf16.xpose.msra.mxu0 0
    %606 = vmatpush.bf16.xpose.msra.mxu0 0
    %607 = vmatpush.bf16.xpose.msra.mxu0 0
    %608 = vmatpush.bf16.xpose.msra.mxu0 0
    %609 = vmatpush.bf16.xpose.msra.mxu0 %v600
    %610 = vmatmul.bf16.gmra.mxu0 %v597
    %v611 = vpop.f32.mrf.mxu0
    %v612 = vadd.f32 0.0, %v611
    %v613 = vpop.f32.mrf.mxu0
    %614 = vdwg.mxu0
    %v616 = vunpack.c.l.b16 %v491
    %v617 = vpack.c.b16 %v616, %v616
    %618 = vrot.lane.b32.xlu0 %v617, 120
    %v619 = vpop.permute.xlu0 %618
    %v621 = vsel %vm499, %v491, 0
    %v624 = vsel %vm499, %v619, 0
    %626 = vmatpush.bf16.xpose.msra.mxu0 0
    %627 = vmatpush.bf16.xpose.msra.mxu0 0
    %628 = vmatpush.bf16.xpose.msra.mxu0 0
    %629 = vmatpush.bf16.xpose.msra.mxu0 0
    %630 = vmatpush.bf16.xpose.msra.mxu0 0
    %631 = vmatpush.bf16.xpose.msra.mxu0 0
    %632 = vmatpush.bf16.xpose.msra.mxu0 0
    %633 = vmatpush.bf16.xpose.msra.mxu0 %v624
    %634 = vmatmul.bf16.gmra.mxu0 %v621
    %v635 = vpop.f32.mrf.mxu0
    %v636 = vadd.f32 0.0, %v635
    %v637 = vpop.f32.mrf.mxu0
    %638 = vdwg.mxu0
    %v640 = vunpack.c.l.b16 %v492
    %v641 = vpack.c.b16 %v640, %v640
    %642 = vrot.lane.b32.xlu0 %v641, 120
    %v643 = vpop.permute.xlu0 %642
    %v645 = vsel %vm499, %v492, 0
    %v648 = vsel %vm499, %v643, 0
    %650 = vmatpush.bf16.xpose.msra.mxu0 0
    %651 = vmatpush.bf16.xpose.msra.mxu0 0
    %652 = vmatpush.bf16.xpose.msra.mxu0 0
    %653 = vmatpush.bf16.xpose.msra.mxu0 0
    %654 = vmatpush.bf16.xpose.msra.mxu0 0
    %655 = vmatpush.bf16.xpose.msra.mxu0 0
    %656 = vmatpush.bf16.xpose.msra.mxu0 0
    %657 = vmatpush.bf16.xpose.msra.mxu0 %v648
    %658 = vmatmul.bf16.gmra.mxu0 %v645
    %v659 = vpop.f32.mrf.mxu0
    %v660 = vadd.f32 0.0, %v659
    %v661 = vpop.f32.mrf.mxu0
    %662 = vdwg.mxu0
    %v664 = vunpack.c.l.b16 %v493
    %v665 = vpack.c.b16 %v664, %v664
    %666 = vrot.lane.b32.xlu0 %v665, 120
    %v667 = vpop.permute.xlu0 %666
    %v669 = vsel %vm499, %v493, 0
    %v672 = vsel %vm499, %v667, 0
    %674 = vmatpush.bf16.xpose.msra.mxu0 0
    %675 = vmatpush.bf16.xpose.msra.mxu0 0
    %676 = vmatpush.bf16.xpose.msra.mxu0 0
    %677 = vmatpush.bf16.xpose.msra.mxu0 0
    %678 = vmatpush.bf16.xpose.msra.mxu0 0
    %679 = vmatpush.bf16.xpose.msra.mxu0 0
    %680 = vmatpush.bf16.xpose.msra.mxu0 0
    %681 = vmatpush.bf16.xpose.msra.mxu0 %v672
    %682 = vmatmul.bf16.gmra.mxu0 %v669
    %v683 = vpop.f32.mrf.mxu0
    %v684 = vadd.f32 0.0, %v683
    %v685 = vpop.f32.mrf.mxu0
    %686 = vdwg.mxu0
    %v687 = vsel %vm499, %v516, -inf
    %688 = vmax.xlane.f32.xlu0 %v687
    %v689 = vpop.xlane.xlu0 %688
    %v690 = vsel %vm499, %v540, -inf
    %691 = vmax.xlane.f32.xlu0 %v690
    %v692 = vpop.xlane.xlu0 %691
    %v693 = vsel %vm499, %v564, -inf
    %694 = vmax.xlane.f32.xlu0 %v693
    %v695 = vpop.xlane.xlu0 %694
    %v696 = vsel %vm499, %v588, -inf
    %697 = vmax.xlane.f32.xlu0 %v696
    %v698 = vpop.xlane.xlu0 %697
    %v699 = vsel %vm499, %v612, -inf
    %700 = vmax.xlane.f32.xlu0 %v699
    %v701 = vpop.xlane.xlu0 %700
    %v702 = vsel %vm499, %v636, -inf
    %703 = vmax.xlane.f32.xlu0 %v702
    %v704 = vpop.xlane.xlu0 %703
    %v705 = vsel %vm499, %v660, -inf
    %706 = vmax.xlane.f32.xlu0 %v705
    %v707 = vpop.xlane.xlu0 %706
    %v708 = vsel %vm499, %v684, -inf
    %709 = vmax.xlane.f32.xlu0 %v708
    %v710 = vpop.xlane.xlu0 %709
    %v711 = vsub.f32 %v516, %v689
    %v712 = vsub.f32 %v540, %v692
    %v713 = vsub.f32 %v564, %v695
    %v714 = vsub.f32 %v588, %v698
    %v715 = vsub.f32 %v612, %v701
    %v716 = vsub.f32 %v636, %v704
    %v717 = vsub.f32 %v660, %v707
    %v718 = vsub.f32 %v684, %v710
    %v719 = vmul.f32 %v711, 1.442695
    %v720 = vpow.pop %v719
    %v721 = vmul.f32 %v712, 1.442695
    %v722 = vpow.pop %v721
    %v723 = vmul.f32 %v713, 1.442695
    %v724 = vpow.pop %v723
    %v725 = vmul.f32 %v714, 1.442695
    %v726 = vpow.pop %v725
    %v727 = vmul.f32 %v715, 1.442695
    %v728 = vpow.pop %v727
    %v729 = vmul.f32 %v716, 1.442695
    %v730 = vpow.pop %v729
    %v731 = vmul.f32 %v717, 1.442695
    %v732 = vpow.pop %v731
    %v733 = vmul.f32 %v718, 1.442695
    %v734 = vpow.pop %v733
    %v735 = vsel %vm499, %v720, 0.0
    %736 = vadd.xlane.f32.xlu0 %v735
    %v737 = vpop.xlane.xlu0 %736
    %v738 = vsel %vm499, %v722, 0.0
    %739 = vadd.xlane.f32.xlu0 %v738
    %v740 = vpop.xlane.xlu0 %739
    %v741 = vsel %vm499, %v724, 0.0
    %742 = vadd.xlane.f32.xlu0 %v741
    %v743 = vpop.xlane.xlu0 %742
    %v744 = vsel %vm499, %v726, 0.0
    %745 = vadd.xlane.f32.xlu0 %v744
    %v746 = vpop.xlane.xlu0 %745
    %v747 = vsel %vm499, %v728, 0.0
    %748 = vadd.xlane.f32.xlu0 %v747
    %v749 = vpop.xlane.xlu0 %748
    %v750 = vsel %vm499, %v730, 0.0
    %751 = vadd.xlane.f32.xlu0 %v750
    %v752 = vpop.xlane.xlu0 %751
    %v753 = vsel %vm499, %v732, 0.0
    %754 = vadd.xlane.f32.xlu0 %v753
    %v755 = vpop.xlane.xlu0 %754
    %v756 = vsel %vm499, %v734, 0.0
    %757 = vadd.xlane.f32.xlu0 %v756
    %v758 = vpop.xlane.xlu0 %757
    %v759 = vrcp.pop %v737
    %v760 = vrcp.pop %v740
    %v761 = vrcp.pop %v743
    %v762 = vrcp.pop %v746
    %v763 = vrcp.pop %v749
    %v764 = vrcp.pop %v752
    %v765 = vrcp.pop %v755
    %v766 = vrcp.pop %v758
    %v767 = vmul.f32 %v720, %v759
    %v768 = vmul.f32 %v722, %v760
    %v769 = vmul.f32 %v724, %v761
    %v770 = vmul.f32 %v726, %v762
    %v771 = vmul.f32 %v728, %v763
    %v772 = vmul.f32 %v730, %v764
    %v773 = vmul.f32 %v732, %v765
    %v774 = vmul.f32 %v734, %v766
    %v775 = vpack.c.bf16 %v767, %v767
    %v776 = vpack.c.bf16 %v768, %v768
    %v777 = vpack.c.bf16 %v769, %v769
    %v778 = vpack.c.bf16 %v770, %v770
    %v779 = vpack.c.bf16 %v771, %v771
    %v780 = vpack.c.bf16 %v772, %v772
    %v781 = vpack.c.bf16 %v773, %v773
    %v782 = vpack.c.bf16 %v774, %v774
    %v783 = vpack.c.bf16 %v353, %v353
    %v784 = vpack.c.bf16 %v378, %v378
    %v785 = vpack.c.bf16 %v403, %v403
    %v786 = vpack.c.bf16 %v428, %v428
    %v787 = vpack.c.bf16 %v444, %v444
    %v788 = vpack.c.bf16 %v457, %v457
    %v789 = vpack.c.bf16 %v470, %v470
    %v790 = vpack.c.bf16 %v483, %v483
    %v792 = vsel %vm499, %v775, 0
    %vm794 = vcmask 1043456
    %v796 = vsel %vm794, %v783, 0
    %798 = vmatpush.bf16.msra.mxu0 0
    %799 = vmatpush.bf16.msra.mxu0 0
    %800 = vmatpush.bf16.msra.mxu0 0
    %801 = vmatpush.bf16.msra.mxu0 0
    %802 = vmatpush.bf16.msra.mxu0 0
    %803 = vmatpush.bf16.msra.mxu0 0
    %804 = vmatpush.bf16.msra.mxu0 0
    %805 = vmatpush.bf16.msra.mxu0 %v796
    %806 = vmatmul.bf16.gmra.mxu0 %v792
    %v807 = vpop.f32.mrf.mxu0
    %v808 = vadd.f32 0.0, %v807
    %v809 = vpop.f32.mrf.mxu0
    %810 = vdwg.mxu0
    %v812 = vsel %vm499, %v776, 0
    %v815 = vsel %vm794, %v784, 0
    %817 = vmatpush.bf16.msra.mxu0 0
    %818 = vmatpush.bf16.msra.mxu0 0
    %819 = vmatpush.bf16.msra.mxu0 0
    %820 = vmatpush.bf16.msra.mxu0 0
    %821 = vmatpush.bf16.msra.mxu0 0
    %822 = vmatpush.bf16.msra.mxu0 0
    %823 = vmatpush.bf16.msra.mxu0 0
    %824 = vmatpush.bf16.msra.mxu0 %v815
    %825 = vmatmul.bf16.gmra.mxu0 %v812
    %v826 = vpop.f32.mrf.mxu0
    %v827 = vadd.f32 0.0, %v826
    %v828 = vpop.f32.mrf.mxu0
    %829 = vdwg.mxu0
    %v831 = vsel %vm499, %v777, 0
    %v834 = vsel %vm794, %v785, 0
    %836 = vmatpush.bf16.msra.mxu0 0
    %837 = vmatpush.bf16.msra.mxu0 0
    %838 = vmatpush.bf16.msra.mxu0 0
    %839 = vmatpush.bf16.msra.mxu0 0
    %840 = vmatpush.bf16.msra.mxu0 0
    %841 = vmatpush.bf16.msra.mxu0 0
    %842 = vmatpush.bf16.msra.mxu0 0
    %843 = vmatpush.bf16.msra.mxu0 %v834
    %844 = vmatmul.bf16.gmra.mxu0 %v831
    %v845 = vpop.f32.mrf.mxu0
    %v846 = vadd.f32 0.0, %v845
    %v847 = vpop.f32.mrf.mxu0
    %848 = vdwg.mxu0
    %v850 = vsel %vm499, %v778, 0
    %v853 = vsel %vm794, %v786, 0
    %855 = vmatpush.bf16.msra.mxu0 0
    %856 = vmatpush.bf16.msra.mxu0 0
    %857 = vmatpush.bf16.msra.mxu0 0
    %858 = vmatpush.bf16.msra.mxu0 0
    %859 = vmatpush.bf16.msra.mxu0 0
    %860 = vmatpush.bf16.msra.mxu0 0
    %861 = vmatpush.bf16.msra.mxu0 0
    %862 = vmatpush.bf16.msra.mxu0 %v853
    %863 = vmatmul.bf16.gmra.mxu0 %v850
    %v864 = vpop.f32.mrf.mxu0
    %v865 = vadd.f32 0.0, %v864
    %v866 = vpop.f32.mrf.mxu0
    %867 = vdwg.mxu0
    %v869 = vsel %vm499, %v779, 0
    %v872 = vsel %vm794, %v787, 0
    %874 = vmatpush.bf16.msra.mxu0 0
    %875 = vmatpush.bf16.msra.mxu0 0
    %876 = vmatpush.bf16.msra.mxu0 0
    %877 = vmatpush.bf16.msra.mxu0 0
    %878 = vmatpush.bf16.msra.mxu0 0
    %879 = vmatpush.bf16.msra.mxu0 0
    %880 = vmatpush.bf16.msra.mxu0 0
    %881 = vmatpush.bf16.msra.mxu0 %v872
    %882 = vmatmul.bf16.gmra.mxu0 %v869
    %v883 = vpop.f32.mrf.mxu0
    %v884 = vadd.f32 0.0, %v883
    %v885 = vpop.f32.mrf.mxu0
    %886 = vdwg.mxu0
    %v888 = vsel %vm499, %v780, 0
    %v891 = vsel %vm794, %v788, 0
    %893 = vmatpush.bf16.msra.mxu0 0
    %894 = vmatpush.bf16.msra.mxu0 0
    %895 = vmatpush.bf16.msra.mxu0 0
    %896 = vmatpush.bf16.msra.mxu0 0
    %897 = vmatpush.bf16.msra.mxu0 0
    %898 = vmatpush.bf16.msra.mxu0 0
    %899 = vmatpush.bf16.msra.mxu0 0
    %900 = vmatpush.bf16.msra.mxu0 %v891
    %901 = vmatmul.bf16.gmra.mxu0 %v888
    %v902 = vpop.f32.mrf.mxu0
    %v903 = vadd.f32 0.0, %v902
    %v904 = vpop.f32.mrf.mxu0
    %905 = vdwg.mxu0
    %v907 = vsel %vm499, %v781, 0
    %v910 = vsel %vm794, %v789, 0
    %912 = vmatpush.bf16.msra.mxu0 0
    %913 = vmatpush.bf16.msra.mxu0 0
    %914 = vmatpush.bf16.msra.mxu0 0
    %915 = vmatpush.bf16.msra.mxu0 0
    %916 = vmatpush.bf16.msra.mxu0 0
    %917 = vmatpush.bf16.msra.mxu0 0
    %918 = vmatpush.bf16.msra.mxu0 0
    %919 = vmatpush.bf16.msra.mxu0 %v910
    %920 = vmatmul.bf16.gmra.mxu0 %v907
    %v921 = vpop.f32.mrf.mxu0
    %v922 = vadd.f32 0.0, %v921
    %v923 = vpop.f32.mrf.mxu0
    %924 = vdwg.mxu0
    %v926 = vsel %vm499, %v782, 0
    %v929 = vsel %vm794, %v790, 0
    %931 = vmatpush.bf16.msra.mxu0 0
    %932 = vmatpush.bf16.msra.mxu0 0
    %933 = vmatpush.bf16.msra.mxu0 0
    %934 = vmatpush.bf16.msra.mxu0 0
    %935 = vmatpush.bf16.msra.mxu0 0
    %936 = vmatpush.bf16.msra.mxu0 0
    %937 = vmatpush.bf16.msra.mxu0 0
    %938 = vmatpush.bf16.msra.mxu0 %v929
    %939 = vmatmul.bf16.gmra.mxu0 %v926
    %v940 = vpop.f32.mrf.mxu0
    %v941 = vadd.f32 0.0, %v940
    %v942 = vpop.f32.mrf.mxu0
    %943 = vdwg.mxu0
    %v944 = vld [vmem:[%s8] sm:$0xf]
    %v945 = vld [vmem:[%s8 + $0x4] sm:$0xf]
    %v946 = vld [vmem:[%s8 + $0x8] sm:$0xf]
    %v947 = vld [vmem:[%s8 + $0xc] sm:$0xf]
    %v948 = vpack.c.bf16 %v808, %v808
    %v949 = vpack.c.bf16 %v827, %v827
    %v950 = vpack.c.bf16 %v846, %v846
    %v951 = vpack.c.bf16 %v865, %v865
    %v952 = vpack.c.bf16 %v884, %v884
    %v953 = vpack.c.bf16 %v903, %v903
    %v954 = vpack.c.bf16 %v922, %v922
    %v955 = vpack.c.bf16 %v941, %v941
    %v957 = vsel %vm499, %v948, 0
    %v960 = vsel %vm794, %v944, 0
    %962 = vmatpush.bf16.msra.mxu0 0
    %963 = vmatpush.bf16.msra.mxu0 0
    %964 = vmatpush.bf16.msra.mxu0 0
    %965 = vmatpush.bf16.msra.mxu0 0
    %966 = vmatpush.bf16.msra.mxu0 0
    %967 = vmatpush.bf16.msra.mxu0 0
    %968 = vmatpush.bf16.msra.mxu0 0
    %969 = vmatpush.bf16.msra.mxu0 %v960
    %970 = vmatmul.bf16.gmra.mxu0 %v957
    %v971 = vpop.f32.mrf.mxu0
    %v972 = vadd.f32 0.0, %v971
    %v973 = vpop.f32.mrf.mxu0
    %974 = vdwg.mxu0
    %v976 = vsel %vm499, %v949, 0
    %v979 = vsel %vm794, %v945, 0
    %981 = vmatpush.bf16.msra.mxu0 0
    %982 = vmatpush.bf16.msra.mxu0 0
    %983 = vmatpush.bf16.msra.mxu0 0
    %984 = vmatpush.bf16.msra.mxu0 0
    %985 = vmatpush.bf16.msra.mxu0 0
    %986 = vmatpush.bf16.msra.mxu0 0
    %987 = vmatpush.bf16.msra.mxu0 0
    %988 = vmatpush.bf16.msra.mxu0 %v979
    %989 = vmatmul.bf16.gmra.mxu0 %v976
    %v990 = vpop.f32.mrf.mxu0
    %v991 = vadd.f32 0.0, %v990
    %v992 = vpop.f32.mrf.mxu0
    %993 = vdwg.mxu0
    %v995 = vsel %vm499, %v950, 0
    %v998 = vsel %vm794, %v946, 0
    %1000 = vmatpush.bf16.msra.mxu0 0
    %1001 = vmatpush.bf16.msra.mxu0 0
    %1002 = vmatpush.bf16.msra.mxu0 0
    %1003 = vmatpush.bf16.msra.mxu0 0
    %1004 = vmatpush.bf16.msra.mxu0 0
    %1005 = vmatpush.bf16.msra.mxu0 0
    %1006 = vmatpush.bf16.msra.mxu0 0
    %1007 = vmatpush.bf16.msra.mxu0 %v998
    %1008 = vmatmul.bf16.gmra.mxu0 %v995
    %v1009 = vpop.f32.mrf.mxu0
    %v1010 = vadd.f32 0.0, %v1009
    %v1011 = vpop.f32.mrf.mxu0
    %1012 = vdwg.mxu0
    %v1014 = vsel %vm499, %v951, 0
    %v1017 = vsel %vm794, %v947, 0
    %1019 = vmatpush.bf16.msra.mxu0 0
    %1020 = vmatpush.bf16.msra.mxu0 0
    %1021 = vmatpush.bf16.msra.mxu0 0
    %1022 = vmatpush.bf16.msra.mxu0 0
    %1023 = vmatpush.bf16.msra.mxu0 0
    %1024 = vmatpush.bf16.msra.mxu0 0
    %1025 = vmatpush.bf16.msra.mxu0 0
    %1026 = vmatpush.bf16.msra.mxu0 %v1017
    %1027 = vmatmul.bf16.gmra.mxu0 %v1014
    %v1028 = vpop.f32.mrf.mxu0
    %v1029 = vadd.f32 0.0, %v1028
    %v1030 = vpop.f32.mrf.mxu0
    %1031 = vdwg.mxu0
    %v1033 = vsel %vm499, %v952, 0
    %1035 = vmatpush.bf16.msra.mxu0 0
    %1036 = vmatpush.bf16.msra.mxu0 0
    %1037 = vmatpush.bf16.msra.mxu0 0
    %1038 = vmatpush.bf16.msra.mxu0 0
    %1039 = vmatpush.bf16.msra.mxu0 0
    %1040 = vmatpush.bf16.msra.mxu0 0
    %1041 = vmatpush.bf16.msra.mxu0 0
    %1042 = vmatpush.bf16.msra.mxu0 %v960
    %1043 = vmatmul.bf16.gmra.mxu0 %v1033
    %v1044 = vpop.f32.mrf.mxu0
    %v1045 = vadd.f32 0.0, %v1044
    %v1046 = vpop.f32.mrf.mxu0
    %1047 = vdwg.mxu0
    %v1049 = vsel %vm499, %v953, 0
    %1051 = vmatpush.bf16.msra.mxu0 0
    %1052 = vmatpush.bf16.msra.mxu0 0
    %1053 = vmatpush.bf16.msra.mxu0 0
    %1054 = vmatpush.bf16.msra.mxu0 0
    %1055 = vmatpush.bf16.msra.mxu0 0
    %1056 = vmatpush.bf16.msra.mxu0 0
    %1057 = vmatpush.bf16.msra.mxu0 0
    %1058 = vmatpush.bf16.msra.mxu0 %v979
    %1059 = vmatmul.bf16.gmra.mxu0 %v1049
    %v1060 = vpop.f32.mrf.mxu0
    %v1061 = vadd.f32 0.0, %v1060
    %v1062 = vpop.f32.mrf.mxu0
    %1063 = vdwg.mxu0
    %v1065 = vsel %vm499, %v954, 0
    %1067 = vmatpush.bf16.msra.mxu0 0
    %1068 = vmatpush.bf16.msra.mxu0 0
    %1069 = vmatpush.bf16.msra.mxu0 0
    %1070 = vmatpush.bf16.msra.mxu0 0
    %1071 = vmatpush.bf16.msra.mxu0 0
    %1072 = vmatpush.bf16.msra.mxu0 0
    %1073 = vmatpush.bf16.msra.mxu0 0
    %1074 = vmatpush.bf16.msra.mxu0 %v998
    %1075 = vmatmul.bf16.gmra.mxu0 %v1065
    %v1076 = vpop.f32.mrf.mxu0
    %v1077 = vadd.f32 0.0, %v1076
    %v1078 = vpop.f32.mrf.mxu0
    %1079 = vdwg.mxu0
    %v1081 = vsel %vm499, %v955, 0
    %1083 = vmatpush.bf16.msra.mxu0 0
    %1084 = vmatpush.bf16.msra.mxu0 0
    %1085 = vmatpush.bf16.msra.mxu0 0
    %1086 = vmatpush.bf16.msra.mxu0 0
    %1087 = vmatpush.bf16.msra.mxu0 0
    %1088 = vmatpush.bf16.msra.mxu0 0
    %1089 = vmatpush.bf16.msra.mxu0 0
    %1090 = vmatpush.bf16.msra.mxu0 %v1017
    %1091 = vmatmul.bf16.gmra.mxu0 %v1081
    %v1092 = vpop.f32.mrf.mxu0
    %v1093 = vadd.f32 0.0, %v1092
    %v1094 = vpop.f32.mrf.mxu0
    %1095 = vdwg.mxu0
    %v1096 = vsel %vm147, %v972, 0.0
    %v1097 = vsel %vm147, %v991, 0.0
    %v1098 = vadd.f32 %v1096, %v1097
    %v1099 = vsel %vm147, %v1010, 0.0
    %v1100 = vadd.f32 %v1098, %v1099
    %v1101 = vsel %vm147, %v1029, 0.0
    %v1102 = vadd.f32 %v1100, %v1101
    %v1103 = vsel %vm147, %v1045, 0.0
    %v1104 = vsel %vm147, %v1061, 0.0
    %v1105 = vadd.f32 %v1103, %v1104
    %v1106 = vsel %vm147, %v1077, 0.0
    %v1107 = vadd.f32 %v1105, %v1106
    %v1108 = vsel %vm147, %v1093, 0.0
    %v1109 = vadd.f32 %v1107, %v1108
    %v1110 = vld [vmem:[%s9] sm:$0x1]
    %v1112 = vperm.slane %v1110, 0
    %v1114 = vadd.f32 %v1102, %v1112
    %v1115 = vadd.f32 %v1109, %v1112
    %v1116 = vadd.f32 %v91, %v1114
    %v1117 = vadd.f32 %v92, %v1115
    %v1118 = vsel %vm147, %v1116, 0.0
    %1119 = vadd.xlane.f32.xlu0 %v1118
    %v1120 = vpop.xlane.xlu0 %1119
    %v1121 = vsel %vm147, %v1117, 0.0
    %1122 = vadd.xlane.f32.xlu0 %v1121
    %v1123 = vpop.xlane.xlu0 %1122
    %v1124 = vrcp.pop 32.0
    %v1125 = vmul.f32 32.0, %v1124
    %v1126 = vsub.f32 1.0, %v1125
    %v1127 = vmul.f32 %v1124, %v1126
    %v1128 = vadd.f32 %v1124, %v1127
    %vm1129 = vweird.f32 %v1124
    %v1130 = vsel %vm1129, %v1124, %v1128
    %v1131 = vmul.f32 %v1120, %v1130
    %v1132 = vmul.f32 %v1123, %v1130
    %v1133 = vsub.f32 %v1116, %v1131
    %v1134 = vsub.f32 %v1117, %v1132
    %v1135 = vmul.f32 %v1133, %v1133
    %v1136 = vmul.f32 %v1134, %v1134
    %v1137 = vsel %vm147, %v1135, 0.0
    %1138 = vadd.xlane.f32.xlu0 %v1137
    %v1139 = vpop.xlane.xlu0 %1138
    %v1140 = vsel %vm147, %v1136, 0.0
    %1141 = vadd.xlane.f32.xlu0 %v1140
    %v1142 = vpop.xlane.xlu0 %1141
    %v1143 = vmul.f32 %v1139, %v1130
    %v1144 = vmul.f32 %v1142, %v1130
    %v1145 = vadd.f32 %v1143, 1e-05
    %v1146 = vadd.f32 %v1144, 1e-05
    %v1147 = vrsqrt.pop %v1145
    %v1148 = vmul.f32 %v1147, %v1145
    %v1149 = vmul.f32 %v1148, %v1147
    %v1150 = vmul.f32 0.5, %v1149
    %v1151 = vsub.f32 1.5, %v1150
    %v1152 = vmul.f32 %v1147, %v1151
    %vm1153 = vweird.f32 %v1145
    %vm1154 = vweird.f32 %v1147
    %vm1155 = vmor %vm1153, %vm1154
    %v1156 = vsel %vm1155, %v1147, %v1152
    %v1157 = vrsqrt.pop %v1146
    %v1158 = vmul.f32 %v1157, %v1146
    %v1159 = vmul.f32 %v1158, %v1157
    %v1160 = vmul.f32 0.5, %v1159
    %v1161 = vsub.f32 1.5, %v1160
    %v1162 = vmul.f32 %v1157, %v1161
    %vm1163 = vweird.f32 %v1146
    %vm1164 = vweird.f32 %v1157
    %vm1165 = vmor %vm1163, %vm1164
    %v1166 = vsel %vm1165, %v1157, %v1162
    %v1167 = vmul.f32 %v1133, %v1156
    %v1168 = vmul.f32 %v1134, %v1166
    %v1169 = vld [vmem:[%s22] sm:$0x1]
    %v1171 = vperm.slane %v1169, 0
    %v1173 = vmul.f32 %v1167, %v1171
    %v1174 = vmul.f32 %v1168, %v1171
    %v1175 = vld [vmem:[%s23] sm:$0x1]
    %v1177 = vperm.slane %v1175, 0
    %v1179 = vadd.f32 %v1173, %v1177
    %v1180 = vadd.f32 %v1174, %v1177
    %v1181 = vadd.f32 %v1179, %v93
    %v1182 = vadd.f32 %v1180, %v94
    %v1183 = vpack.c.bf16 %v1181, %v1181
    %v1184 = vpack.c.bf16 %v1182, %v1182
    %v1185 = vld [vmem:[%s10] sm:$0xf]
    %v1186 = vld [vmem:[%s10 + $0x4] sm:$0xf]
    %v1187 = vld [vmem:[%s10 + $0x8] sm:$0xf]
    %v1188 = vld [vmem:[%s10 + $0xc] sm:$0xf]
    %v1189 = vld [vmem:[%s10 + $0x10] sm:$0xf]
    %v1190 = vld [vmem:[%s10 + $0x14] sm:$0xf]
    %v1191 = vld [vmem:[%s10 + $0x18] sm:$0xf]
    %v1192 = vld [vmem:[%s10 + $0x1c] sm:$0xf]
    %v1193 = vld [vmem:[%s10 + $0x20] sm:$0xf]
    %v1194 = vld [vmem:[%s10 + $0x24] sm:$0xf]
    %v1195 = vld [vmem:[%s10 + $0x28] sm:$0xf]
    %v1196 = vld [vmem:[%s10 + $0x2c] sm:$0xf]
    %v1197 = vld [vmem:[%s10 + $0x30] sm:$0xf]
    %v1198 = vld [vmem:[%s10 + $0x34] sm:$0xf]
    %v1199 = vld [vmem:[%s10 + $0x38] sm:$0xf]
    %v1200 = vld [vmem:[%s10 + $0x3c] sm:$0xf]
    %v1201 = vld [vmem:[%s11] sm:$0x1]
    %v1202 = vld [vmem:[%s11 + $0x1] sm:$0x1]
    %v1203 = vld [vmem:[%s11 + $0x2] sm:$0x1]
    %v1204 = vld [vmem:[%s11 + $0x3] sm:$0x1]
    %v1209 = vperm.slane %v1201, 0
    %v1210 = vperm.slane %v1202, 0
    %v1211 = vperm.slane %v1203, 0
    %v1212 = vperm.slane %v1204, 0
    %v1221 = vunpack.c.l.b16 %v1185
    %v1222 = vunpack.c.l.b16 %v1186
    %v1223 = vunpack.c.l.b16 %v1187
    %v1224 = vunpack.c.l.b16 %v1188
    %v1225 = vpack.c.b16 %v1222, %v1221
    %v1226 = vpack.c.b16 %v1224, %v1223
    %v1230 = vsel %vm147, %v1183, 0
    %1232 = vmatpush.bf16.msra.mxu0 0
    %1233 = vmatpush.bf16.msra.mxu0 0
    %1234 = vmatpush.bf16.msra.mxu0 0
    %1235 = vmatpush.bf16.msra.mxu0 0
    %1236 = vmatpush.bf16.msra.mxu0 0
    %1237 = vmatpush.bf16.msra.mxu0 0
    %1238 = vmatpush.bf16.msra.mxu0 %v1226
    %1239 = vmatpush.bf16.msra.mxu0 %v1225
    %1240 = vmatmul.bf16.gmra.mxu0 %v1230
    %v1241 = vpop.f32.mrf.mxu0
    %v1242 = vadd.f32 %v1209, %v1241
    %v1243 = vpop.f32.mrf.mxu0
    %1244 = vdwg.mxu0
    %v1249 = vunpack.c.l.b16 %v1189
    %v1250 = vunpack.c.l.b16 %v1190
    %v1251 = vunpack.c.l.b16 %v1191
    %v1252 = vunpack.c.l.b16 %v1192
    %v1253 = vpack.c.b16 %v1250, %v1249
    %v1254 = vpack.c.b16 %v1252, %v1251
    %1257 = vmatpush.bf16.msra.mxu0 0
    %1258 = vmatpush.bf16.msra.mxu0 0
    %1259 = vmatpush.bf16.msra.mxu0 0
    %1260 = vmatpush.bf16.msra.mxu0 0
    %1261 = vmatpush.bf16.msra.mxu0 0
    %1262 = vmatpush.bf16.msra.mxu0 0
    %1263 = vmatpush.bf16.msra.mxu0 %v1254
    %1264 = vmatpush.bf16.msra.mxu0 %v1253
    %1265 = vmatmul.bf16.gmra.mxu0 %v1230
    %v1266 = vpop.f32.mrf.mxu0
    %v1267 = vadd.f32 %v1210, %v1266
    %v1268 = vpop.f32.mrf.mxu0
    %1269 = vdwg.mxu0
    %v1274 = vunpack.c.l.b16 %v1193
    %v1275 = vunpack.c.l.b16 %v1194
    %v1276 = vunpack.c.l.b16 %v1195
    %v1277 = vunpack.c.l.b16 %v1196
    %v1278 = vpack.c.b16 %v1275, %v1274
    %v1279 = vpack.c.b16 %v1277, %v1276
    %1282 = vmatpush.bf16.msra.mxu0 0
    %1283 = vmatpush.bf16.msra.mxu0 0
    %1284 = vmatpush.bf16.msra.mxu0 0
    %1285 = vmatpush.bf16.msra.mxu0 0
    %1286 = vmatpush.bf16.msra.mxu0 0
    %1287 = vmatpush.bf16.msra.mxu0 0
    %1288 = vmatpush.bf16.msra.mxu0 %v1279
    %1289 = vmatpush.bf16.msra.mxu0 %v1278
    %1290 = vmatmul.bf16.gmra.mxu0 %v1230
    %v1291 = vpop.f32.mrf.mxu0
    %v1292 = vadd.f32 %v1211, %v1291
    %v1293 = vpop.f32.mrf.mxu0
    %1294 = vdwg.mxu0
    %v1299 = vunpack.c.l.b16 %v1197
    %v1300 = vunpack.c.l.b16 %v1198
    %v1301 = vunpack.c.l.b16 %v1199
    %v1302 = vunpack.c.l.b16 %v1200
    %v1303 = vpack.c.b16 %v1300, %v1299
    %v1304 = vpack.c.b16 %v1302, %v1301
    %1307 = vmatpush.bf16.msra.mxu0 0
    %1308 = vmatpush.bf16.msra.mxu0 0
    %1309 = vmatpush.bf16.msra.mxu0 0
    %1310 = vmatpush.bf16.msra.mxu0 0
    %1311 = vmatpush.bf16.msra.mxu0 0
    %1312 = vmatpush.bf16.msra.mxu0 0
    %1313 = vmatpush.bf16.msra.mxu0 %v1304
    %1314 = vmatpush.bf16.msra.mxu0 %v1303
    %1315 = vmatmul.bf16.gmra.mxu0 %v1230
    %v1316 = vpop.f32.mrf.mxu0
    %v1317 = vadd.f32 %v1212, %v1316
    %v1318 = vpop.f32.mrf.mxu0
    %1319 = vdwg.mxu0
    %v1321 = vsel %vm147, %v1184, 0
    %1323 = vmatpush.bf16.msra.mxu0 0
    %1324 = vmatpush.bf16.msra.mxu0 0
    %1325 = vmatpush.bf16.msra.mxu0 0
    %1326 = vmatpush.bf16.msra.mxu0 0
    %1327 = vmatpush.bf16.msra.mxu0 0
    %1328 = vmatpush.bf16.msra.mxu0 0
    %1329 = vmatpush.bf16.msra.mxu0 %v1226
    %1330 = vmatpush.bf16.msra.mxu0 %v1225
    %1331 = vmatmul.bf16.gmra.mxu0 %v1321
    %v1332 = vpop.f32.mrf.mxu0
    %v1333 = vadd.f32 %v1209, %v1332
    %v1334 = vpop.f32.mrf.mxu0
    %1335 = vdwg.mxu0
    %1336 = vmatpush.bf16.msra.mxu0 0
    %1337 = vmatpush.bf16.msra.mxu0 0
    %1338 = vmatpush.bf16.msra.mxu0 0
    %1339 = vmatpush.bf16.msra.mxu0 0
    %1340 = vmatpush.bf16.msra.mxu0 0
    %1341 = vmatpush.bf16.msra.mxu0 0
    %1342 = vmatpush.bf16.msra.mxu0 %v1254
    %1343 = vmatpush.bf16.msra.mxu0 %v1253
    %1344 = vmatmul.bf16.gmra.mxu0 %v1321
    %v1345 = vpop.f32.mrf.mxu0
    %v1346 = vadd.f32 %v1210, %v1345
    %v1347 = vpop.f32.mrf.mxu0
    %1348 = vdwg.mxu0
    %1349 = vmatpush.bf16.msra.mxu0 0
    %1350 = vmatpush.bf16.msra.mxu0 0
    %1351 = vmatpush.bf16.msra.mxu0 0
    %1352 = vmatpush.bf16.msra.mxu0 0
    %1353 = vmatpush.bf16.msra.mxu0 0
    %1354 = vmatpush.bf16.msra.mxu0 0
    %1355 = vmatpush.bf16.msra.mxu0 %v1279
    %1356 = vmatpush.bf16.msra.mxu0 %v1278
    %1357 = vmatmul.bf16.gmra.mxu0 %v1321
    %v1358 = vpop.f32.mrf.mxu0
    %v1359 = vadd.f32 %v1211, %v1358
    %v1360 = vpop.f32.mrf.mxu0
    %1361 = vdwg.mxu0
    %1362 = vmatpush.bf16.msra.mxu0 0
    %1363 = vmatpush.bf16.msra.mxu0 0
    %1364 = vmatpush.bf16.msra.mxu0 0
    %1365 = vmatpush.bf16.msra.mxu0 0
    %1366 = vmatpush.bf16.msra.mxu0 0
    %1367 = vmatpush.bf16.msra.mxu0 0
    %1368 = vmatpush.bf16.msra.mxu0 %v1304
    %1369 = vmatpush.bf16.msra.mxu0 %v1303
    %1370 = vmatmul.bf16.gmra.mxu0 %v1321
    %v1371 = vpop.f32.mrf.mxu0
    %v1372 = vadd.f32 %v1212, %v1371
    %v1373 = vpop.f32.mrf.mxu0
    %1374 = vdwg.mxu0
    %v1375 = vadd.f32 %v95, %v97
    %v1376 = vadd.f32 %v96, %v98
    %v1377 = vpack.c.bf16 %v1375, %v1375
    %v1378 = vpack.c.bf16 %v1376, %v1376
    %v1379 = vld [vmem:[%s12] sm:$0xf]
    %v1380 = vld [vmem:[%s12 + $0x4] sm:$0xf]
    %v1381 = vld [vmem:[%s12 + $0x8] sm:$0xf]
    %v1382 = vld [vmem:[%s12 + $0xc] sm:$0xf]
    %v1383 = vld [vmem:[%s12 + $0x10] sm:$0xf]
    %v1384 = vld [vmem:[%s12 + $0x14] sm:$0xf]
    %v1385 = vld [vmem:[%s12 + $0x18] sm:$0xf]
    %v1386 = vld [vmem:[%s12 + $0x1c] sm:$0xf]
    %v1387 = vld [vmem:[%s12 + $0x20] sm:$0xf]
    %v1388 = vld [vmem:[%s12 + $0x24] sm:$0xf]
    %v1389 = vld [vmem:[%s12 + $0x28] sm:$0xf]
    %v1390 = vld [vmem:[%s12 + $0x2c] sm:$0xf]
    %v1391 = vld [vmem:[%s12 + $0x30] sm:$0xf]
    %v1392 = vld [vmem:[%s12 + $0x34] sm:$0xf]
    %v1393 = vld [vmem:[%s12 + $0x38] sm:$0xf]
    %v1394 = vld [vmem:[%s12 + $0x3c] sm:$0xf]
    %v1395 = vld [vmem:[%s13] sm:$0x1]
    %v1396 = vld [vmem:[%s13 + $0x1] sm:$0x1]
    %v1397 = vld [vmem:[%s13 + $0x2] sm:$0x1]
    %v1398 = vld [vmem:[%s13 + $0x3] sm:$0x1]
    %v1403 = vperm.slane %v1395, 0
    %v1404 = vperm.slane %v1396, 0
    %v1405 = vperm.slane %v1397, 0
    %v1406 = vperm.slane %v1398, 0
    %v1415 = vunpack.c.l.b16 %v1379
    %v1416 = vunpack.c.l.b16 %v1380
    %v1417 = vunpack.c.l.b16 %v1381
    %v1418 = vunpack.c.l.b16 %v1382
    %v1419 = vpack.c.b16 %v1416, %v1415
    %v1420 = vpack.c.b16 %v1418, %v1417
    %v1424 = vsel %vm147, %v1377, 0
    %1426 = vmatpush.bf16.msra.mxu0 0
    %1427 = vmatpush.bf16.msra.mxu0 0
    %1428 = vmatpush.bf16.msra.mxu0 0
    %1429 = vmatpush.bf16.msra.mxu0 0
    %1430 = vmatpush.bf16.msra.mxu0 0
    %1431 = vmatpush.bf16.msra.mxu0 0
    %1432 = vmatpush.bf16.msra.mxu0 %v1420
    %1433 = vmatpush.bf16.msra.mxu0 %v1419
    %1434 = vmatmul.bf16.gmra.mxu0 %v1424
    %v1435 = vpop.f32.mrf.mxu0
    %v1436 = vadd.f32 %v1403, %v1435
    %v1437 = vpop.f32.mrf.mxu0
    %1438 = vdwg.mxu0
    %v1443 = vunpack.c.l.b16 %v1383
    %v1444 = vunpack.c.l.b16 %v1384
    %v1445 = vunpack.c.l.b16 %v1385
    %v1446 = vunpack.c.l.b16 %v1386
    %v1447 = vpack.c.b16 %v1444, %v1443
    %v1448 = vpack.c.b16 %v1446, %v1445
    %1451 = vmatpush.bf16.msra.mxu0 0
    %1452 = vmatpush.bf16.msra.mxu0 0
    %1453 = vmatpush.bf16.msra.mxu0 0
    %1454 = vmatpush.bf16.msra.mxu0 0
    %1455 = vmatpush.bf16.msra.mxu0 0
    %1456 = vmatpush.bf16.msra.mxu0 0
    %1457 = vmatpush.bf16.msra.mxu0 %v1448
    %1458 = vmatpush.bf16.msra.mxu0 %v1447
    %1459 = vmatmul.bf16.gmra.mxu0 %v1424
    %v1460 = vpop.f32.mrf.mxu0
    %v1461 = vadd.f32 %v1404, %v1460
    %v1462 = vpop.f32.mrf.mxu0
    %1463 = vdwg.mxu0
    %v1468 = vunpack.c.l.b16 %v1387
    %v1469 = vunpack.c.l.b16 %v1388
    %v1470 = vunpack.c.l.b16 %v1389
    %v1471 = vunpack.c.l.b16 %v1390
    %v1472 = vpack.c.b16 %v1469, %v1468
    %v1473 = vpack.c.b16 %v1471, %v1470
    %1476 = vmatpush.bf16.msra.mxu0 0
    %1477 = vmatpush.bf16.msra.mxu0 0
    %1478 = vmatpush.bf16.msra.mxu0 0
    %1479 = vmatpush.bf16.msra.mxu0 0
    %1480 = vmatpush.bf16.msra.mxu0 0
    %1481 = vmatpush.bf16.msra.mxu0 0
    %1482 = vmatpush.bf16.msra.mxu0 %v1473
    %1483 = vmatpush.bf16.msra.mxu0 %v1472
    %1484 = vmatmul.bf16.gmra.mxu0 %v1424
    %v1485 = vpop.f32.mrf.mxu0
    %v1486 = vadd.f32 %v1405, %v1485
    %v1487 = vpop.f32.mrf.mxu0
    %1488 = vdwg.mxu0
    %v1493 = vunpack.c.l.b16 %v1391
    %v1494 = vunpack.c.l.b16 %v1392
    %v1495 = vunpack.c.l.b16 %v1393
    %v1496 = vunpack.c.l.b16 %v1394
    %v1497 = vpack.c.b16 %v1494, %v1493
    %v1498 = vpack.c.b16 %v1496, %v1495
    %1501 = vmatpush.bf16.msra.mxu0 0
    %1502 = vmatpush.bf16.msra.mxu0 0
    %1503 = vmatpush.bf16.msra.mxu0 0
    %1504 = vmatpush.bf16.msra.mxu0 0
    %1505 = vmatpush.bf16.msra.mxu0 0
    %1506 = vmatpush.bf16.msra.mxu0 0
    %1507 = vmatpush.bf16.msra.mxu0 %v1498
    %1508 = vmatpush.bf16.msra.mxu0 %v1497
    %1509 = vmatmul.bf16.gmra.mxu0 %v1424
    %v1510 = vpop.f32.mrf.mxu0
    %v1511 = vadd.f32 %v1406, %v1510
    %v1512 = vpop.f32.mrf.mxu0
    %1513 = vdwg.mxu0
    %v1515 = vsel %vm147, %v1378, 0
    %1517 = vmatpush.bf16.msra.mxu0 0
    %1518 = vmatpush.bf16.msra.mxu0 0
    %1519 = vmatpush.bf16.msra.mxu0 0
    %1520 = vmatpush.bf16.msra.mxu0 0
    %1521 = vmatpush.bf16.msra.mxu0 0
    %1522 = vmatpush.bf16.msra.mxu0 0
    %1523 = vmatpush.bf16.msra.mxu0 %v1420
    %1524 = vmatpush.bf16.msra.mxu0 %v1419
    %1525 = vmatmul.bf16.gmra.mxu0 %v1515
    %v1526 = vpop.f32.mrf.mxu0
    %v1527 = vadd.f32 %v1403, %v1526
    %v1528 = vpop.f32.mrf.mxu0
    %1529 = vdwg.mxu0
    %1530 = vmatpush.bf16.msra.mxu0 0
    %1531 = vmatpush.bf16.msra.mxu0 0
    %1532 = vmatpush.bf16.msra.mxu0 0
    %1533 = vmatpush.bf16.msra.mxu0 0
    %1534 = vmatpush.bf16.msra.mxu0 0
    %1535 = vmatpush.bf16.msra.mxu0 0
    %1536 = vmatpush.bf16.msra.mxu0 %v1448
    %1537 = vmatpush.bf16.msra.mxu0 %v1447
    %1538 = vmatmul.bf16.gmra.mxu0 %v1515
    %v1539 = vpop.f32.mrf.mxu0
    %v1540 = vadd.f32 %v1404, %v1539
    %v1541 = vpop.f32.mrf.mxu0
    %1542 = vdwg.mxu0
    %1543 = vmatpush.bf16.msra.mxu0 0
    %1544 = vmatpush.bf16.msra.mxu0 0
    %1545 = vmatpush.bf16.msra.mxu0 0
    %1546 = vmatpush.bf16.msra.mxu0 0
    %1547 = vmatpush.bf16.msra.mxu0 0
    %1548 = vmatpush.bf16.msra.mxu0 0
    %1549 = vmatpush.bf16.msra.mxu0 %v1473
    %1550 = vmatpush.bf16.msra.mxu0 %v1472
    %1551 = vmatmul.bf16.gmra.mxu0 %v1515
    %v1552 = vpop.f32.mrf.mxu0
    %v1553 = vadd.f32 %v1405, %v1552
    %v1554 = vpop.f32.mrf.mxu0
    %1555 = vdwg.mxu0
    %1556 = vmatpush.bf16.msra.mxu0 0
    %1557 = vmatpush.bf16.msra.mxu0 0
    %1558 = vmatpush.bf16.msra.mxu0 0
    %1559 = vmatpush.bf16.msra.mxu0 0
    %1560 = vmatpush.bf16.msra.mxu0 0
    %1561 = vmatpush.bf16.msra.mxu0 0
    %1562 = vmatpush.bf16.msra.mxu0 %v1498
    %1563 = vmatpush.bf16.msra.mxu0 %v1497
    %1564 = vmatmul.bf16.gmra.mxu0 %v1515
    %v1565 = vpop.f32.mrf.mxu0
    %v1566 = vadd.f32 %v1406, %v1565
    %v1567 = vpop.f32.mrf.mxu0
    %1568 = vdwg.mxu0
    %v1569 = vpack.c.bf16 %v95, %v95
    %v1570 = vpack.c.bf16 %v96, %v96
    %v1571 = vld [vmem:[%s14] sm:$0xf]
    %v1572 = vld [vmem:[%s14 + $0x4] sm:$0xf]
    %v1573 = vld [vmem:[%s14 + $0x8] sm:$0xf]
    %v1574 = vld [vmem:[%s14 + $0xc] sm:$0xf]
    %v1575 = vld [vmem:[%s14 + $0x10] sm:$0xf]
    %v1576 = vld [vmem:[%s14 + $0x14] sm:$0xf]
    %v1577 = vld [vmem:[%s14 + $0x18] sm:$0xf]
    %v1578 = vld [vmem:[%s14 + $0x1c] sm:$0xf]
    %v1579 = vld [vmem:[%s14 + $0x20] sm:$0xf]
    %v1580 = vld [vmem:[%s14 + $0x24] sm:$0xf]
    %v1581 = vld [vmem:[%s14 + $0x28] sm:$0xf]
    %v1582 = vld [vmem:[%s14 + $0x2c] sm:$0xf]
    %v1583 = vld [vmem:[%s14 + $0x30] sm:$0xf]
    %v1584 = vld [vmem:[%s14 + $0x34] sm:$0xf]
    %v1585 = vld [vmem:[%s14 + $0x38] sm:$0xf]
    %v1586 = vld [vmem:[%s14 + $0x3c] sm:$0xf]
    %v1587 = vld [vmem:[%s15] sm:$0x1]
    %v1588 = vld [vmem:[%s15 + $0x1] sm:$0x1]
    %v1589 = vld [vmem:[%s15 + $0x2] sm:$0x1]
    %v1590 = vld [vmem:[%s15 + $0x3] sm:$0x1]
    %v1595 = vperm.slane %v1587, 0
    %v1596 = vperm.slane %v1588, 0
    %v1597 = vperm.slane %v1589, 0
    %v1598 = vperm.slane %v1590, 0
    %v1607 = vunpack.c.l.b16 %v1571
    %v1608 = vunpack.c.l.b16 %v1572
    %v1609 = vunpack.c.l.b16 %v1573
    %v1610 = vunpack.c.l.b16 %v1574
    %v1611 = vpack.c.b16 %v1608, %v1607
    %v1612 = vpack.c.b16 %v1610, %v1609
    %v1616 = vsel %vm147, %v1569, 0
    %1618 = vmatpush.bf16.msra.mxu0 0
    %1619 = vmatpush.bf16.msra.mxu0 0
    %1620 = vmatpush.bf16.msra.mxu0 0
    %1621 = vmatpush.bf16.msra.mxu0 0
    %1622 = vmatpush.bf16.msra.mxu0 0
    %1623 = vmatpush.bf16.msra.mxu0 0
    %1624 = vmatpush.bf16.msra.mxu0 %v1612
    %1625 = vmatpush.bf16.msra.mxu0 %v1611
    %1626 = vmatmul.bf16.gmra.mxu0 %v1616
    %v1627 = vpop.f32.mrf.mxu0
    %v1628 = vadd.f32 %v1595, %v1627
    %v1629 = vpop.f32.mrf.mxu0
    %1630 = vdwg.mxu0
    %v1635 = vunpack.c.l.b16 %v1575
    %v1636 = vunpack.c.l.b16 %v1576
    %v1637 = vunpack.c.l.b16 %v1577
    %v1638 = vunpack.c.l.b16 %v1578
    %v1639 = vpack.c.b16 %v1636, %v1635
    %v1640 = vpack.c.b16 %v1638, %v1637
    %1643 = vmatpush.bf16.msra.mxu0 0
    %1644 = vmatpush.bf16.msra.mxu0 0
    %1645 = vmatpush.bf16.msra.mxu0 0
    %1646 = vmatpush.bf16.msra.mxu0 0
    %1647 = vmatpush.bf16.msra.mxu0 0
    %1648 = vmatpush.bf16.msra.mxu0 0
    %1649 = vmatpush.bf16.msra.mxu0 %v1640
    %1650 = vmatpush.bf16.msra.mxu0 %v1639
    %1651 = vmatmul.bf16.gmra.mxu0 %v1616
    %v1652 = vpop.f32.mrf.mxu0
    %v1653 = vadd.f32 %v1596, %v1652
    %v1654 = vpop.f32.mrf.mxu0
    %1655 = vdwg.mxu0
    %v1660 = vunpack.c.l.b16 %v1579
    %v1661 = vunpack.c.l.b16 %v1580
    %v1662 = vunpack.c.l.b16 %v1581
    %v1663 = vunpack.c.l.b16 %v1582
    %v1664 = vpack.c.b16 %v1661, %v1660
    %v1665 = vpack.c.b16 %v1663, %v1662
    %1668 = vmatpush.bf16.msra.mxu0 0
    %1669 = vmatpush.bf16.msra.mxu0 0
    %1670 = vmatpush.bf16.msra.mxu0 0
    %1671 = vmatpush.bf16.msra.mxu0 0
    %1672 = vmatpush.bf16.msra.mxu0 0
    %1673 = vmatpush.bf16.msra.mxu0 0
    %1674 = vmatpush.bf16.msra.mxu0 %v1665
    %1675 = vmatpush.bf16.msra.mxu0 %v1664
    %1676 = vmatmul.bf16.gmra.mxu0 %v1616
    %v1677 = vpop.f32.mrf.mxu0
    %v1678 = vadd.f32 %v1597, %v1677
    %v1679 = vpop.f32.mrf.mxu0
    %1680 = vdwg.mxu0
    %v1685 = vunpack.c.l.b16 %v1583
    %v1686 = vunpack.c.l.b16 %v1584
    %v1687 = vunpack.c.l.b16 %v1585
    %v1688 = vunpack.c.l.b16 %v1586
    %v1689 = vpack.c.b16 %v1686, %v1685
    %v1690 = vpack.c.b16 %v1688, %v1687
    %1693 = vmatpush.bf16.msra.mxu0 0
    %1694 = vmatpush.bf16.msra.mxu0 0
    %1695 = vmatpush.bf16.msra.mxu0 0
    %1696 = vmatpush.bf16.msra.mxu0 0
    %1697 = vmatpush.bf16.msra.mxu0 0
    %1698 = vmatpush.bf16.msra.mxu0 0
    %1699 = vmatpush.bf16.msra.mxu0 %v1690
    %1700 = vmatpush.bf16.msra.mxu0 %v1689
    %1701 = vmatmul.bf16.gmra.mxu0 %v1616
    %v1702 = vpop.f32.mrf.mxu0
    %v1703 = vadd.f32 %v1598, %v1702
    %v1704 = vpop.f32.mrf.mxu0
    %1705 = vdwg.mxu0
    %v1707 = vsel %vm147, %v1570, 0
    %1709 = vmatpush.bf16.msra.mxu0 0
    %1710 = vmatpush.bf16.msra.mxu0 0
    %1711 = vmatpush.bf16.msra.mxu0 0
    %1712 = vmatpush.bf16.msra.mxu0 0
    %1713 = vmatpush.bf16.msra.mxu0 0
    %1714 = vmatpush.bf16.msra.mxu0 0
    %1715 = vmatpush.bf16.msra.mxu0 %v1612
    %1716 = vmatpush.bf16.msra.mxu0 %v1611
    %1717 = vmatmul.bf16.gmra.mxu0 %v1707
    %v1718 = vpop.f32.mrf.mxu0
    %v1719 = vadd.f32 %v1595, %v1718
    %v1720 = vpop.f32.mrf.mxu0
    %1721 = vdwg.mxu0
    %1722 = vmatpush.bf16.msra.mxu0 0
    %1723 = vmatpush.bf16.msra.mxu0 0
    %1724 = vmatpush.bf16.msra.mxu0 0
    %1725 = vmatpush.bf16.msra.mxu0 0
    %1726 = vmatpush.bf16.msra.mxu0 0
    %1727 = vmatpush.bf16.msra.mxu0 0
    %1728 = vmatpush.bf16.msra.mxu0 %v1640
    %1729 = vmatpush.bf16.msra.mxu0 %v1639
    %1730 = vmatmul.bf16.gmra.mxu0 %v1707
    %v1731 = vpop.f32.mrf.mxu0
    %v1732 = vadd.f32 %v1596, %v1731
    %v1733 = vpop.f32.mrf.mxu0
    %1734 = vdwg.mxu0
    %1735 = vmatpush.bf16.msra.mxu0 0
    %1736 = vmatpush.bf16.msra.mxu0 0
    %1737 = vmatpush.bf16.msra.mxu0 0
    %1738 = vmatpush.bf16.msra.mxu0 0
    %1739 = vmatpush.bf16.msra.mxu0 0
    %1740 = vmatpush.bf16.msra.mxu0 0
    %1741 = vmatpush.bf16.msra.mxu0 %v1665
    %1742 = vmatpush.bf16.msra.mxu0 %v1664
    %1743 = vmatmul.bf16.gmra.mxu0 %v1707
    %v1744 = vpop.f32.mrf.mxu0
    %v1745 = vadd.f32 %v1597, %v1744
    %v1746 = vpop.f32.mrf.mxu0
    %1747 = vdwg.mxu0
    %1748 = vmatpush.bf16.msra.mxu0 0
    %1749 = vmatpush.bf16.msra.mxu0 0
    %1750 = vmatpush.bf16.msra.mxu0 0
    %1751 = vmatpush.bf16.msra.mxu0 0
    %1752 = vmatpush.bf16.msra.mxu0 0
    %1753 = vmatpush.bf16.msra.mxu0 0
    %1754 = vmatpush.bf16.msra.mxu0 %v1690
    %1755 = vmatpush.bf16.msra.mxu0 %v1689
    %1756 = vmatmul.bf16.gmra.mxu0 %v1707
    %v1757 = vpop.f32.mrf.mxu0
    %v1758 = vadd.f32 %v1598, %v1757
    %v1759 = vpop.f32.mrf.mxu0
    %1760 = vdwg.mxu0
    %v1761 = vpack.c.bf16 %v1242, %v1242
    %v1762 = vpack.c.bf16 %v1267, %v1267
    %v1763 = vpack.c.bf16 %v1292, %v1292
    %v1764 = vpack.c.bf16 %v1317, %v1317
    %v1765 = vpack.c.bf16 %v1333, %v1333
    %v1766 = vpack.c.bf16 %v1346, %v1346
    %v1767 = vpack.c.bf16 %v1359, %v1359
    %v1768 = vpack.c.bf16 %v1372, %v1372
    %v1769 = vpack.c.bf16 %v1436, %v1436
    %v1770 = vpack.c.bf16 %v1461, %v1461
    %v1771 = vpack.c.bf16 %v1486, %v1486
    %v1772 = vpack.c.bf16 %v1511, %v1511
    %v1773 = vpack.c.bf16 %v1527, %v1527
    %v1774 = vpack.c.bf16 %v1540, %v1540
    %v1775 = vpack.c.bf16 %v1553, %v1553
    %v1776 = vpack.c.bf16 %v1566, %v1566
    %v1778 = vsel %vm499, %v1761, 0
    %v1781 = vsel %vm499, %v1769, 0
    %1783 = vmatpush.bf16.xpose.msra.mxu0 0
    %1784 = vmatpush.bf16.xpose.msra.mxu0 0
    %1785 = vmatpush.bf16.xpose.msra.mxu0 0
    %1786 = vmatpush.bf16.xpose.msra.mxu0 0
    %1787 = vmatpush.bf16.xpose.msra.mxu0 0
    %1788 = vmatpush.bf16.xpose.msra.mxu0 0
    %1789 = vmatpush.bf16.xpose.msra.mxu0 0
    %1790 = vmatpush.bf16.xpose.msra.mxu0 %v1781
    %1791 = vmatmul.bf16.gmra.mxu0 %v1778
    %v1792 = vpop.f32.mrf.mxu0
    %v1793 = vadd.f32 0.0, %v1792
    %v1794 = vpop.f32.mrf.mxu0
    %1795 = vdwg.mxu0
    %v1797 = vsel %vm499, %v1762, 0
    %v1800 = vsel %vm499, %v1770, 0
    %1802 = vmatpush.bf16.xpose.msra.mxu0 0
    %1803 = vmatpush.bf16.xpose.msra.mxu0 0
    %1804 = vmatpush.bf16.xpose.msra.mxu0 0
    %1805 = vmatpush.bf16.xpose.msra.mxu0 0
    %1806 = vmatpush.bf16.xpose.msra.mxu0 0
    %1807 = vmatpush.bf16.xpose.msra.mxu0 0
    %1808 = vmatpush.bf16.xpose.msra.mxu0 0
    %1809 = vmatpush.bf16.xpose.msra.mxu0 %v1800
    %1810 = vmatmul.bf16.gmra.mxu0 %v1797
    %v1811 = vpop.f32.mrf.mxu0
    %v1812 = vadd.f32 0.0, %v1811
    %v1813 = vpop.f32.mrf.mxu0
    %1814 = vdwg.mxu0
    %v1816 = vsel %vm499, %v1763, 0
    %v1819 = vsel %vm499, %v1771, 0
    %1821 = vmatpush.bf16.xpose.msra.mxu0 0
    %1822 = vmatpush.bf16.xpose.msra.mxu0 0
    %1823 = vmatpush.bf16.xpose.msra.mxu0 0
    %1824 = vmatpush.bf16.xpose.msra.mxu0 0
    %1825 = vmatpush.bf16.xpose.msra.mxu0 0
    %1826 = vmatpush.bf16.xpose.msra.mxu0 0
    %1827 = vmatpush.bf16.xpose.msra.mxu0 0
    %1828 = vmatpush.bf16.xpose.msra.mxu0 %v1819
    %1829 = vmatmul.bf16.gmra.mxu0 %v1816
    %v1830 = vpop.f32.mrf.mxu0
    %v1831 = vadd.f32 0.0, %v1830
    %v1832 = vpop.f32.mrf.mxu0
    %1833 = vdwg.mxu0
    %v1835 = vsel %vm499, %v1764, 0
    %v1838 = vsel %vm499, %v1772, 0
    %1840 = vmatpush.bf16.xpose.msra.mxu0 0
    %1841 = vmatpush.bf16.xpose.msra.mxu0 0
    %1842 = vmatpush.bf16.xpose.msra.mxu0 0
    %1843 = vmatpush.bf16.xpose.msra.mxu0 0
    %1844 = vmatpush.bf16.xpose.msra.mxu0 0
    %1845 = vmatpush.bf16.xpose.msra.mxu0 0
    %1846 = vmatpush.bf16.xpose.msra.mxu0 0
    %1847 = vmatpush.bf16.xpose.msra.mxu0 %v1838
    %1848 = vmatmul.bf16.gmra.mxu0 %v1835
    %v1849 = vpop.f32.mrf.mxu0
    %v1850 = vadd.f32 0.0, %v1849
    %v1851 = vpop.f32.mrf.mxu0
    %1852 = vdwg.mxu0
    %v1854 = vsel %vm499, %v1765, 0
    %v1857 = vsel %vm499, %v1773, 0
    %1859 = vmatpush.bf16.xpose.msra.mxu0 0
    %1860 = vmatpush.bf16.xpose.msra.mxu0 0
    %1861 = vmatpush.bf16.xpose.msra.mxu0 0
    %1862 = vmatpush.bf16.xpose.msra.mxu0 0
    %1863 = vmatpush.bf16.xpose.msra.mxu0 0
    %1864 = vmatpush.bf16.xpose.msra.mxu0 0
    %1865 = vmatpush.bf16.xpose.msra.mxu0 0
    %1866 = vmatpush.bf16.xpose.msra.mxu0 %v1857
    %1867 = vmatmul.bf16.gmra.mxu0 %v1854
    %v1868 = vpop.f32.mrf.mxu0
    %v1869 = vadd.f32 0.0, %v1868
    %v1870 = vpop.f32.mrf.mxu0
    %1871 = vdwg.mxu0
    %v1873 = vsel %vm499, %v1766, 0
    %v1876 = vsel %vm499, %v1774, 0
    %1878 = vmatpush.bf16.xpose.msra.mxu0 0
    %1879 = vmatpush.bf16.xpose.msra.mxu0 0
    %1880 = vmatpush.bf16.xpose.msra.mxu0 0
    %1881 = vmatpush.bf16.xpose.msra.mxu0 0
    %1882 = vmatpush.bf16.xpose.msra.mxu0 0
    %1883 = vmatpush.bf16.xpose.msra.mxu0 0
    %1884 = vmatpush.bf16.xpose.msra.mxu0 0
    %1885 = vmatpush.bf16.xpose.msra.mxu0 %v1876
    %1886 = vmatmul.bf16.gmra.mxu0 %v1873
    %v1887 = vpop.f32.mrf.mxu0
    %v1888 = vadd.f32 0.0, %v1887
    %v1889 = vpop.f32.mrf.mxu0
    %1890 = vdwg.mxu0
    %v1892 = vsel %vm499, %v1767, 0
    %v1895 = vsel %vm499, %v1775, 0
    %1897 = vmatpush.bf16.xpose.msra.mxu0 0
    %1898 = vmatpush.bf16.xpose.msra.mxu0 0
    %1899 = vmatpush.bf16.xpose.msra.mxu0 0
    %1900 = vmatpush.bf16.xpose.msra.mxu0 0
    %1901 = vmatpush.bf16.xpose.msra.mxu0 0
    %1902 = vmatpush.bf16.xpose.msra.mxu0 0
    %1903 = vmatpush.bf16.xpose.msra.mxu0 0
    %1904 = vmatpush.bf16.xpose.msra.mxu0 %v1895
    %1905 = vmatmul.bf16.gmra.mxu0 %v1892
    %v1906 = vpop.f32.mrf.mxu0
    %v1907 = vadd.f32 0.0, %v1906
    %v1908 = vpop.f32.mrf.mxu0
    %1909 = vdwg.mxu0
    %v1911 = vsel %vm499, %v1768, 0
    %v1914 = vsel %vm499, %v1776, 0
    %1916 = vmatpush.bf16.xpose.msra.mxu0 0
    %1917 = vmatpush.bf16.xpose.msra.mxu0 0
    %1918 = vmatpush.bf16.xpose.msra.mxu0 0
    %1919 = vmatpush.bf16.xpose.msra.mxu0 0
    %1920 = vmatpush.bf16.xpose.msra.mxu0 0
    %1921 = vmatpush.bf16.xpose.msra.mxu0 0
    %1922 = vmatpush.bf16.xpose.msra.mxu0 0
    %1923 = vmatpush.bf16.xpose.msra.mxu0 %v1914
    %1924 = vmatmul.bf16.gmra.mxu0 %v1911
    %v1925 = vpop.f32.mrf.mxu0
    %v1926 = vadd.f32 0.0, %v1925
    %v1927 = vpop.f32.mrf.mxu0
    %1928 = vdwg.mxu0
    %v1929 = vsel %vm499, %v1793, -inf
    %1930 = vmax.xlane.f32.xlu0 %v1929
    %v1931 = vpop.xlane.xlu0 %1930
    %v1932 = vsel %vm499, %v1812, -inf
    %1933 = vmax.xlane.f32.xlu0 %v1932
    %v1934 = vpop.xlane.xlu0 %1933
    %v1935 = vsel %vm499, %v1831, -inf
    %1936 = vmax.xlane.f32.xlu0 %v1935
    %v1937 = vpop.xlane.xlu0 %1936
    %v1938 = vsel %vm499, %v1850, -inf
    %1939 = vmax.xlane.f32.xlu0 %v1938
    %v1940 = vpop.xlane.xlu0 %1939
    %v1941 = vsel %vm499, %v1869, -inf
    %1942 = vmax.xlane.f32.xlu0 %v1941
    %v1943 = vpop.xlane.xlu0 %1942
    %v1944 = vsel %vm499, %v1888, -inf
    %1945 = vmax.xlane.f32.xlu0 %v1944
    %v1946 = vpop.xlane.xlu0 %1945
    %v1947 = vsel %vm499, %v1907, -inf
    %1948 = vmax.xlane.f32.xlu0 %v1947
    %v1949 = vpop.xlane.xlu0 %1948
    %v1950 = vsel %vm499, %v1926, -inf
    %1951 = vmax.xlane.f32.xlu0 %v1950
    %v1952 = vpop.xlane.xlu0 %1951
    %v1953 = vsub.f32 %v1793, %v1931
    %v1954 = vsub.f32 %v1812, %v1934
    %v1955 = vsub.f32 %v1831, %v1937
    %v1956 = vsub.f32 %v1850, %v1940
    %v1957 = vsub.f32 %v1869, %v1943
    %v1958 = vsub.f32 %v1888, %v1946
    %v1959 = vsub.f32 %v1907, %v1949
    %v1960 = vsub.f32 %v1926, %v1952
    %v1961 = vmul.f32 %v1953, 1.442695
    %v1962 = vpow.pop %v1961
    %v1963 = vmul.f32 %v1954, 1.442695
    %v1964 = vpow.pop %v1963
    %v1965 = vmul.f32 %v1955, 1.442695
    %v1966 = vpow.pop %v1965
    %v1967 = vmul.f32 %v1956, 1.442695
    %v1968 = vpow.pop %v1967
    %v1969 = vmul.f32 %v1957, 1.442695
    %v1970 = vpow.pop %v1969
    %v1971 = vmul.f32 %v1958, 1.442695
    %v1972 = vpow.pop %v1971
    %v1973 = vmul.f32 %v1959, 1.442695
    %v1974 = vpow.pop %v1973
    %v1975 = vmul.f32 %v1960, 1.442695
    %v1976 = vpow.pop %v1975
    %v1977 = vsel %vm499, %v1962, 0.0
    %1978 = vadd.xlane.f32.xlu0 %v1977
    %v1979 = vpop.xlane.xlu0 %1978
    %v1980 = vsel %vm499, %v1964, 0.0
    %1981 = vadd.xlane.f32.xlu0 %v1980
    %v1982 = vpop.xlane.xlu0 %1981
    %v1983 = vsel %vm499, %v1966, 0.0
    %1984 = vadd.xlane.f32.xlu0 %v1983
    %v1985 = vpop.xlane.xlu0 %1984
    %v1986 = vsel %vm499, %v1968, 0.0
    %1987 = vadd.xlane.f32.xlu0 %v1986
    %v1988 = vpop.xlane.xlu0 %1987
    %v1989 = vsel %vm499, %v1970, 0.0
    %1990 = vadd.xlane.f32.xlu0 %v1989
    %v1991 = vpop.xlane.xlu0 %1990
    %v1992 = vsel %vm499, %v1972, 0.0
    %1993 = vadd.xlane.f32.xlu0 %v1992
    %v1994 = vpop.xlane.xlu0 %1993
    %v1995 = vsel %vm499, %v1974, 0.0
    %1996 = vadd.xlane.f32.xlu0 %v1995
    %v1997 = vpop.xlane.xlu0 %1996
    %v1998 = vsel %vm499, %v1976, 0.0
    %1999 = vadd.xlane.f32.xlu0 %v1998
    %v2000 = vpop.xlane.xlu0 %1999
    %v2001 = vrcp.pop %v1979
    %v2002 = vrcp.pop %v1982
    %v2003 = vrcp.pop %v1985
    %v2004 = vrcp.pop %v1988
    %v2005 = vrcp.pop %v1991
    %v2006 = vrcp.pop %v1994
    %v2007 = vrcp.pop %v1997
    %v2008 = vrcp.pop %v2000
    %v2009 = vmul.f32 %v1962, %v2001
    %v2010 = vmul.f32 %v1964, %v2002
    %v2011 = vmul.f32 %v1966, %v2003
    %v2012 = vmul.f32 %v1968, %v2004
    %v2013 = vmul.f32 %v1970, %v2005
    %v2014 = vmul.f32 %v1972, %v2006
    %v2015 = vmul.f32 %v1974, %v2007
    %v2016 = vmul.f32 %v1976, %v2008
    %v2017 = vpack.c.bf16 %v2009, %v2009
    %v2018 = vpack.c.bf16 %v2010, %v2010
    %v2019 = vpack.c.bf16 %v2011, %v2011
    %v2020 = vpack.c.bf16 %v2012, %v2012
    %v2021 = vpack.c.bf16 %v2013, %v2013
    %v2022 = vpack.c.bf16 %v2014, %v2014
    %v2023 = vpack.c.bf16 %v2015, %v2015
    %v2024 = vpack.c.bf16 %v2016, %v2016
    %v2025 = vpack.c.bf16 %v1628, %v1628
    %v2026 = vpack.c.bf16 %v1653, %v1653
    %v2027 = vpack.c.bf16 %v1678, %v1678
    %v2028 = vpack.c.bf16 %v1703, %v1703
    %v2029 = vpack.c.bf16 %v1719, %v1719
    %v2030 = vpack.c.bf16 %v1732, %v1732
    %v2031 = vpack.c.bf16 %v1745, %v1745
    %v2032 = vpack.c.bf16 %v1758, %v1758
    %v2034 = vsel %vm499, %v2017, 0
    %v2037 = vsel %vm794, %v2025, 0
    %2039 = vmatpush.bf16.msra.mxu0 0
    %2040 = vmatpush.bf16.msra.mxu0 0
    %2041 = vmatpush.bf16.msra.mxu0 0
    %2042 = vmatpush.bf16.msra.mxu0 0
    %2043 = vmatpush.bf16.msra.mxu0 0
    %2044 = vmatpush.bf16.msra.mxu0 0
    %2045 = vmatpush.bf16.msra.mxu0 0
    %2046 = vmatpush.bf16.msra.mxu0 %v2037
    %2047 = vmatmul.bf16.gmra.mxu0 %v2034
    %v2048 = vpop.f32.mrf.mxu0
    %v2049 = vadd.f32 0.0, %v2048
    %v2050 = vpop.f32.mrf.mxu0
    %2051 = vdwg.mxu0
    %v2053 = vsel %vm499, %v2018, 0
    %v2056 = vsel %vm794, %v2026, 0
    %2058 = vmatpush.bf16.msra.mxu0 0
    %2059 = vmatpush.bf16.msra.mxu0 0
    %2060 = vmatpush.bf16.msra.mxu0 0
    %2061 = vmatpush.bf16.msra.mxu0 0
    %2062 = vmatpush.bf16.msra.mxu0 0
    %2063 = vmatpush.bf16.msra.mxu0 0
    %2064 = vmatpush.bf16.msra.mxu0 0
    %2065 = vmatpush.bf16.msra.mxu0 %v2056
    %2066 = vmatmul.bf16.gmra.mxu0 %v2053
    %v2067 = vpop.f32.mrf.mxu0
    %v2068 = vadd.f32 0.0, %v2067
    %v2069 = vpop.f32.mrf.mxu0
    %2070 = vdwg.mxu0
    %v2072 = vsel %vm499, %v2019, 0
    %v2075 = vsel %vm794, %v2027, 0
    %2077 = vmatpush.bf16.msra.mxu0 0
    %2078 = vmatpush.bf16.msra.mxu0 0
    %2079 = vmatpush.bf16.msra.mxu0 0
    %2080 = vmatpush.bf16.msra.mxu0 0
    %2081 = vmatpush.bf16.msra.mxu0 0
    %2082 = vmatpush.bf16.msra.mxu0 0
    %2083 = vmatpush.bf16.msra.mxu0 0
    %2084 = vmatpush.bf16.msra.mxu0 %v2075
    %2085 = vmatmul.bf16.gmra.mxu0 %v2072
    %v2086 = vpop.f32.mrf.mxu0
    %v2087 = vadd.f32 0.0, %v2086
    %v2088 = vpop.f32.mrf.mxu0
    %2089 = vdwg.mxu0
    %v2091 = vsel %vm499, %v2020, 0
    %v2094 = vsel %vm794, %v2028, 0
    %2096 = vmatpush.bf16.msra.mxu0 0
    %2097 = vmatpush.bf16.msra.mxu0 0
    %2098 = vmatpush.bf16.msra.mxu0 0
    %2099 = vmatpush.bf16.msra.mxu0 0
    %2100 = vmatpush.bf16.msra.mxu0 0
    %2101 = vmatpush.bf16.msra.mxu0 0
    %2102 = vmatpush.bf16.msra.mxu0 0
    %2103 = vmatpush.bf16.msra.mxu0 %v2094
    %2104 = vmatmul.bf16.gmra.mxu0 %v2091
    %v2105 = vpop.f32.mrf.mxu0
    %v2106 = vadd.f32 0.0, %v2105
    %v2107 = vpop.f32.mrf.mxu0
    %2108 = vdwg.mxu0
    %v2110 = vsel %vm499, %v2021, 0
    %v2113 = vsel %vm794, %v2029, 0
    %2115 = vmatpush.bf16.msra.mxu0 0
    %2116 = vmatpush.bf16.msra.mxu0 0
    %2117 = vmatpush.bf16.msra.mxu0 0
    %2118 = vmatpush.bf16.msra.mxu0 0
    %2119 = vmatpush.bf16.msra.mxu0 0
    %2120 = vmatpush.bf16.msra.mxu0 0
    %2121 = vmatpush.bf16.msra.mxu0 0
    %2122 = vmatpush.bf16.msra.mxu0 %v2113
    %2123 = vmatmul.bf16.gmra.mxu0 %v2110
    %v2124 = vpop.f32.mrf.mxu0
    %v2125 = vadd.f32 0.0, %v2124
    %v2126 = vpop.f32.mrf.mxu0
    %2127 = vdwg.mxu0
    %v2129 = vsel %vm499, %v2022, 0
    %v2132 = vsel %vm794, %v2030, 0
    %2134 = vmatpush.bf16.msra.mxu0 0
    %2135 = vmatpush.bf16.msra.mxu0 0
    %2136 = vmatpush.bf16.msra.mxu0 0
    %2137 = vmatpush.bf16.msra.mxu0 0
    %2138 = vmatpush.bf16.msra.mxu0 0
    %2139 = vmatpush.bf16.msra.mxu0 0
    %2140 = vmatpush.bf16.msra.mxu0 0
    %2141 = vmatpush.bf16.msra.mxu0 %v2132
    %2142 = vmatmul.bf16.gmra.mxu0 %v2129
    %v2143 = vpop.f32.mrf.mxu0
    %v2144 = vadd.f32 0.0, %v2143
    %v2145 = vpop.f32.mrf.mxu0
    %2146 = vdwg.mxu0
    %v2148 = vsel %vm499, %v2023, 0
    %v2151 = vsel %vm794, %v2031, 0
    %2153 = vmatpush.bf16.msra.mxu0 0
    %2154 = vmatpush.bf16.msra.mxu0 0
    %2155 = vmatpush.bf16.msra.mxu0 0
    %2156 = vmatpush.bf16.msra.mxu0 0
    %2157 = vmatpush.bf16.msra.mxu0 0
    %2158 = vmatpush.bf16.msra.mxu0 0
    %2159 = vmatpush.bf16.msra.mxu0 0
    %2160 = vmatpush.bf16.msra.mxu0 %v2151
    %2161 = vmatmul.bf16.gmra.mxu0 %v2148
    %v2162 = vpop.f32.mrf.mxu0
    %v2163 = vadd.f32 0.0, %v2162
    %v2164 = vpop.f32.mrf.mxu0
    %2165 = vdwg.mxu0
    %v2167 = vsel %vm499, %v2024, 0
    %v2170 = vsel %vm794, %v2032, 0
    %2172 = vmatpush.bf16.msra.mxu0 0
    %2173 = vmatpush.bf16.msra.mxu0 0
    %2174 = vmatpush.bf16.msra.mxu0 0
    %2175 = vmatpush.bf16.msra.mxu0 0
    %2176 = vmatpush.bf16.msra.mxu0 0
    %2177 = vmatpush.bf16.msra.mxu0 0
    %2178 = vmatpush.bf16.msra.mxu0 0
    %2179 = vmatpush.bf16.msra.mxu0 %v2170
    %2180 = vmatmul.bf16.gmra.mxu0 %v2167
    %v2181 = vpop.f32.mrf.mxu0
    %v2182 = vadd.f32 0.0, %v2181
    %v2183 = vpop.f32.mrf.mxu0
    %2184 = vdwg.mxu0
    %v2185 = vld [vmem:[%s16] sm:$0xf]
    %v2186 = vld [vmem:[%s16 + $0x4] sm:$0xf]
    %v2187 = vld [vmem:[%s16 + $0x8] sm:$0xf]
    %v2188 = vld [vmem:[%s16 + $0xc] sm:$0xf]
    %v2189 = vpack.c.bf16 %v2049, %v2049
    %v2190 = vpack.c.bf16 %v2068, %v2068
    %v2191 = vpack.c.bf16 %v2087, %v2087
    %v2192 = vpack.c.bf16 %v2106, %v2106
    %v2193 = vpack.c.bf16 %v2125, %v2125
    %v2194 = vpack.c.bf16 %v2144, %v2144
    %v2195 = vpack.c.bf16 %v2163, %v2163
    %v2196 = vpack.c.bf16 %v2182, %v2182
    %v2198 = vsel %vm499, %v2189, 0
    %v2201 = vsel %vm794, %v2185, 0
    %2203 = vmatpush.bf16.msra.mxu0 0
    %2204 = vmatpush.bf16.msra.mxu0 0
    %2205 = vmatpush.bf16.msra.mxu0 0
    %2206 = vmatpush.bf16.msra.mxu0 0
    %2207 = vmatpush.bf16.msra.mxu0 0
    %2208 = vmatpush.bf16.msra.mxu0 0
    %2209 = vmatpush.bf16.msra.mxu0 0
    %2210 = vmatpush.bf16.msra.mxu0 %v2201
    %2211 = vmatmul.bf16.gmra.mxu0 %v2198
    %v2212 = vpop.f32.mrf.mxu0
    %v2213 = vadd.f32 0.0, %v2212
    %v2214 = vpop.f32.mrf.mxu0
    %2215 = vdwg.mxu0
    %v2217 = vsel %vm499, %v2190, 0
    %v2220 = vsel %vm794, %v2186, 0
    %2222 = vmatpush.bf16.msra.mxu0 0
    %2223 = vmatpush.bf16.msra.mxu0 0
    %2224 = vmatpush.bf16.msra.mxu0 0
    %2225 = vmatpush.bf16.msra.mxu0 0
    %2226 = vmatpush.bf16.msra.mxu0 0
    %2227 = vmatpush.bf16.msra.mxu0 0
    %2228 = vmatpush.bf16.msra.mxu0 0
    %2229 = vmatpush.bf16.msra.mxu0 %v2220
    %2230 = vmatmul.bf16.gmra.mxu0 %v2217
    %v2231 = vpop.f32.mrf.mxu0
    %v2232 = vadd.f32 0.0, %v2231
    %v2233 = vpop.f32.mrf.mxu0
    %2234 = vdwg.mxu0
    %v2236 = vsel %vm499, %v2191, 0
    %v2239 = vsel %vm794, %v2187, 0
    %2241 = vmatpush.bf16.msra.mxu0 0
    %2242 = vmatpush.bf16.msra.mxu0 0
    %2243 = vmatpush.bf16.msra.mxu0 0
    %2244 = vmatpush.bf16.msra.mxu0 0
    %2245 = vmatpush.bf16.msra.mxu0 0
    %2246 = vmatpush.bf16.msra.mxu0 0
    %2247 = vmatpush.bf16.msra.mxu0 0
    %2248 = vmatpush.bf16.msra.mxu0 %v2239
    %2249 = vmatmul.bf16.gmra.mxu0 %v2236
    %v2250 = vpop.f32.mrf.mxu0
    %v2251 = vadd.f32 0.0, %v2250
    %v2252 = vpop.f32.mrf.mxu0
    %2253 = vdwg.mxu0
    %v2255 = vsel %vm499, %v2192, 0
    %v2258 = vsel %vm794, %v2188, 0
    %2260 = vmatpush.bf16.msra.mxu0 0
    %2261 = vmatpush.bf16.msra.mxu0 0
    %2262 = vmatpush.bf16.msra.mxu0 0
    %2263 = vmatpush.bf16.msra.mxu0 0
    %2264 = vmatpush.bf16.msra.mxu0 0
    %2265 = vmatpush.bf16.msra.mxu0 0
    %2266 = vmatpush.bf16.msra.mxu0 0
    %2267 = vmatpush.bf16.msra.mxu0 %v2258
    %2268 = vmatmul.bf16.gmra.mxu0 %v2255
    %v2269 = vpop.f32.mrf.mxu0
    %v2270 = vadd.f32 0.0, %v2269
    %v2271 = vpop.f32.mrf.mxu0
    %2272 = vdwg.mxu0
    %v2274 = vsel %vm499, %v2193, 0
    %2276 = vmatpush.bf16.msra.mxu0 0
    %2277 = vmatpush.bf16.msra.mxu0 0
    %2278 = vmatpush.bf16.msra.mxu0 0
    %2279 = vmatpush.bf16.msra.mxu0 0
    %2280 = vmatpush.bf16.msra.mxu0 0
    %2281 = vmatpush.bf16.msra.mxu0 0
    %2282 = vmatpush.bf16.msra.mxu0 0
    %2283 = vmatpush.bf16.msra.mxu0 %v2201
    %2284 = vmatmul.bf16.gmra.mxu0 %v2274
    %v2285 = vpop.f32.mrf.mxu0
    %v2286 = vadd.f32 0.0, %v2285
    %v2287 = vpop.f32.mrf.mxu0
    %2288 = vdwg.mxu0
    %v2290 = vsel %vm499, %v2194, 0
    %2292 = vmatpush.bf16.msra.mxu0 0
    %2293 = vmatpush.bf16.msra.mxu0 0
    %2294 = vmatpush.bf16.msra.mxu0 0
    %2295 = vmatpush.bf16.msra.mxu0 0
    %2296 = vmatpush.bf16.msra.mxu0 0
    %2297 = vmatpush.bf16.msra.mxu0 0
    %2298 = vmatpush.bf16.msra.mxu0 0
    %2299 = vmatpush.bf16.msra.mxu0 %v2220
    %2300 = vmatmul.bf16.gmra.mxu0 %v2290
    %v2301 = vpop.f32.mrf.mxu0
    %v2302 = vadd.f32 0.0, %v2301
    %v2303 = vpop.f32.mrf.mxu0
    %2304 = vdwg.mxu0
    %v2306 = vsel %vm499, %v2195, 0
    %2308 = vmatpush.bf16.msra.mxu0 0
    %2309 = vmatpush.bf16.msra.mxu0 0
    %2310 = vmatpush.bf16.msra.mxu0 0
    %2311 = vmatpush.bf16.msra.mxu0 0
    %2312 = vmatpush.bf16.msra.mxu0 0
    %2313 = vmatpush.bf16.msra.mxu0 0
    %2314 = vmatpush.bf16.msra.mxu0 0
    %2315 = vmatpush.bf16.msra.mxu0 %v2239
    %2316 = vmatmul.bf16.gmra.mxu0 %v2306
    %v2317 = vpop.f32.mrf.mxu0
    %v2318 = vadd.f32 0.0, %v2317
    %v2319 = vpop.f32.mrf.mxu0
    %2320 = vdwg.mxu0
    %v2322 = vsel %vm499, %v2196, 0
    %2324 = vmatpush.bf16.msra.mxu0 0
    %2325 = vmatpush.bf16.msra.mxu0 0
    %2326 = vmatpush.bf16.msra.mxu0 0
    %2327 = vmatpush.bf16.msra.mxu0 0
    %2328 = vmatpush.bf16.msra.mxu0 0
    %2329 = vmatpush.bf16.msra.mxu0 0
    %2330 = vmatpush.bf16.msra.mxu0 0
    %2331 = vmatpush.bf16.msra.mxu0 %v2258
    %2332 = vmatmul.bf16.gmra.mxu0 %v2322
    %v2333 = vpop.f32.mrf.mxu0
    %v2334 = vadd.f32 0.0, %v2333
    %v2335 = vpop.f32.mrf.mxu0
    %2336 = vdwg.mxu0
    %v2337 = vsel %vm147, %v2213, 0.0
    %v2338 = vsel %vm147, %v2232, 0.0
    %v2339 = vadd.f32 %v2337, %v2338
    %v2340 = vsel %vm147, %v2251, 0.0
    %v2341 = vadd.f32 %v2339, %v2340
    %v2342 = vsel %vm147, %v2270, 0.0
    %v2343 = vadd.f32 %v2341, %v2342
    %v2344 = vsel %vm147, %v2286, 0.0
    %v2345 = vsel %vm147, %v2302, 0.0
    %v2346 = vadd.f32 %v2344, %v2345
    %v2347 = vsel %vm147, %v2318, 0.0
    %v2348 = vadd.f32 %v2346, %v2347
    %v2349 = vsel %vm147, %v2334, 0.0
    %v2350 = vadd.f32 %v2348, %v2349
    %v2351 = vld [vmem:[%s17] sm:$0x1]
    %v2353 = vperm.slane %v2351, 0
    %v2355 = vadd.f32 %v2343, %v2353
    %v2356 = vadd.f32 %v2350, %v2353
    %v2357 = vadd.f32 %v1179, %v2355
    %v2358 = vadd.f32 %v1180, %v2356
    %v2359 = vsel %vm147, %v2357, 0.0
    %2360 = vadd.xlane.f32.xlu0 %v2359
    %v2361 = vpop.xlane.xlu0 %2360
    %v2362 = vsel %vm147, %v2358, 0.0
    %2363 = vadd.xlane.f32.xlu0 %v2362
    %v2364 = vpop.xlane.xlu0 %2363
    %v2365 = vmul.f32 %v2361, %v1130
    %v2366 = vmul.f32 %v2364, %v1130
    %v2367 = vsub.f32 %v2357, %v2365
    %v2368 = vsub.f32 %v2358, %v2366
    %v2369 = vmul.f32 %v2367, %v2367
    %v2370 = vmul.f32 %v2368, %v2368
    %v2371 = vsel %vm147, %v2369, 0.0
    %2372 = vadd.xlane.f32.xlu0 %v2371
    %v2373 = vpop.xlane.xlu0 %2372
    %v2374 = vsel %vm147, %v2370, 0.0
    %2375 = vadd.xlane.f32.xlu0 %v2374
    %v2376 = vpop.xlane.xlu0 %2375
    %v2377 = vmul.f32 %v2373, %v1130
    %v2378 = vmul.f32 %v2376, %v1130
    %v2379 = vadd.f32 %v2377, 1e-05
    %v2380 = vadd.f32 %v2378, 1e-05
    %v2381 = vrsqrt.pop %v2379
    %v2382 = vmul.f32 %v2381, %v2379
    %v2383 = vmul.f32 %v2382, %v2381
    %v2384 = vmul.f32 0.5, %v2383
    %v2385 = vsub.f32 1.5, %v2384
    %v2386 = vmul.f32 %v2381, %v2385
    %vm2387 = vweird.f32 %v2379
    %vm2388 = vweird.f32 %v2381
    %vm2389 = vmor %vm2387, %vm2388
    %v2390 = vsel %vm2389, %v2381, %v2386
    %v2391 = vrsqrt.pop %v2380
    %v2392 = vmul.f32 %v2391, %v2380
    %v2393 = vmul.f32 %v2392, %v2391
    %v2394 = vmul.f32 0.5, %v2393
    %v2395 = vsub.f32 1.5, %v2394
    %v2396 = vmul.f32 %v2391, %v2395
    %vm2397 = vweird.f32 %v2380
    %vm2398 = vweird.f32 %v2391
    %vm2399 = vmor %vm2397, %vm2398
    %v2400 = vsel %vm2399, %v2391, %v2396
    %v2401 = vmul.f32 %v2367, %v2390
    %v2402 = vmul.f32 %v2368, %v2400
    %v2403 = vld [vmem:[%s24] sm:$0x1]
    %v2405 = vperm.slane %v2403, 0
    %v2407 = vmul.f32 %v2401, %v2405
    %v2408 = vmul.f32 %v2402, %v2405
    %v2409 = vld [vmem:[%s25] sm:$0x1]
    %v2411 = vperm.slane %v2409, 0
    %v2413 = vadd.f32 %v2407, %v2411
    %v2414 = vadd.f32 %v2408, %v2411
    %v2415 = vpack.c.bf16 %v2414, %v2413
    %v2416 = vld [vmem:[%s18] sm:$0xf]
    %v2417 = vld [vmem:[%s18 + $0x4] sm:$0xf]
    %v2418 = vld [vmem:[%s18 + $0x8] sm:$0xf]
    %v2419 = vld [vmem:[%s18 + $0xc] sm:$0xf]
    %v2420 = vld [vmem:[%s19] sm:$0x1]
    %v2422 = vperm.slane %v2420, 0
    %v2428 = vunpack.c.l.b16 %v2416
    %v2429 = vunpack.c.l.b16 %v2417
    %v2430 = vunpack.c.l.b16 %v2418
    %v2431 = vunpack.c.l.b16 %v2419
    %v2432 = vpack.c.b16 %v2429, %v2428
    %v2433 = vpack.c.b16 %v2431, %v2430
    %v2437 = vsel %vm147, %v2415, 0
    %2439 = vmatpush.bf16.msra.mxu0 0
    %2440 = vmatpush.bf16.msra.mxu0 0
    %2441 = vmatpush.bf16.msra.mxu0 0
    %2442 = vmatpush.bf16.msra.mxu0 0
    %2443 = vmatpush.bf16.msra.mxu0 0
    %2444 = vmatpush.bf16.msra.mxu0 0
    %2445 = vmatpush.bf16.msra.mxu0 %v2433
    %2446 = vmatpush.bf16.msra.mxu0 %v2432
    %2447 = vmatmul.bf16.gmra.mxu0 %v2437
    %v2448 = vpop.f32.mrf.mxu0
    %v2449 = vadd.f32 %v2422, %v2448
    %v2450 = vpop.f32.mrf.mxu0
    %v2451 = vadd.f32 %v2422, %v2450
    %2452 = vdwg.mxu0
    %v2453 = vmax.f32 %v2449, 0.0
    %v2454 = vmax.f32 %v2451, 0.0
    %v2455 = vpack.c.bf16 %v2454, %v2453
    %v2456 = vld [vmem:[%s20] sm:$0xf]
    %v2457 = vld [vmem:[%s20 + $0x4] sm:$0xf]
    %v2458 = vld [vmem:[%s20 + $0x8] sm:$0xf]
    %v2459 = vld [vmem:[%s20 + $0xc] sm:$0xf]
    %v2460 = vld [vmem:[%s20 + $0x10] sm:$0xf]
    %v2461 = vld [vmem:[%s20 + $0x14] sm:$0xf]
    %v2462 = vld [vmem:[%s20 + $0x18] sm:$0xf]
    %v2463 = vld [vmem:[%s20 + $0x1c] sm:$0xf]
    %v2464 = vld [vmem:[%s21] sm:$0x1]
    %v2466 = vperm.slane %v2464, 0
    %v2476 = vunpack.c.l.b16 %v2456
    %v2477 = vunpack.c.l.b16 %v2457
    %v2478 = vunpack.c.l.b16 %v2458
    %v2479 = vunpack.c.l.b16 %v2459
    %v2480 = vunpack.c.l.b16 %v2460
    %v2481 = vunpack.c.l.b16 %v2461
    %v2482 = vunpack.c.l.b16 %v2462
    %v2483 = vunpack.c.l.b16 %v2463
    %v2484 = vpack.c.b16 %v2477, %v2476
    %v2485 = vpack.c.b16 %v2479, %v2478
    %v2486 = vpack.c.b16 %v2481, %v2480
    %v2487 = vpack.c.b16 %v2483, %v2482
    %vm2492 = vcmask 523264
    %v2494 = vsel %vm2492, %v2455, 0
    %2496 = vmatpush.bf16.msra.mxu0 0
    %2497 = vmatpush.bf16.msra.mxu0 0
    %2498 = vmatpush.bf16.msra.mxu0 0
    %2499 = vmatpush.bf16.msra.mxu0 0
    %2500 = vmatpush.bf16.msra.mxu0 %v2487
    %2501 = vmatpush.bf16.msra.mxu0 %v2486
    %2502 = vmatpush.bf16.msra.mxu0 %v2485
    %2503 = vmatpush.bf16.msra.mxu0 %v2484
    %2504 = vmatmul.bf16.gmra.mxu0 %v2494
    %v2505 = vpop.f32.mrf.mxu0
    %v2506 = vadd.f32 %v2466, %v2505
    %v2507 = vpop.f32.mrf.mxu0
    %v2508 = vadd.f32 %v2466, %v2507
    %2509 = vdwg.mxu0
    %v2510 = vadd.f32 %v2413, %v2506
    %v2511 = vadd.f32 %v2414, %v2508
    %v2512 = vsel %vm147, %v2510, 0.0
    %2513 = vadd.xlane.f32.xlu0 %v2512
    %v2514 = vpop.xlane.xlu0 %2513
    %v2515 = vsel %vm147, %v2511, 0.0
    %2516 = vadd.xlane.f32.xlu0 %v2515
    %v2517 = vpop.xlane.xlu0 %2516
    %v2518 = vmul.f32 %v2514, %v1130
    %v2519 = vmul.f32 %v2517, %v1130
    %v2520 = vsub.f32 %v2510, %v2518
    %v2521 = vsub.f32 %v2511, %v2519
    %v2522 = vmul.f32 %v2520, %v2520
    %v2523 = vmul.f32 %v2521, %v2521
    %v2524 = vsel %vm147, %v2522, 0.0
    %2525 = vadd.xlane.f32.xlu0 %v2524
    %v2526 = vpop.xlane.xlu0 %2525
    %v2527 = vsel %vm147, %v2523, 0.0
    %2528 = vadd.xlane.f32.xlu0 %v2527
    %v2529 = vpop.xlane.xlu0 %2528
    %v2530 = vmul.f32 %v2526, %v1130
    %v2531 = vmul.f32 %v2529, %v1130
    %v2532 = vadd.f32 %v2530, 1e-05
    %v2533 = vadd.f32 %v2531, 1e-05
    %v2534 = vrsqrt.pop %v2532
    %v2535 = vmul.f32 %v2534, %v2532
    %v2536 = vmul.f32 %v2535, %v2534
    %v2537 = vmul.f32 0.5, %v2536
    %v2538 = vsub.f32 1.5, %v2537
    %v2539 = vmul.f32 %v2534, %v2538
    %vm2540 = vweird.f32 %v2532
    %vm2541 = vweird.f32 %v2534
    %vm2542 = vmor %vm2540, %vm2541
    %v2543 = vsel %vm2542, %v2534, %v2539
    %v2544 = vrsqrt.pop %v2533
    %v2545 = vmul.f32 %v2544, %v2533
    %v2546 = vmul.f32 %v2545, %v2544
    %v2547 = vmul.f32 0.5, %v2546
    %v2548 = vsub.f32 1.5, %v2547
    %v2549 = vmul.f32 %v2544, %v2548
    %vm2550 = vweird.f32 %v2533
    %vm2551 = vweird.f32 %v2544
    %vm2552 = vmor %vm2550, %vm2551
    %v2553 = vsel %vm2552, %v2544, %v2549
    %v2554 = vmul.f32 %v2520, %v2543
    %v2555 = vmul.f32 %v2521, %v2553
    %v2556 = vld [vmem:[%s26] sm:$0x1]
    %v2558 = vperm.slane %v2556, 0
    %v2560 = vmul.f32 %v2554, %v2558
    %v2561 = vmul.f32 %v2555, %v2558
    %v2562 = vld [vmem:[%s27] sm:$0x1]
    %v2564 = vperm.slane %v2562, 0
    %v2566 = vadd.f32 %v2560, %v2564
    %v2567 = vadd.f32 %v2561, %v2564
    %2568 = vst.msk [vmem:[#allocation2] sm:$0xff] %vm147, %v2566
    %2569 = vst.msk [vmem:[#allocation2 + $0x8] sm:$0xff] %vm147, %v2567
    // Predicated region
    $region114: #{tpu_custom_call.1} parent=1 // pred_check
      _
    $region115: #{tpu_custom_call.1} parent=1 // pred_check_branch
      %2571 = sbr.rel (0) target = $region117
    $region116: #{tpu_custom_call.1} parent=1 // pred_region
      %2573 = vsyncadd [#allocation3], 0
      %s2574 = sshll.u32 [#allocation2], 4
      %s2575 = int_to_ptr.vmem [resolvable:$true] %s2574
      %s2576 = sshll.u32 %s28, 4
      %s2577 = int_to_ptr.hbm [resolvable:$true] %s2576
      %2582 = dma.vmem_to_hbm [thread:$0]  %s2575, 256, %s2577, [#allocation3], 128, 128, 8
    $region117: #{tpu_custom_call.1} parent=1 // pred_fallthru
      _
    // Predicated region
    $region118: #{tpu_custom_call.1} parent=1 // pred_check
      _
    $region119: #{tpu_custom_call.1} parent=1 // pred_check_branch
      %2584 = sbr.rel (0) target = $region121
    $region120: #{tpu_custom_call.1} parent=1 // pred_region
      %2586 = dma.done [#allocation3], 256
    $region121: #{tpu_custom_call.1} parent=1 // pred_fallthru
      _
    %2587 = vsyncpa [#allocation3], 1

</llo_original>
